<compile_context>
chip_gen: v6e
topology: v6e:2x2x1
jax: 0.10.0
libtpu: 0.0.40
codegen_flags: <defaults>
</compile_context>

<pallas_src>
import math
import functools

import jax
import jax.numpy as jnp
from jax.experimental import pallas as pl
from jax.experimental.pallas import tpu as pltpu


# Packed small-vector table layout:
#   row 0: conv bias, row 1: output-head bias (lane padded),
#   rows 2 + 7*l + k: layer l's vectors in this order.
_LAYER_VEC_ORDER = ("b_qkv", "b_o", "ln1_g", "ln1_b", "b_ff2", "ln2_g", "ln2_b")
_VEC_ROWS_PER_LAYER = len(_LAYER_VEC_ORDER)


def _layernorm(x, gamma, beta, eps):
    mu = jnp.mean(x, axis=-1, keepdims=True)
    var = jnp.mean((x - mu) ** 2, axis=-1, keepdims=True)
    return (x - mu) * jax.lax.rsqrt(var + eps) * gamma + beta


# ------------------------- fused kernel -------------------------

def _fused_forward_kernel(patches_ref, conv_w_ref, w_qkv_ref, w_o_ref,
                          w_out_ref, vec_ref, b_ff1_ref,
                          w_ff1_hbm, w_ff2_hbm,
                          out_ref,
                          head_cat, ff1_buf, ff2_buf, ff_sems,
                          *, layers, heads, d_model, batch, eps):
    f32 = jnp.float32
    bf16 = jnp.bfloat16
    D = d_model
    Dh = D // heads
    M = patches_ref.shape[0]
    chunk = ff2_buf.shape[1]
    n_fold = ff2_buf.shape[2] // D

    # Start the FFN weight DMAs immediately so they overlap the conv +
    # attention compute (blocked inputs are already resident at this point).
    ff_copies = []
    for l in range(layers):
        c1 = pltpu.make_async_copy(w_ff1_hbm.at[l], ff1_buf.at[l],
                                   ff_sems.at[0, l])
        c2 = pltpu.make_async_copy(w_ff2_hbm.at[l], ff2_buf.at[l],
                                   ff_sems.at[1, l])
        c1.start()
        c2.start()
        ff_copies.append((c1, c2))

    vecs = vec_ref[...]            # (2 + 7*layers, >=128) f32, a few vregs
    b_ff1_all = b_ff1_ref[...]     # (layers, dff) f32

    def vrow(row, width):
        return vecs[row:row + 1, :width]          # (1, width)

    conv_b = vrow(0, D)
    b_out = vecs[1:2, :out_ref.shape[1]]          # (1, n_pad)

    # Additive attention bias: rows are in (frame, batch) order, so rows i, j
    # belong to the same frame iff floor(i/batch) == floor(j/batch).
    # (float floor with the +0.5 trick avoids vector integer division.)
    ri = jax.lax.broadcasted_iota(jnp.int32, (M, M), 0).astype(f32)
    ci = jax.lax.broadcasted_iota(jnp.int32, (M, M), 1).astype(f32)
    inv_b = 1.0 / float(batch)
    same_frame = jnp.floor((ri + 0.5) * inv_b) == jnp.floor((ci + 0.5) * inv_b)
    attn_bias = jnp.where(same_frame, 0.0, -1e30)  # keep mask math in fp32

    # --- Conv1d (stride == kernel_size) as one patch matmul (fp32) ---
    x = jnp.dot(patches_ref[...], conv_w_ref[...],
                preferred_element_type=f32) + conv_b                   # (M, D)

    # --- transformer encoder layers, fully VMEM-resident ---
    for l in range(layers):
        base = 2 + _VEC_ROWS_PER_LAYER * l
        b_qkv = vrow(base + 0, 3 * D)
        b_o = vrow(base + 1, D)
        ln1_g = vrow(base + 2, D)
        ln1_b = vrow(base + 3, D)
        b_ff2 = vrow(base + 4, D)
        ln2_g = vrow(base + 5, D)
        ln2_b = vrow(base + 6, D)

        # Packed q/k/v projection (softmax scale pre-folded into the Q part).
        qkv = jnp.dot(x.astype(bf16), w_qkv_ref[l],
                      preferred_element_type=f32) + b_qkv              # (M, 3D)

        # Per-head attention; head outputs land in a VMEM scratch so the
        # output projection is a single (M, D) @ (D, D) matmul.
        for h in range(heads):
            lo = h * Dh
            q = qkv[:, lo:lo + Dh]
            k = qkv[:, D + lo:D + lo + Dh]
            v = qkv[:, 2 * D + lo:2 * D + lo + Dh]
            s = jnp.einsum('md,nd->mn', q, k,
                           preferred_element_type=f32) + attn_bias
            m = jnp.max(s, axis=-1, keepdims=True)
            p = jnp.exp(s - m)
            p = p * pl.reciprocal(jnp.sum(p, axis=-1, keepdims=True),
                                  approx=True)                         # EUP
            head_cat[:, pl.ds(lo, Dh)] = jnp.dot(p, v,
                                                 preferred_element_type=f32)

        attn = jnp.dot(head_cat[...].astype(bf16), w_o_ref[l],
                       preferred_element_type=f32) + b_o

        # post-norm block 1
        x1 = _layernorm(x + attn, ln1_g, ln1_b, eps)

        # FFN weights: wait for this layer's async copies (started at top).
        c1, c2 = ff_copies[l]
        c1.wait()
        c2.wait()

        hdn = jnp.dot(x1.astype(bf16), ff1_buf[l],
                      preferred_element_type=f32) + b_ff1_all[l:l + 1, :]
        hdn = jnp.maximum(hdn, 0.0).astype(bf16)                       # (M, dff)

        # Lane-dense packed FFN2: n_fold partial matmuls, accumulate the
        # matching D-lane slice of each (M, n_fold*D) result.
        w2p = ff2_buf[l]                                               # (chunk, n_fold*D)
        ff = jnp.zeros((M, D), f32)
        for r in range(n_fold):
            part = jnp.dot(hdn[:, r * chunk:(r + 1) * chunk], w2p,
                           preferred_element_type=f32)
            ff = ff + part[:, r * D:(r + 1) * D]
        ff = ff + b_ff2

        # post-norm block 2
        x = _layernorm(x1 + ff, ln2_g, ln2_b, eps)

    # --- output head: lane-dense (padded to 128 in prepare_params) ---
    out_ref[...] = (jnp.dot(x, w_out_ref[...], preferred_element_type=f32)
                    + b_out).astype(out_ref.dtype)


def _full_spec(shape):
    ndim = len(shape)
    return pl.BlockSpec(shape, lambda i, _n=ndim: (0,) * _n)


# ------------------------- host-side glue -------------------------

def prepare_params(params):
    """One-time weight preprocessing: fold Conv1d layout, cast matmul weights
    to bf16, fold the softmax scale into W_q, repack w_ff2 lane-dense, pack
    all small 1-D params into one table, pad the output head to 128 lanes."""
    ks = params["ks"]
    D = params["width"]
    heads = params["heads"]
    out_chans = params["out_chans"]
    layer_ps = params["layers"]
    layers = len(layer_ps)
    C = params["conv_w"].shape[1]
    dff = layer_ps[0]["w_ff1"].shape[1]
    Dh = D // heads
    scale = 1.0 / math.sqrt(Dh)

    n_pad = -(-out_chans // 128) * 128
    w_row = -(-max(3 * D, n_pad) // 128) * 128

    n_rows = 2 + _VEC_ROWS_PER_LAYER * layers
    vec = jnp.zeros((n_rows, w_row), jnp.float32)
    vec = vec.at[0, :D].set(params["conv_b"].astype(jnp.float32))
    vec = vec.at[1, :out_chans].set(params["b_out"].astype(jnp.float32))

    # fold the 1/sqrt(Dh) scale into the Q columns of w_qkv / b_qkv
    col_scale = jnp.concatenate([jnp.full((D,), scale, jnp.float32),
                                 jnp.ones((2 * D,), jnp.float32)])

    n_fold = max(1, 128 // D)
    if dff % n_fold != 0:
        n_fold = 1
    chunk = dff // n_fold

    w_qkv_l, w_o_l, w_ff1_l, w_ff2p_l, b_ff1_l = [], [], [], [], []
    for l, lp in enumerate(layer_ps):
        base = 2 + _VEC_ROWS_PER_LAYER * l
        vals = {
            "b_qkv": lp["b_qkv"] * col_scale,
            "b_o": lp["b_o"], "ln1_g": lp["ln1_g"], "ln1_b": lp["ln1_b"],
            "b_ff2": lp["b_ff2"], "ln2_g": lp["ln2_g"], "ln2_b": lp["ln2_b"],
        }
        for k, name in enumerate(_LAYER_VEC_ORDER):
            v = vals[name].astype(jnp.float32)
            vec = vec.at[base + k, :v.shape[0]].set(v)

        w_qkv_l.append((lp["w_qkv"] * col_scale[None, :]).astype(jnp.bfloat16))
        w_o_l.append(lp["w_o"].astype(jnp.bfloat16))
        w_ff1_l.append(lp["w_ff1"].astype(jnp.bfloat16))
        # lane-dense repack: W2p[k', r*D + d] = w_ff2[r*chunk + k', d]
        w_ff2p_l.append(lp["w_ff2"].reshape(n_fold, chunk, D)
                        .transpose(1, 0, 2).reshape(chunk, n_fold * D)
                        .astype(jnp.bfloat16))
        b_ff1_l.append(lp["b_ff1"].astype(jnp.float32))

    prep = {
        # Conv1d weight (width, C, ks) -> (ks*C, width); patch index = k*C + c
        "conv_w": params["conv_w"].transpose(2, 1, 0).reshape(ks * C, D)
                  .astype(jnp.float32),
        "w_qkv": jnp.stack(w_qkv_l),                       # (L, D, 3D)  bf16
        "w_o": jnp.stack(w_o_l),                           # (L, D, D)   bf16
        "w_out": jnp.zeros((D, n_pad), jnp.float32)
                 .at[:, :out_chans].set(params["w_out"].astype(jnp.float32)),
        "vec": vec,                                        # small-vector table
        "b_ff1": jnp.stack(b_ff1_l),                       # (L, dff)    f32
        "w_ff1": jnp.stack(w_ff1_l),                       # (L, D, dff) bf16
        "w_ff2p": jnp.stack(w_ff2p_l),                     # (L, chunk, n_fold*D)
    }
    cfg = dict(ks=ks, width=D, heads=heads, out_chans=out_chans, layers=layers)
    return prep, cfg


@functools.partial(jax.jit,
                   static_argnames=("ks", "width", "heads", "out_chans", "layers"))
def speech_xformer_forward(prep, x, lens, *, ks, width, heads, out_chans, layers):
    """x: (B, T, C_in) float32, lens: (B,) int32.
    Returns ((S, B, out_chans), lens // ks)."""
    B, T, C = x.shape
    S = (T - ks) // ks + 1
    M = S * B
    D = width
    n_pad = prep["w_out"].shape[1]
    dff = prep["w_ff1"].shape[-1]
    chunk = prep["w_ff2p"].shape[1]
    packed_n = prep["w_ff2p"].shape[2]

    # Non-overlapping conv patches, reordered to (frame, batch) row-major so
    # the kernel's activation rows match the (S, B, D) layout.
    patches = (x[:, :S * ks, :]
               .reshape(B, S, ks * C)
               .transpose(1, 0, 2)
               .reshape(M, ks * C))

    blocked = (patches, prep["conv_w"], prep["w_qkv"], prep["w_o"],
               prep["w_out"], prep["vec"], prep["b_ff1"])

    kernel = functools.partial(_fused_forward_kernel, layers=layers,
                               heads=heads, d_model=D, batch=B, eps=1e-5)

    # TODO(synk): if B*T or layers grow, tile M on a "parallel" grid axis
    # (dual-TC on v7x) and double-buffer per-layer FFN weights instead of
    # holding all layers in VMEM; re-derive the budget against 64 MiB (v7x).
    out = pl.pallas_call(
        kernel,
        grid=(1,),
        in_specs=[_full_spec(a.shape) for a in blocked]
                + [pl.BlockSpec(memory_space=pl.ANY),     # w_ff1 (manual DMA)
                   pl.BlockSpec(memory_space=pl.ANY)],    # w_ff2p (manual DMA)
        out_specs=pl.BlockSpec((M, n_pad), lambda i: (0, 0)),
        out_shape=jax.ShapeDtypeStruct((M, n_pad), jnp.float32),
        scratch_shapes=[
            pltpu.VMEM((M, D), jnp.float32),                      # head concat
            pltpu.VMEM((layers, D, dff), jnp.bfloat16),           # FFN1 weights
            pltpu.VMEM((layers, chunk, packed_n), jnp.bfloat16),  # FFN2 packed
            pltpu.SemaphoreType.DMA((2, layers)),
        ],
        compiler_params=pltpu.CompilerParams(
            dimension_semantics=("arbitrary",)),
    )(*blocked, prep["w_ff1"], prep["w_ff2p"])

    out = out[:, :out_chans].reshape(S, B, out_chans)
    return out, lens // ks


def init_params(key, in_channels=12, width=32, heads=4, layers=2,
                out_chans=8, ks=3, dff=2048):
    """Deterministic synthetic parameter init (shapes mirror the PyTorch module)."""
    def nrm(k, shape, scale=0.02):
        return scale * jax.random.normal(k, shape, dtype=jnp.float32)

    keys = list(jax.random.split(key, 4 + 8 * layers))
    it = iter(keys)
    params = {
        "ks": ks, "width": width, "heads": heads, "out_chans": out_chans,
        "conv_w": nrm(next(it), (width, in_channels, ks)),   # PyTorch Conv1d layout
        "conv_b": nrm(next(it), (width,)),
        "w_out": nrm(next(it), (width, out_chans)),
        "b_out": nrm(next(it), (out_chans,)),
        "layers": [],
    }
    for _ in range(layers):
        lp = {
            "w_qkv": nrm(next(it), (width, 3 * width)),
            "b_qkv": nrm(next(it), (3 * width,)),
            "w_o": nrm(next(it), (width, width)),
            "b_o": nrm(next(it), (width,)),
            "ln1_g": jnp.ones((width,), jnp.float32),
            "ln1_b": jnp.zeros((width,), jnp.float32),
            "w_ff1": nrm(next(it), (width, dff)),
            "b_ff1": nrm(next(it), (dff,)),
            "w_ff2": nrm(next(it), (dff, width)),
            "b_ff2": nrm(next(it), (width,)),
            "ln2_g": jnp.ones((width,), jnp.float32),
            "ln2_b": jnp.zeros((width,), jnp.float32),
        }
        params["layers"].append(lp)
    return params


def _reference_forward(params, x, lens):
    """Pure-JAX mirror of the PyTorch forward (fp32) for a tolerance check."""
    ks = params["ks"]; D = params["width"]; heads = params["heads"]
    Dh = D // heads
    B, T, C = x.shape
    S = (T - ks) // ks + 1

    w = params["conv_w"]                                     # (D, C, ks)
    patches = x[:, :S * ks, :].reshape(B, S, ks, C)
    conv = jnp.einsum('bskc,dck->bsd', patches, w) + params["conv_b"]
    h = conv.transpose(1, 0, 2)                              # (S, B, D)

    def layer_norm(z, g, b):
        mu = z.mean(-1, keepdims=True)
        var = ((z - mu) ** 2).mean(-1, keepdims=True)
        return (z - mu) / jnp.sqrt(var + 1e-5) * g + b

    scale = 1.0 / math.sqrt(Dh)
    for lp in params["layers"]:
        qkv = h @ lp["w_qkv"] + lp["b_qkv"]
        q = qkv[..., :D].reshape(S, B, heads, Dh)
        k = qkv[..., D:2 * D].reshape(S, B, heads, Dh)
        v = qkv[..., 2 * D:].reshape(S, B, heads, Dh)
        s = jnp.einsum('sbhd,schd->shbc', q, k) * scale      # batch_first on (S,B,D)
        p = jax.nn.softmax(s, axis=-1)
        o = jnp.einsum('shbc,schd->sbhd', p, v).reshape(S, B, D)
        attn = o @ lp["w_o"] + lp["b_o"]
        h = layer_norm(h + attn, lp["ln1_g"], lp["ln1_b"])
        ffn = (jnp.maximum(h @ lp["w_ff1"] + lp["b_ff1"], 0.0)
               @ lp["w_ff2"] + lp["b_ff2"])
        h = layer_norm(h + ffn, lp["ln2_g"], lp["ln2_b"])
    out = h @ params["w_out"] + params["b_out"]
    return out, lens // ks


if __name__ == "__main__":
    key = jax.random.PRNGKey(0)
    k_param, k_x = jax.random.split(key)

    # Small shapes consistent with the module: batch=2, time=15, in_channels=12,
    # width=32, heads=4, layers=2, out_chans=8, ks=3  ->  S = 15 // 3 = 5.
    B, T, C_in, ks = 2, 15, 12, 3
    params = init_params(k_param, in_channels=C_in, width=32, heads=4,
                         layers=2, out_chans=8, ks=ks, dff=2048)
    prep, cfg = prepare_params(params)

    x = jax.random.normal(k_x, (B, T, C_in), dtype=jnp.float32)
    lens = jnp.array([15, 12], dtype=jnp.int32)

    out, lens_out = speech_xformer_forward(prep, x, lens, **cfg)
    out = jax.block_until_ready(out)
    lens_out = jax.block_until_ready(lens_out)

    ref, ref_lens = _reference_forward(params, x, lens)

    assert out.shape == (5, B, 8), out.shape
    assert lens_out.shape == (B,), lens_out.shape
    assert bool(jnp.all(jnp.isfinite(out)))
    assert bool(jnp.all(lens_out == ref_lens))
    # bf16 matmul weights + approx softmax reciprocal vs the fp32 reference.
    max_err = float(jnp.max(jnp.abs(out - ref)))
    assert max_err < 5e-2, max_err
    print("KERNEL_OK")
</pallas_src>

<mosaic_0001>
module attributes {stable_mosaic.version = 11 : i64} {
  func.func @_fused_forward_kernel(%arg0: i32, %arg1: memref<10x36xf32, #tpu.memory_space<vmem>>, %arg2: memref<36x32xf32, #tpu.memory_space<vmem>>, %arg3: memref<2x32x96xbf16, #tpu.memory_space<vmem>>, %arg4: memref<2x32x32xbf16, #tpu.memory_space<vmem>>, %arg5: memref<32x128xf32, #tpu.memory_space<vmem>>, %arg6: memref<16x128xf32, #tpu.memory_space<vmem>>, %arg7: memref<2x2048xf32, #tpu.memory_space<vmem>>, %arg8: memref<2x32x2048xbf16, #tpu.memory_space<any>>, %arg9: memref<2x512x128xbf16, #tpu.memory_space<any>>, %arg10: memref<10x128xf32, #tpu.memory_space<vmem>>, %arg11: memref<10x32xf32, #tpu.memory_space<vmem>>, %arg12: memref<2x32x2048xbf16, #tpu.memory_space<vmem>>, %arg13: memref<2x512x128xbf16, #tpu.memory_space<vmem>>, %arg14: memref<2x2x!tpu.dma_semaphore, #tpu.memory_space<semaphore_mem>>) attributes {dimension_semantics = [#tpu.dimension_semantics<arbitrary>], iteration_bounds = array<i64: 1>, scalar_prefetch = 0 : i64, scratch_operands = 4 : i64, tpu.core_type = #tpu.core_type<tc>, window_params = [{pipeline_mode = #tpu.pipeline_mode<synchronous>, transform_indices = @transform_0, window_bounds = array<i64: 10, 36>}, {pipeline_mode = #tpu.pipeline_mode<synchronous>, transform_indices = @transform_1, window_bounds = array<i64: 36, 32>}, {pipeline_mode = #tpu.pipeline_mode<synchronous>, transform_indices = @transform_2, window_bounds = array<i64: 2, 32, 96>}, {pipeline_mode = #tpu.pipeline_mode<synchronous>, transform_indices = @transform_3, window_bounds = array<i64: 2, 32, 32>}, {pipeline_mode = #tpu.pipeline_mode<synchronous>, transform_indices = @transform_4, window_bounds = array<i64: 32, 128>}, {pipeline_mode = #tpu.pipeline_mode<synchronous>, transform_indices = @transform_5, window_bounds = array<i64: 16, 128>}, {pipeline_mode = #tpu.pipeline_mode<synchronous>, transform_indices = @transform_6, window_bounds = array<i64: 2, 2048>}, {}, {}, {pipeline_mode = #tpu.pipeline_mode<synchronous>, transform_indices = @transform_9, window_bounds = array<i64: 10, 128>}]} {
    %c0_i32 = arith.constant 0 : i32
    %c0_i32_0 = arith.constant 0 : i32
    %c0_i32_1 = arith.constant 0 : i32
    %c0_i32_2 = arith.constant 0 : i32
    %c0_i32_3 = arith.constant 0 : i32
    %c0_i32_4 = arith.constant 0 : i32
    %0 = tpu.memref_slice %arg8[%c0_i32, %c0_i32_3, %c0_i32_4] : memref<2x32x2048xbf16, #tpu.memory_space<any>> -> memref<1x32x2048xbf16, #tpu.memory_space<any>>
    %1 = tpu.memref_squeeze %0 : memref<1x32x2048xbf16, #tpu.memory_space<any>> -> memref<32x2048xbf16, #tpu.memory_space<any>>
    %c0_i32_5 = arith.constant 0 : i32
    %c0_i32_6 = arith.constant 0 : i32
    %2 = tpu.memref_slice %arg12[%c0_i32_0, %c0_i32_5, %c0_i32_6] : memref<2x32x2048xbf16, #tpu.memory_space<vmem>> -> memref<1x32x2048xbf16, #tpu.memory_space<vmem>>
    %3 = tpu.memref_squeeze %2 : memref<1x32x2048xbf16, #tpu.memory_space<vmem>> -> memref<32x2048xbf16, #tpu.memory_space<vmem>>
    %4 = tpu.memref_slice %arg14[%c0_i32_1, %c0_i32_2] : memref<2x2x!tpu.dma_semaphore, #tpu.memory_space<semaphore_mem>> -> memref<1x1x!tpu.dma_semaphore, #tpu.memory_space<semaphore_mem>>
    %5 = tpu.memref_squeeze %4 : memref<1x1x!tpu.dma_semaphore, #tpu.memory_space<semaphore_mem>> -> memref<!tpu.dma_semaphore, #tpu.memory_space<semaphore_mem>>
    tpu.enqueue_dma source(%1 : memref<32x2048xbf16, #tpu.memory_space<any>>) target(%3 : memref<32x2048xbf16, #tpu.memory_space<vmem>>) target_semaphore(%5 : memref<!tpu.dma_semaphore, #tpu.memory_space<semaphore_mem>>)
    %c0_i32_7 = arith.constant 0 : i32
    %c0_i32_8 = arith.constant 0 : i32
    %c1_i32 = arith.constant 1 : i32
    %c0_i32_9 = arith.constant 0 : i32
    %c0_i32_10 = arith.constant 0 : i32
    %c0_i32_11 = arith.constant 0 : i32
    %6 = tpu.memref_slice %arg9[%c0_i32_7, %c0_i32_10, %c0_i32_11] : memref<2x512x128xbf16, #tpu.memory_space<any>> -> memref<1x512x128xbf16, #tpu.memory_space<any>>
    %7 = tpu.memref_squeeze %6 : memref<1x512x128xbf16, #tpu.memory_space<any>> -> memref<512x128xbf16, #tpu.memory_space<any>>
    %c0_i32_12 = arith.constant 0 : i32
    %c0_i32_13 = arith.constant 0 : i32
    %8 = tpu.memref_slice %arg13[%c0_i32_8, %c0_i32_12, %c0_i32_13] : memref<2x512x128xbf16, #tpu.memory_space<vmem>> -> memref<1x512x128xbf16, #tpu.memory_space<vmem>>
    %9 = tpu.memref_squeeze %8 : memref<1x512x128xbf16, #tpu.memory_space<vmem>> -> memref<512x128xbf16, #tpu.memory_space<vmem>>
    %10 = tpu.memref_slice %arg14[%c1_i32, %c0_i32_9] : memref<2x2x!tpu.dma_semaphore, #tpu.memory_space<semaphore_mem>> -> memref<1x1x!tpu.dma_semaphore, #tpu.memory_space<semaphore_mem>>
    %11 = tpu.memref_squeeze %10 : memref<1x1x!tpu.dma_semaphore, #tpu.memory_space<semaphore_mem>> -> memref<!tpu.dma_semaphore, #tpu.memory_space<semaphore_mem>>
    tpu.enqueue_dma source(%7 : memref<512x128xbf16, #tpu.memory_space<any>>) target(%9 : memref<512x128xbf16, #tpu.memory_space<vmem>>) target_semaphore(%11 : memref<!tpu.dma_semaphore, #tpu.memory_space<semaphore_mem>>)
    %c1_i32_14 = arith.constant 1 : i32
    %c1_i32_15 = arith.constant 1 : i32
    %c0_i32_16 = arith.constant 0 : i32
    %c1_i32_17 = arith.constant 1 : i32
    %c0_i32_18 = arith.constant 0 : i32
    %c0_i32_19 = arith.constant 0 : i32
    %12 = tpu.memref_slice %arg8[%c1_i32_14, %c0_i32_18, %c0_i32_19] : memref<2x32x2048xbf16, #tpu.memory_space<any>> -> memref<1x32x2048xbf16, #tpu.memory_space<any>>
    %13 = tpu.memref_squeeze %12 : memref<1x32x2048xbf16, #tpu.memory_space<any>> -> memref<32x2048xbf16, #tpu.memory_space<any>>
    %c0_i32_20 = arith.constant 0 : i32
    %c0_i32_21 = arith.constant 0 : i32
    %14 = tpu.memref_slice %arg12[%c1_i32_15, %c0_i32_20, %c0_i32_21] : memref<2x32x2048xbf16, #tpu.memory_space<vmem>> -> memref<1x32x2048xbf16, #tpu.memory_space<vmem>>
    %15 = tpu.memref_squeeze %14 : memref<1x32x2048xbf16, #tpu.memory_space<vmem>> -> memref<32x2048xbf16, #tpu.memory_space<vmem>>
    %16 = tpu.memref_slice %arg14[%c0_i32_16, %c1_i32_17] : memref<2x2x!tpu.dma_semaphore, #tpu.memory_space<semaphore_mem>> -> memref<1x1x!tpu.dma_semaphore, #tpu.memory_space<semaphore_mem>>
    %17 = tpu.memref_squeeze %16 : memref<1x1x!tpu.dma_semaphore, #tpu.memory_space<semaphore_mem>> -> memref<!tpu.dma_semaphore, #tpu.memory_space<semaphore_mem>>
    tpu.enqueue_dma source(%13 : memref<32x2048xbf16, #tpu.memory_space<any>>) target(%15 : memref<32x2048xbf16, #tpu.memory_space<vmem>>) target_semaphore(%17 : memref<!tpu.dma_semaphore, #tpu.memory_space<semaphore_mem>>)
    %c1_i32_22 = arith.constant 1 : i32
    %c1_i32_23 = arith.constant 1 : i32
    %c1_i32_24 = arith.constant 1 : i32
    %c1_i32_25 = arith.constant 1 : i32
    %c0_i32_26 = arith.constant 0 : i32
    %c0_i32_27 = arith.constant 0 : i32
    %18 = tpu.memref_slice %arg9[%c1_i32_22, %c0_i32_26, %c0_i32_27] : memref<2x512x128xbf16, #tpu.memory_space<any>> -> memref<1x512x128xbf16, #tpu.memory_space<any>>
    %19 = tpu.memref_squeeze %18 : memref<1x512x128xbf16, #tpu.memory_space<any>> -> memref<512x128xbf16, #tpu.memory_space<any>>
    %c0_i32_28 = arith.constant 0 : i32
    %c0_i32_29 = arith.constant 0 : i32
    %20 = tpu.memref_slice %arg13[%c1_i32_23, %c0_i32_28, %c0_i32_29] : memref<2x512x128xbf16, #tpu.memory_space<vmem>> -> memref<1x512x128xbf16, #tpu.memory_space<vmem>>
    %21 = tpu.memref_squeeze %20 : memref<1x512x128xbf16, #tpu.memory_space<vmem>> -> memref<512x128xbf16, #tpu.memory_space<vmem>>
    %22 = tpu.memref_slice %arg14[%c1_i32_24, %c1_i32_25] : memref<2x2x!tpu.dma_semaphore, #tpu.memory_space<semaphore_mem>> -> memref<1x1x!tpu.dma_semaphore, #tpu.memory_space<semaphore_mem>>
    %23 = tpu.memref_squeeze %22 : memref<1x1x!tpu.dma_semaphore, #tpu.memory_space<semaphore_mem>> -> memref<!tpu.dma_semaphore, #tpu.memory_space<semaphore_mem>>
    tpu.enqueue_dma source(%19 : memref<512x128xbf16, #tpu.memory_space<any>>) target(%21 : memref<512x128xbf16, #tpu.memory_space<vmem>>) target_semaphore(%23 : memref<!tpu.dma_semaphore, #tpu.memory_space<semaphore_mem>>)
    %c0 = arith.constant 0 : index
    %c0_30 = arith.constant 0 : index
    %24 = vector.load %arg6[%c0, %c0_30] : memref<16x128xf32, #tpu.memory_space<vmem>>, vector<16x128xf32>
    %c0_31 = arith.constant 0 : index
    %c0_32 = arith.constant 0 : index
    %25 = vector.load %arg7[%c0_31, %c0_32] : memref<2x2048xf32, #tpu.memory_space<vmem>>, vector<2x2048xf32>
    %26 = vector.extract_strided_slice %24 {offsets = [0, 0], sizes = [1, 32], strides = [1, 1]} : vector<16x128xf32> to vector<1x32xf32>
    %27 = vector.extract_strided_slice %24 {offsets = [1, 0], sizes = [1, 128], strides = [1, 1]} : vector<16x128xf32> to vector<1x128xf32>
    %28 = tpu.iota {dimensions = array<i32: 0>} : vector<10x10xi32>
    %29 = arith.sitofp %28 : vector<10x10xi32> to vector<10x10xf32>
    %30 = tpu.iota {dimensions = array<i32: 1>} : vector<10x10xi32>
    %31 = arith.sitofp %30 : vector<10x10xi32> to vector<10x10xf32>
    %cst = arith.constant 5.000000e-01 : f32
    %32 = vector.broadcast %cst : f32 to vector<10x10xf32>
    %33 = arith.addf %29, %32 : vector<10x10xf32>
    %cst_33 = arith.constant 5.000000e-01 : f32
    %34 = vector.broadcast %cst_33 : f32 to vector<10x10xf32>
    %35 = arith.mulf %33, %34 : vector<10x10xf32>
    %36 = math.floor %35 : vector<10x10xf32>
    %cst_34 = arith.constant 5.000000e-01 : f32
    %37 = vector.broadcast %cst_34 : f32 to vector<10x10xf32>
    %38 = arith.addf %31, %37 : vector<10x10xf32>
    %cst_35 = arith.constant 5.000000e-01 : f32
    %39 = vector.broadcast %cst_35 : f32 to vector<10x10xf32>
    %40 = arith.mulf %38, %39 : vector<10x10xf32>
    %41 = math.floor %40 : vector<10x10xf32>
    %42 = arith.cmpf oeq, %36, %41 : vector<10x10xf32>
    %cst_36 = arith.constant 0.000000e+00 : f32
    %cst_37 = arith.constant -1.000000e+30 : f32
    %43 = vector.broadcast %cst_36 : f32 to vector<10x10xf32>
    %44 = vector.broadcast %cst_37 : f32 to vector<10x10xf32>
    %45 = arith.select %42, %43, %44 : vector<10x10xi1>, vector<10x10xf32>
    %c0_38 = arith.constant 0 : index
    %c0_39 = arith.constant 0 : index
    %46 = vector.load %arg1[%c0_38, %c0_39] : memref<10x36xf32, #tpu.memory_space<vmem>>, vector<10x36xf32>
    %c0_40 = arith.constant 0 : index
    %c0_41 = arith.constant 0 : index
    %47 = vector.load %arg2[%c0_40, %c0_41] : memref<36x32xf32, #tpu.memory_space<vmem>>, vector<36x32xf32>
    %cst_42 = arith.constant dense<0.000000e+00> : vector<10x32xf32>
    %48 = tpu.matmul %46, %47, %cst_42 {dimension_numbers = #tpu.dot_dimension_numbers<[1], [0], [0], [1], [0, 0, 1, 1], [], []>} : vector<10x36xf32>, vector<36x32xf32>, vector<10x32xf32> -> vector<10x32xf32>
    %49 = vector.broadcast %26 : vector<1x32xf32> to vector<10x32xf32>
    %50 = arith.addf %48, %49 : vector<10x32xf32>
    %51 = vector.extract_strided_slice %24 {offsets = [2, 0], sizes = [1, 96], strides = [1, 1]} : vector<16x128xf32> to vector<1x96xf32>
    %52 = vector.extract_strided_slice %24 {offsets = [3, 0], sizes = [1, 32], strides = [1, 1]} : vector<16x128xf32> to vector<1x32xf32>
    %53 = vector.extract_strided_slice %24 {offsets = [4, 0], sizes = [1, 32], strides = [1, 1]} : vector<16x128xf32> to vector<1x32xf32>
    %54 = vector.extract_strided_slice %24 {offsets = [5, 0], sizes = [1, 32], strides = [1, 1]} : vector<16x128xf32> to vector<1x32xf32>
    %55 = vector.extract_strided_slice %24 {offsets = [6, 0], sizes = [1, 32], strides = [1, 1]} : vector<16x128xf32> to vector<1x32xf32>
    %56 = vector.extract_strided_slice %24 {offsets = [7, 0], sizes = [1, 32], strides = [1, 1]} : vector<16x128xf32> to vector<1x32xf32>
    %57 = vector.extract_strided_slice %24 {offsets = [8, 0], sizes = [1, 32], strides = [1, 1]} : vector<16x128xf32> to vector<1x32xf32>
    %58 = arith.truncf %50 : vector<10x32xf32> to vector<10x32xbf16>
    %c0_43 = arith.constant 0 : index
    %c0_44 = arith.constant 0 : index
    %c0_45 = arith.constant 0 : index
    %59 = vector.load %arg3[%c0_43, %c0_44, %c0_45] : memref<2x32x96xbf16, #tpu.memory_space<vmem>>, vector<1x32x96xbf16>
    %60 = vector.shape_cast %59 : vector<1x32x96xbf16> to vector<32x96xbf16>
    %cst_46 = arith.constant dense<0.000000e+00> : vector<10x96xf32>
    %61 = tpu.matmul %58, %60, %cst_46 {dimension_numbers = #tpu.dot_dimension_numbers<[1], [0], [0], [1], [0, 0, 1, 1], [], []>} : vector<10x32xbf16>, vector<32x96xbf16>, vector<10x96xf32> -> vector<10x96xf32>
    %62 = vector.broadcast %51 : vector<1x96xf32> to vector<10x96xf32>
    %63 = arith.addf %61, %62 : vector<10x96xf32>
    %64 = vector.extract_strided_slice %63 {offsets = [0, 0], sizes = [10, 8], strides = [1, 1]} : vector<10x96xf32> to vector<10x8xf32>
    %65 = vector.extract_strided_slice %63 {offsets = [0, 32], sizes = [10, 8], strides = [1, 1]} : vector<10x96xf32> to vector<10x8xf32>
    %66 = vector.extract_strided_slice %63 {offsets = [0, 64], sizes = [10, 8], strides = [1, 1]} : vector<10x96xf32> to vector<10x8xf32>
    "tpu.trace_start"() <{level = 10 : i32, message = "md,nd->mn"}> : () -> ()
    %cst_47 = arith.constant dense<0.000000e+00> : vector<10x10xf32>
    %67 = tpu.matmul %64, %65, %cst_47 {dimension_numbers = #tpu.dot_dimension_numbers<[1], [1], [0], [0], [0, 0, 1, 0], [], []>} : vector<10x8xf32>, vector<10x8xf32>, vector<10x10xf32> -> vector<10x10xf32>
    "tpu.trace_stop"() : () -> ()
    %68 = arith.addf %67, %45 : vector<10x10xf32>
    %cst_48 = arith.constant dense<0xFF800000> : vector<10xf32>
    %69 = vector.multi_reduction <maximumf>, %68, %cst_48 [1] : vector<10x10xf32> to vector<10xf32>
    %70 = vector.shape_cast %69 : vector<10xf32> to vector<10x1xf32>
    %71 = vector.broadcast %70 : vector<10x1xf32> to vector<10x10xf32>
    %72 = arith.subf %68, %71 : vector<10x10xf32>
    %73 = math.exp %72 : vector<10x10xf32>
    %cst_49 = arith.constant dense<0.000000e+00> : vector<10xf32>
    %74 = vector.multi_reduction <add>, %73, %cst_49 [1] : vector<10x10xf32> to vector<10xf32>
    %75 = vector.shape_cast %74 : vector<10xf32> to vector<10x1xf32>
    %76 = tpu.reciprocal %75 {approx = true} : vector<10x1xf32> -> vector<10x1xf32>
    %77 = vector.broadcast %76 : vector<10x1xf32> to vector<10x10xf32>
    %78 = arith.mulf %73, %77 : vector<10x10xf32>
    %cst_50 = arith.constant dense<0.000000e+00> : vector<10x8xf32>
    %79 = tpu.matmul %78, %66, %cst_50 {dimension_numbers = #tpu.dot_dimension_numbers<[1], [0], [0], [1], [0, 0, 1, 1], [], []>} : vector<10x10xf32>, vector<10x8xf32>, vector<10x8xf32> -> vector<10x8xf32>
    %c0_51 = arith.constant 0 : index
    %c0_52 = arith.constant 0 : index
    %80 = vector.load %arg11[%c0_51, %c0_52] : memref<10x32xf32, #tpu.memory_space<vmem>>, vector<10x8xf32>
    tpu.vector_store %arg11[%c0_51, %c0_52], %79 {strides = array<i32>} : memref<10x32xf32, #tpu.memory_space<vmem>>, vector<10x8xf32>,
    %81 = vector.extract_strided_slice %63 {offsets = [0, 8], sizes = [10, 8], strides = [1, 1]} : vector<10x96xf32> to vector<10x8xf32>
    %82 = vector.extract_strided_slice %63 {offsets = [0, 40], sizes = [10, 8], strides = [1, 1]} : vector<10x96xf32> to vector<10x8xf32>
    %83 = vector.extract_strided_slice %63 {offsets = [0, 72], sizes = [10, 8], strides = [1, 1]} : vector<10x96xf32> to vector<10x8xf32>
    "tpu.trace_start"() <{level = 10 : i32, message = "md,nd->mn"}> : () -> ()
    %cst_53 = arith.constant dense<0.000000e+00> : vector<10x10xf32>
    %84 = tpu.matmul %81, %82, %cst_53 {dimension_numbers = #tpu.dot_dimension_numbers<[1], [1], [0], [0], [0, 0, 1, 0], [], []>} : vector<10x8xf32>, vector<10x8xf32>, vector<10x10xf32> -> vector<10x10xf32>
    "tpu.trace_stop"() : () -> ()
    %85 = arith.addf %84, %45 : vector<10x10xf32>
    %cst_54 = arith.constant dense<0xFF800000> : vector<10xf32>
    %86 = vector.multi_reduction <maximumf>, %85, %cst_54 [1] : vector<10x10xf32> to vector<10xf32>
    %87 = vector.shape_cast %86 : vector<10xf32> to vector<10x1xf32>
    %88 = vector.broadcast %87 : vector<10x1xf32> to vector<10x10xf32>
    %89 = arith.subf %85, %88 : vector<10x10xf32>
    %90 = math.exp %89 : vector<10x10xf32>
    %cst_55 = arith.constant dense<0.000000e+00> : vector<10xf32>
    %91 = vector.multi_reduction <add>, %90, %cst_55 [1] : vector<10x10xf32> to vector<10xf32>
    %92 = vector.shape_cast %91 : vector<10xf32> to vector<10x1xf32>
    %93 = tpu.reciprocal %92 {approx = true} : vector<10x1xf32> -> vector<10x1xf32>
    %94 = vector.broadcast %93 : vector<10x1xf32> to vector<10x10xf32>
    %95 = arith.mulf %90, %94 : vector<10x10xf32>
    %cst_56 = arith.constant dense<0.000000e+00> : vector<10x8xf32>
    %96 = tpu.matmul %95, %83, %cst_56 {dimension_numbers = #tpu.dot_dimension_numbers<[1], [0], [0], [1], [0, 0, 1, 1], [], []>} : vector<10x10xf32>, vector<10x8xf32>, vector<10x8xf32> -> vector<10x8xf32>
    %c0_57 = arith.constant 0 : index
    %c8 = arith.constant 8 : index
    %97 = vector.load %arg11[%c0_57, %c8] : memref<10x32xf32, #tpu.memory_space<vmem>>, vector<10x8xf32>
    tpu.vector_store %arg11[%c0_57, %c8], %96 {strides = array<i32>} : memref<10x32xf32, #tpu.memory_space<vmem>>, vector<10x8xf32>,
    %98 = vector.extract_strided_slice %63 {offsets = [0, 16], sizes = [10, 8], strides = [1, 1]} : vector<10x96xf32> to vector<10x8xf32>
    %99 = vector.extract_strided_slice %63 {offsets = [0, 48], sizes = [10, 8], strides = [1, 1]} : vector<10x96xf32> to vector<10x8xf32>
    %100 = vector.extract_strided_slice %63 {offsets = [0, 80], sizes = [10, 8], strides = [1, 1]} : vector<10x96xf32> to vector<10x8xf32>
    "tpu.trace_start"() <{level = 10 : i32, message = "md,nd->mn"}> : () -> ()
    %cst_58 = arith.constant dense<0.000000e+00> : vector<10x10xf32>
    %101 = tpu.matmul %98, %99, %cst_58 {dimension_numbers = #tpu.dot_dimension_numbers<[1], [1], [0], [0], [0, 0, 1, 0], [], []>} : vector<10x8xf32>, vector<10x8xf32>, vector<10x10xf32> -> vector<10x10xf32>
    "tpu.trace_stop"() : () -> ()
    %102 = arith.addf %101, %45 : vector<10x10xf32>
    %cst_59 = arith.constant dense<0xFF800000> : vector<10xf32>
    %103 = vector.multi_reduction <maximumf>, %102, %cst_59 [1] : vector<10x10xf32> to vector<10xf32>
    %104 = vector.shape_cast %103 : vector<10xf32> to vector<10x1xf32>
    %105 = vector.broadcast %104 : vector<10x1xf32> to vector<10x10xf32>
    %106 = arith.subf %102, %105 : vector<10x10xf32>
    %107 = math.exp %106 : vector<10x10xf32>
    %cst_60 = arith.constant dense<0.000000e+00> : vector<10xf32>
    %108 = vector.multi_reduction <add>, %107, %cst_60 [1] : vector<10x10xf32> to vector<10xf32>
    %109 = vector.shape_cast %108 : vector<10xf32> to vector<10x1xf32>
    %110 = tpu.reciprocal %109 {approx = true} : vector<10x1xf32> -> vector<10x1xf32>
    %111 = vector.broadcast %110 : vector<10x1xf32> to vector<10x10xf32>
    %112 = arith.mulf %107, %111 : vector<10x10xf32>
    %cst_61 = arith.constant dense<0.000000e+00> : vector<10x8xf32>
    %113 = tpu.matmul %112, %100, %cst_61 {dimension_numbers = #tpu.dot_dimension_numbers<[1], [0], [0], [1], [0, 0, 1, 1], [], []>} : vector<10x10xf32>, vector<10x8xf32>, vector<10x8xf32> -> vector<10x8xf32>
    %c0_62 = arith.constant 0 : index
    %c16 = arith.constant 16 : index
    %114 = vector.load %arg11[%c0_62, %c16] : memref<10x32xf32, #tpu.memory_space<vmem>>, vector<10x8xf32>
    tpu.vector_store %arg11[%c0_62, %c16], %113 {strides = array<i32>} : memref<10x32xf32, #tpu.memory_space<vmem>>, vector<10x8xf32>,
    %115 = vector.extract_strided_slice %63 {offsets = [0, 24], sizes = [10, 8], strides = [1, 1]} : vector<10x96xf32> to vector<10x8xf32>
    %116 = vector.extract_strided_slice %63 {offsets = [0, 56], sizes = [10, 8], strides = [1, 1]} : vector<10x96xf32> to vector<10x8xf32>
    %117 = vector.extract_strided_slice %63 {offsets = [0, 88], sizes = [10, 8], strides = [1, 1]} : vector<10x96xf32> to vector<10x8xf32>
    "tpu.trace_start"() <{level = 10 : i32, message = "md,nd->mn"}> : () -> ()
    %cst_63 = arith.constant dense<0.000000e+00> : vector<10x10xf32>
    %118 = tpu.matmul %115, %116, %cst_63 {dimension_numbers = #tpu.dot_dimension_numbers<[1], [1], [0], [0], [0, 0, 1, 0], [], []>} : vector<10x8xf32>, vector<10x8xf32>, vector<10x10xf32> -> vector<10x10xf32>
    "tpu.trace_stop"() : () -> ()
    %119 = arith.addf %118, %45 : vector<10x10xf32>
    %cst_64 = arith.constant dense<0xFF800000> : vector<10xf32>
    %120 = vector.multi_reduction <maximumf>, %119, %cst_64 [1] : vector<10x10xf32> to vector<10xf32>
    %121 = vector.shape_cast %120 : vector<10xf32> to vector<10x1xf32>
    %122 = vector.broadcast %121 : vector<10x1xf32> to vector<10x10xf32>
    %123 = arith.subf %119, %122 : vector<10x10xf32>
    %124 = math.exp %123 : vector<10x10xf32>
    %cst_65 = arith.constant dense<0.000000e+00> : vector<10xf32>
    %125 = vector.multi_reduction <add>, %124, %cst_65 [1] : vector<10x10xf32> to vector<10xf32>
    %126 = vector.shape_cast %125 : vector<10xf32> to vector<10x1xf32>
    %127 = tpu.reciprocal %126 {approx = true} : vector<10x1xf32> -> vector<10x1xf32>
    %128 = vector.broadcast %127 : vector<10x1xf32> to vector<10x10xf32>
    %129 = arith.mulf %124, %128 : vector<10x10xf32>
    %cst_66 = arith.constant dense<0.000000e+00> : vector<10x8xf32>
    %130 = tpu.matmul %129, %117, %cst_66 {dimension_numbers = #tpu.dot_dimension_numbers<[1], [0], [0], [1], [0, 0, 1, 1], [], []>} : vector<10x10xf32>, vector<10x8xf32>, vector<10x8xf32> -> vector<10x8xf32>
    %c0_67 = arith.constant 0 : index
    %c24 = arith.constant 24 : index
    %131 = vector.load %arg11[%c0_67, %c24] : memref<10x32xf32, #tpu.memory_space<vmem>>, vector<10x8xf32>
    tpu.vector_store %arg11[%c0_67, %c24], %130 {strides = array<i32>} : memref<10x32xf32, #tpu.memory_space<vmem>>, vector<10x8xf32>,
    %c0_68 = arith.constant 0 : index
    %c0_69 = arith.constant 0 : index
    %132 = vector.load %arg11[%c0_68, %c0_69] : memref<10x32xf32, #tpu.memory_space<vmem>>, vector<10x32xf32>
    %133 = arith.truncf %132 : vector<10x32xf32> to vector<10x32xbf16>
    %c0_70 = arith.constant 0 : index
    %c0_71 = arith.constant 0 : index
    %c0_72 = arith.constant 0 : index
    %134 = vector.load %arg4[%c0_70, %c0_71, %c0_72] : memref<2x32x32xbf16, #tpu.memory_space<vmem>>, vector<1x32x32xbf16>
    %135 = vector.shape_cast %134 : vector<1x32x32xbf16> to vector<32x32xbf16>
    %cst_73 = arith.constant dense<0.000000e+00> : vector<10x32xf32>
    %136 = tpu.matmul %133, %135, %cst_73 {dimension_numbers = #tpu.dot_dimension_numbers<[1], [0], [0], [1], [0, 0, 1, 1], [], []>} : vector<10x32xbf16>, vector<32x32xbf16>, vector<10x32xf32> -> vector<10x32xf32>
    %137 = vector.broadcast %52 : vector<1x32xf32> to vector<10x32xf32>
    %138 = arith.addf %136, %137 : vector<10x32xf32>
    %139 = arith.addf %50, %138 : vector<10x32xf32>
    %cst_74 = arith.constant dense<0.000000e+00> : vector<10xf32>
    %140 = vector.multi_reduction <add>, %139, %cst_74 [1] : vector<10x32xf32> to vector<10xf32>
    %141 = vector.shape_cast %140 : vector<10xf32> to vector<10x1xf32>
    %cst_75 = arith.constant 3.200000e+01 : f32
    %142 = vector.broadcast %cst_75 : f32 to vector<10x1xf32>
    %143 = arith.divf %141, %142 : vector<10x1xf32>
    %144 = vector.broadcast %143 : vector<10x1xf32> to vector<10x32xf32>
    %145 = arith.subf %139, %144 : vector<10x32xf32>
    %146 = arith.mulf %145, %145 : vector<10x32xf32>
    %cst_76 = arith.constant dense<0.000000e+00> : vector<10xf32>
    %147 = vector.multi_reduction <add>, %146, %cst_76 [1] : vector<10x32xf32> to vector<10xf32>
    %148 = vector.shape_cast %147 : vector<10xf32> to vector<10x1xf32>
    %cst_77 = arith.constant 3.200000e+01 : f32
    %149 = vector.broadcast %cst_77 : f32 to vector<10x1xf32>
    %150 = arith.divf %148, %149 : vector<10x1xf32>
    %151 = vector.broadcast %143 : vector<10x1xf32> to vector<10x32xf32>
    %152 = arith.subf %139, %151 : vector<10x32xf32>
    %cst_78 = arith.constant 9.99999974E-6 : f32
    %153 = vector.broadcast %cst_78 : f32 to vector<10x1xf32>
    %154 = arith.addf %150, %153 : vector<10x1xf32>
    %155 = math.rsqrt %154 : vector<10x1xf32>
    %156 = vector.broadcast %155 : vector<10x1xf32> to vector<10x32xf32>
    %157 = arith.mulf %152, %156 : vector<10x32xf32>
    %158 = vector.broadcast %53 : vector<1x32xf32> to vector<10x32xf32>
    %159 = arith.mulf %157, %158 : vector<10x32xf32>
    %160 = vector.broadcast %54 : vector<1x32xf32> to vector<10x32xf32>
    %161 = arith.addf %159, %160 : vector<10x32xf32>
    %c0_i32_79 = arith.constant 0 : i32
    %c0_i32_80 = arith.constant 0 : i32
    %c0_i32_81 = arith.constant 0 : i32
    %c0_i32_82 = arith.constant 0 : i32
    %c0_i32_83 = arith.constant 0 : i32
    %c0_i32_84 = arith.constant 0 : i32
    %162 = tpu.memref_slice %arg8[%c0_i32_79, %c0_i32_83, %c0_i32_84] : memref<2x32x2048xbf16, #tpu.memory_space<any>> -> memref<1x32x2048xbf16, #tpu.memory_space<any>>
    %163 = tpu.memref_squeeze %162 : memref<1x32x2048xbf16, #tpu.memory_space<any>> -> memref<32x2048xbf16, #tpu.memory_space<any>>
    %c0_i32_85 = arith.constant 0 : i32
    %c0_i32_86 = arith.constant 0 : i32
    %164 = tpu.memref_slice %arg12[%c0_i32_80, %c0_i32_85, %c0_i32_86] : memref<2x32x2048xbf16, #tpu.memory_space<vmem>> -> memref<1x32x2048xbf16, #tpu.memory_space<vmem>>
    %165 = tpu.memref_squeeze %164 : memref<1x32x2048xbf16, #tpu.memory_space<vmem>> -> memref<32x2048xbf16, #tpu.memory_space<vmem>>
    %166 = tpu.memref_slice %arg14[%c0_i32_81, %c0_i32_82] : memref<2x2x!tpu.dma_semaphore, #tpu.memory_space<semaphore_mem>> -> memref<1x1x!tpu.dma_semaphore, #tpu.memory_space<semaphore_mem>>
    %167 = tpu.memref_squeeze %166 : memref<1x1x!tpu.dma_semaphore, #tpu.memory_space<semaphore_mem>> -> memref<!tpu.dma_semaphore, #tpu.memory_space<semaphore_mem>>
    tpu.wait_dma2 semaphore(%167 : memref<!tpu.dma_semaphore, #tpu.memory_space<semaphore_mem>>) src(%163 : memref<32x2048xbf16, #tpu.memory_space<any>>) dst(%165 : memref<32x2048xbf16, #tpu.memory_space<vmem>>)
    %c0_i32_87 = arith.constant 0 : i32
    %c0_i32_88 = arith.constant 0 : i32
    %c1_i32_89 = arith.constant 1 : i32
    %c0_i32_90 = arith.constant 0 : i32
    %c0_i32_91 = arith.constant 0 : i32
    %c0_i32_92 = arith.constant 0 : i32
    %168 = tpu.memref_slice %arg9[%c0_i32_87, %c0_i32_91, %c0_i32_92] : memref<2x512x128xbf16, #tpu.memory_space<any>> -> memref<1x512x128xbf16, #tpu.memory_space<any>>
    %169 = tpu.memref_squeeze %168 : memref<1x512x128xbf16, #tpu.memory_space<any>> -> memref<512x128xbf16, #tpu.memory_space<any>>
    %c0_i32_93 = arith.constant 0 : i32
    %c0_i32_94 = arith.constant 0 : i32
    %170 = tpu.memref_slice %arg13[%c0_i32_88, %c0_i32_93, %c0_i32_94] : memref<2x512x128xbf16, #tpu.memory_space<vmem>> -> memref<1x512x128xbf16, #tpu.memory_space<vmem>>
    %171 = tpu.memref_squeeze %170 : memref<1x512x128xbf16, #tpu.memory_space<vmem>> -> memref<512x128xbf16, #tpu.memory_space<vmem>>
    %172 = tpu.memref_slice %arg14[%c1_i32_89, %c0_i32_90] : memref<2x2x!tpu.dma_semaphore, #tpu.memory_space<semaphore_mem>> -> memref<1x1x!tpu.dma_semaphore, #tpu.memory_space<semaphore_mem>>
    %173 = tpu.memref_squeeze %172 : memref<1x1x!tpu.dma_semaphore, #tpu.memory_space<semaphore_mem>> -> memref<!tpu.dma_semaphore, #tpu.memory_space<semaphore_mem>>
    tpu.wait_dma2 semaphore(%173 : memref<!tpu.dma_semaphore, #tpu.memory_space<semaphore_mem>>) src(%169 : memref<512x128xbf16, #tpu.memory_space<any>>) dst(%171 : memref<512x128xbf16, #tpu.memory_space<vmem>>)
    %174 = arith.truncf %161 : vector<10x32xf32> to vector<10x32xbf16>
    %c0_95 = arith.constant 0 : index
    %c0_96 = arith.constant 0 : index
    %c0_97 = arith.constant 0 : index
    %175 = vector.load %arg12[%c0_95, %c0_96, %c0_97] : memref<2x32x2048xbf16, #tpu.memory_space<vmem>>, vector<1x32x2048xbf16>
    %176 = vector.shape_cast %175 : vector<1x32x2048xbf16> to vector<32x2048xbf16>
    %cst_98 = arith.constant dense<0.000000e+00> : vector<10x2048xf32>
    %177 = tpu.matmul %174, %176, %cst_98 {dimension_numbers = #tpu.dot_dimension_numbers<[1], [0], [0], [1], [0, 0, 1, 1], [], []>} : vector<10x32xbf16>, vector<32x2048xbf16>, vector<10x2048xf32> -> vector<10x2048xf32>
    %178 = vector.extract_strided_slice %25 {offsets = [0, 0], sizes = [1, 2048], strides = [1, 1]} : vector<2x2048xf32> to vector<1x2048xf32>
    %179 = vector.broadcast %178 : vector<1x2048xf32> to vector<10x2048xf32>
    %180 = arith.addf %177, %179 : vector<10x2048xf32>
    %cst_99 = arith.constant 0.000000e+00 : f32
    %181 = vector.broadcast %cst_99 : f32 to vector<10x2048xf32>
    %182 = arith.maximumf %180, %181 : vector<10x2048xf32>
    %183 = arith.truncf %182 : vector<10x2048xf32> to vector<10x2048xbf16>
    %c0_100 = arith.constant 0 : index
    %c0_101 = arith.constant 0 : index
    %c0_102 = arith.constant 0 : index
    %184 = vector.load %arg13[%c0_100, %c0_101, %c0_102] : memref<2x512x128xbf16, #tpu.memory_space<vmem>>, vector<1x512x128xbf16>
    %185 = vector.shape_cast %184 : vector<1x512x128xbf16> to vector<512x128xbf16>
    %cst_103 = arith.constant 0.000000e+00 : f32
    %186 = vector.broadcast %cst_103 : f32 to vector<10x32xf32>
    %187 = vector.extract_strided_slice %183 {offsets = [0, 0], sizes = [10, 512], strides = [1, 1]} : vector<10x2048xbf16> to vector<10x512xbf16>
    %cst_104 = arith.constant dense<0.000000e+00> : vector<10x128xf32>
    %188 = tpu.matmul %187, %185, %cst_104 {dimension_numbers = #tpu.dot_dimension_numbers<[1], [0], [0], [1], [0, 0, 1, 1], [], []>} : vector<10x512xbf16>, vector<512x128xbf16>, vector<10x128xf32> -> vector<10x128xf32>
    %189 = vector.extract_strided_slice %188 {offsets = [0, 0], sizes = [10, 32], strides = [1, 1]} : vector<10x128xf32> to vector<10x32xf32>
    %190 = arith.addf %186, %189 : vector<10x32xf32>
    %191 = vector.extract_strided_slice %183 {offsets = [0, 512], sizes = [10, 512], strides = [1, 1]} : vector<10x2048xbf16> to vector<10x512xbf16>
    %cst_105 = arith.constant dense<0.000000e+00> : vector<10x128xf32>
    %192 = tpu.matmul %191, %185, %cst_105 {dimension_numbers = #tpu.dot_dimension_numbers<[1], [0], [0], [1], [0, 0, 1, 1], [], []>} : vector<10x512xbf16>, vector<512x128xbf16>, vector<10x128xf32> -> vector<10x128xf32>
    %193 = vector.extract_strided_slice %192 {offsets = [0, 32], sizes = [10, 32], strides = [1, 1]} : vector<10x128xf32> to vector<10x32xf32>
    %194 = arith.addf %190, %193 : vector<10x32xf32>
    %195 = vector.extract_strided_slice %183 {offsets = [0, 1024], sizes = [10, 512], strides = [1, 1]} : vector<10x2048xbf16> to vector<10x512xbf16>
    %cst_106 = arith.constant dense<0.000000e+00> : vector<10x128xf32>
    %196 = tpu.matmul %195, %185, %cst_106 {dimension_numbers = #tpu.dot_dimension_numbers<[1], [0], [0], [1], [0, 0, 1, 1], [], []>} : vector<10x512xbf16>, vector<512x128xbf16>, vector<10x128xf32> -> vector<10x128xf32>
    %197 = vector.extract_strided_slice %196 {offsets = [0, 64], sizes = [10, 32], strides = [1, 1]} : vector<10x128xf32> to vector<10x32xf32>
    %198 = arith.addf %194, %197 : vector<10x32xf32>
    %199 = vector.extract_strided_slice %183 {offsets = [0, 1536], sizes = [10, 512], strides = [1, 1]} : vector<10x2048xbf16> to vector<10x512xbf16>
    %cst_107 = arith.constant dense<0.000000e+00> : vector<10x128xf32>
    %200 = tpu.matmul %199, %185, %cst_107 {dimension_numbers = #tpu.dot_dimension_numbers<[1], [0], [0], [1], [0, 0, 1, 1], [], []>} : vector<10x512xbf16>, vector<512x128xbf16>, vector<10x128xf32> -> vector<10x128xf32>
    %201 = vector.extract_strided_slice %200 {offsets = [0, 96], sizes = [10, 32], strides = [1, 1]} : vector<10x128xf32> to vector<10x32xf32>
    %202 = arith.addf %198, %201 : vector<10x32xf32>
    %203 = vector.broadcast %55 : vector<1x32xf32> to vector<10x32xf32>
    %204 = arith.addf %202, %203 : vector<10x32xf32>
    %205 = arith.addf %161, %204 : vector<10x32xf32>
    %cst_108 = arith.constant dense<0.000000e+00> : vector<10xf32>
    %206 = vector.multi_reduction <add>, %205, %cst_108 [1] : vector<10x32xf32> to vector<10xf32>
    %207 = vector.shape_cast %206 : vector<10xf32> to vector<10x1xf32>
    %cst_109 = arith.constant 3.200000e+01 : f32
    %208 = vector.broadcast %cst_109 : f32 to vector<10x1xf32>
    %209 = arith.divf %207, %208 : vector<10x1xf32>
    %210 = vector.broadcast %209 : vector<10x1xf32> to vector<10x32xf32>
    %211 = arith.subf %205, %210 : vector<10x32xf32>
    %212 = arith.mulf %211, %211 : vector<10x32xf32>
    %cst_110 = arith.constant dense<0.000000e+00> : vector<10xf32>
    %213 = vector.multi_reduction <add>, %212, %cst_110 [1] : vector<10x32xf32> to vector<10xf32>
    %214 = vector.shape_cast %213 : vector<10xf32> to vector<10x1xf32>
    %cst_111 = arith.constant 3.200000e+01 : f32
    %215 = vector.broadcast %cst_111 : f32 to vector<10x1xf32>
    %216 = arith.divf %214, %215 : vector<10x1xf32>
    %217 = vector.broadcast %209 : vector<10x1xf32> to vector<10x32xf32>
    %218 = arith.subf %205, %217 : vector<10x32xf32>
    %cst_112 = arith.constant 9.99999974E-6 : f32
    %219 = vector.broadcast %cst_112 : f32 to vector<10x1xf32>
    %220 = arith.addf %216, %219 : vector<10x1xf32>
    %221 = math.rsqrt %220 : vector<10x1xf32>
    %222 = vector.broadcast %221 : vector<10x1xf32> to vector<10x32xf32>
    %223 = arith.mulf %218, %222 : vector<10x32xf32>
    %224 = vector.broadcast %56 : vector<1x32xf32> to vector<10x32xf32>
    %225 = arith.mulf %223, %224 : vector<10x32xf32>
    %226 = vector.broadcast %57 : vector<1x32xf32> to vector<10x32xf32>
    %227 = arith.addf %225, %226 : vector<10x32xf32>
    %228 = vector.extract_strided_slice %24 {offsets = [9, 0], sizes = [1, 96], strides = [1, 1]} : vector<16x128xf32> to vector<1x96xf32>
    %229 = vector.extract_strided_slice %24 {offsets = [10, 0], sizes = [1, 32], strides = [1, 1]} : vector<16x128xf32> to vector<1x32xf32>
    %230 = vector.extract_strided_slice %24 {offsets = [11, 0], sizes = [1, 32], strides = [1, 1]} : vector<16x128xf32> to vector<1x32xf32>
    %231 = vector.extract_strided_slice %24 {offsets = [12, 0], sizes = [1, 32], strides = [1, 1]} : vector<16x128xf32> to vector<1x32xf32>
    %232 = vector.extract_strided_slice %24 {offsets = [13, 0], sizes = [1, 32], strides = [1, 1]} : vector<16x128xf32> to vector<1x32xf32>
    %233 = vector.extract_strided_slice %24 {offsets = [14, 0], sizes = [1, 32], strides = [1, 1]} : vector<16x128xf32> to vector<1x32xf32>
    %234 = vector.extract_strided_slice %24 {offsets = [15, 0], sizes = [1, 32], strides = [1, 1]} : vector<16x128xf32> to vector<1x32xf32>
    %235 = arith.truncf %227 : vector<10x32xf32> to vector<10x32xbf16>
    %c1 = arith.constant 1 : index
    %c0_113 = arith.constant 0 : index
    %c0_114 = arith.constant 0 : index
    %236 = vector.load %arg3[%c1, %c0_113, %c0_114] : memref<2x32x96xbf16, #tpu.memory_space<vmem>>, vector<1x32x96xbf16>
    %237 = vector.shape_cast %236 : vector<1x32x96xbf16> to vector<32x96xbf16>
    %cst_115 = arith.constant dense<0.000000e+00> : vector<10x96xf32>
    %238 = tpu.matmul %235, %237, %cst_115 {dimension_numbers = #tpu.dot_dimension_numbers<[1], [0], [0], [1], [0, 0, 1, 1], [], []>} : vector<10x32xbf16>, vector<32x96xbf16>, vector<10x96xf32> -> vector<10x96xf32>
    %239 = vector.broadcast %228 : vector<1x96xf32> to vector<10x96xf32>
    %240 = arith.addf %238, %239 : vector<10x96xf32>
    %241 = vector.extract_strided_slice %240 {offsets = [0, 0], sizes = [10, 8], strides = [1, 1]} : vector<10x96xf32> to vector<10x8xf32>
    %242 = vector.extract_strided_slice %240 {offsets = [0, 32], sizes = [10, 8], strides = [1, 1]} : vector<10x96xf32> to vector<10x8xf32>
    %243 = vector.extract_strided_slice %240 {offsets = [0, 64], sizes = [10, 8], strides = [1, 1]} : vector<10x96xf32> to vector<10x8xf32>
    "tpu.trace_start"() <{level = 10 : i32, message = "md,nd->mn"}> : () -> ()
    %cst_116 = arith.constant dense<0.000000e+00> : vector<10x10xf32>
    %244 = tpu.matmul %241, %242, %cst_116 {dimension_numbers = #tpu.dot_dimension_numbers<[1], [1], [0], [0], [0, 0, 1, 0], [], []>} : vector<10x8xf32>, vector<10x8xf32>, vector<10x10xf32> -> vector<10x10xf32>
    "tpu.trace_stop"() : () -> ()
    %245 = arith.addf %244, %45 : vector<10x10xf32>
    %cst_117 = arith.constant dense<0xFF800000> : vector<10xf32>
    %246 = vector.multi_reduction <maximumf>, %245, %cst_117 [1] : vector<10x10xf32> to vector<10xf32>
    %247 = vector.shape_cast %246 : vector<10xf32> to vector<10x1xf32>
    %248 = vector.broadcast %247 : vector<10x1xf32> to vector<10x10xf32>
    %249 = arith.subf %245, %248 : vector<10x10xf32>
    %250 = math.exp %249 : vector<10x10xf32>
    %cst_118 = arith.constant dense<0.000000e+00> : vector<10xf32>
    %251 = vector.multi_reduction <add>, %250, %cst_118 [1] : vector<10x10xf32> to vector<10xf32>
    %252 = vector.shape_cast %251 : vector<10xf32> to vector<10x1xf32>
    %253 = tpu.reciprocal %252 {approx = true} : vector<10x1xf32> -> vector<10x1xf32>
    %254 = vector.broadcast %253 : vector<10x1xf32> to vector<10x10xf32>
    %255 = arith.mulf %250, %254 : vector<10x10xf32>
    %cst_119 = arith.constant dense<0.000000e+00> : vector<10x8xf32>
    %256 = tpu.matmul %255, %243, %cst_119 {dimension_numbers = #tpu.dot_dimension_numbers<[1], [0], [0], [1], [0, 0, 1, 1], [], []>} : vector<10x10xf32>, vector<10x8xf32>, vector<10x8xf32> -> vector<10x8xf32>
    %c0_120 = arith.constant 0 : index
    %c0_121 = arith.constant 0 : index
    %257 = vector.load %arg11[%c0_120, %c0_121] : memref<10x32xf32, #tpu.memory_space<vmem>>, vector<10x8xf32>
    tpu.vector_store %arg11[%c0_120, %c0_121], %256 {strides = array<i32>} : memref<10x32xf32, #tpu.memory_space<vmem>>, vector<10x8xf32>,
    %258 = vector.extract_strided_slice %240 {offsets = [0, 8], sizes = [10, 8], strides = [1, 1]} : vector<10x96xf32> to vector<10x8xf32>
    %259 = vector.extract_strided_slice %240 {offsets = [0, 40], sizes = [10, 8], strides = [1, 1]} : vector<10x96xf32> to vector<10x8xf32>
    %260 = vector.extract_strided_slice %240 {offsets = [0, 72], sizes = [10, 8], strides = [1, 1]} : vector<10x96xf32> to vector<10x8xf32>
    "tpu.trace_start"() <{level = 10 : i32, message = "md,nd->mn"}> : () -> ()
    %cst_122 = arith.constant dense<0.000000e+00> : vector<10x10xf32>
    %261 = tpu.matmul %258, %259, %cst_122 {dimension_numbers = #tpu.dot_dimension_numbers<[1], [1], [0], [0], [0, 0, 1, 0], [], []>} : vector<10x8xf32>, vector<10x8xf32>, vector<10x10xf32> -> vector<10x10xf32>
    "tpu.trace_stop"() : () -> ()
    %262 = arith.addf %261, %45 : vector<10x10xf32>
    %cst_123 = arith.constant dense<0xFF800000> : vector<10xf32>
    %263 = vector.multi_reduction <maximumf>, %262, %cst_123 [1] : vector<10x10xf32> to vector<10xf32>
    %264 = vector.shape_cast %263 : vector<10xf32> to vector<10x1xf32>
    %265 = vector.broadcast %264 : vector<10x1xf32> to vector<10x10xf32>
    %266 = arith.subf %262, %265 : vector<10x10xf32>
    %267 = math.exp %266 : vector<10x10xf32>
    %cst_124 = arith.constant dense<0.000000e+00> : vector<10xf32>
    %268 = vector.multi_reduction <add>, %267, %cst_124 [1] : vector<10x10xf32> to vector<10xf32>
    %269 = vector.shape_cast %268 : vector<10xf32> to vector<10x1xf32>
    %270 = tpu.reciprocal %269 {approx = true} : vector<10x1xf32> -> vector<10x1xf32>
    %271 = vector.broadcast %270 : vector<10x1xf32> to vector<10x10xf32>
    %272 = arith.mulf %267, %271 : vector<10x10xf32>
    %cst_125 = arith.constant dense<0.000000e+00> : vector<10x8xf32>
    %273 = tpu.matmul %272, %260, %cst_125 {dimension_numbers = #tpu.dot_dimension_numbers<[1], [0], [0], [1], [0, 0, 1, 1], [], []>} : vector<10x10xf32>, vector<10x8xf32>, vector<10x8xf32> -> vector<10x8xf32>
    %c0_126 = arith.constant 0 : index
    %c8_127 = arith.constant 8 : index
    %274 = vector.load %arg11[%c0_126, %c8_127] : memref<10x32xf32, #tpu.memory_space<vmem>>, vector<10x8xf32>
    tpu.vector_store %arg11[%c0_126, %c8_127], %273 {strides = array<i32>} : memref<10x32xf32, #tpu.memory_space<vmem>>, vector<10x8xf32>,
    %275 = vector.extract_strided_slice %240 {offsets = [0, 16], sizes = [10, 8], strides = [1, 1]} : vector<10x96xf32> to vector<10x8xf32>
    %276 = vector.extract_strided_slice %240 {offsets = [0, 48], sizes = [10, 8], strides = [1, 1]} : vector<10x96xf32> to vector<10x8xf32>
    %277 = vector.extract_strided_slice %240 {offsets = [0, 80], sizes = [10, 8], strides = [1, 1]} : vector<10x96xf32> to vector<10x8xf32>
    "tpu.trace_start"() <{level = 10 : i32, message = "md,nd->mn"}> : () -> ()
    %cst_128 = arith.constant dense<0.000000e+00> : vector<10x10xf32>
    %278 = tpu.matmul %275, %276, %cst_128 {dimension_numbers = #tpu.dot_dimension_numbers<[1], [1], [0], [0], [0, 0, 1, 0], [], []>} : vector<10x8xf32>, vector<10x8xf32>, vector<10x10xf32> -> vector<10x10xf32>
    "tpu.trace_stop"() : () -> ()
    %279 = arith.addf %278, %45 : vector<10x10xf32>
    %cst_129 = arith.constant dense<0xFF800000> : vector<10xf32>
    %280 = vector.multi_reduction <maximumf>, %279, %cst_129 [1] : vector<10x10xf32> to vector<10xf32>
    %281 = vector.shape_cast %280 : vector<10xf32> to vector<10x1xf32>
    %282 = vector.broadcast %281 : vector<10x1xf32> to vector<10x10xf32>
    %283 = arith.subf %279, %282 : vector<10x10xf32>
    %284 = math.exp %283 : vector<10x10xf32>
    %cst_130 = arith.constant dense<0.000000e+00> : vector<10xf32>
    %285 = vector.multi_reduction <add>, %284, %cst_130 [1] : vector<10x10xf32> to vector<10xf32>
    %286 = vector.shape_cast %285 : vector<10xf32> to vector<10x1xf32>
    %287 = tpu.reciprocal %286 {approx = true} : vector<10x1xf32> -> vector<10x1xf32>
    %288 = vector.broadcast %287 : vector<10x1xf32> to vector<10x10xf32>
    %289 = arith.mulf %284, %288 : vector<10x10xf32>
    %cst_131 = arith.constant dense<0.000000e+00> : vector<10x8xf32>
    %290 = tpu.matmul %289, %277, %cst_131 {dimension_numbers = #tpu.dot_dimension_numbers<[1], [0], [0], [1], [0, 0, 1, 1], [], []>} : vector<10x10xf32>, vector<10x8xf32>, vector<10x8xf32> -> vector<10x8xf32>
    %c0_132 = arith.constant 0 : index
    %c16_133 = arith.constant 16 : index
    %291 = vector.load %arg11[%c0_132, %c16_133] : memref<10x32xf32, #tpu.memory_space<vmem>>, vector<10x8xf32>
    tpu.vector_store %arg11[%c0_132, %c16_133], %290 {strides = array<i32>} : memref<10x32xf32, #tpu.memory_space<vmem>>, vector<10x8xf32>,
    %292 = vector.extract_strided_slice %240 {offsets = [0, 24], sizes = [10, 8], strides = [1, 1]} : vector<10x96xf32> to vector<10x8xf32>
    %293 = vector.extract_strided_slice %240 {offsets = [0, 56], sizes = [10, 8], strides = [1, 1]} : vector<10x96xf32> to vector<10x8xf32>
    %294 = vector.extract_strided_slice %240 {offsets = [0, 88], sizes = [10, 8], strides = [1, 1]} : vector<10x96xf32> to vector<10x8xf32>
    "tpu.trace_start"() <{level = 10 : i32, message = "md,nd->mn"}> : () -> ()
    %cst_134 = arith.constant dense<0.000000e+00> : vector<10x10xf32>
    %295 = tpu.matmul %292, %293, %cst_134 {dimension_numbers = #tpu.dot_dimension_numbers<[1], [1], [0], [0], [0, 0, 1, 0], [], []>} : vector<10x8xf32>, vector<10x8xf32>, vector<10x10xf32> -> vector<10x10xf32>
    "tpu.trace_stop"() : () -> ()
    %296 = arith.addf %295, %45 : vector<10x10xf32>
    %cst_135 = arith.constant dense<0xFF800000> : vector<10xf32>
    %297 = vector.multi_reduction <maximumf>, %296, %cst_135 [1] : vector<10x10xf32> to vector<10xf32>
    %298 = vector.shape_cast %297 : vector<10xf32> to vector<10x1xf32>
    %299 = vector.broadcast %298 : vector<10x1xf32> to vector<10x10xf32>
    %300 = arith.subf %296, %299 : vector<10x10xf32>
    %301 = math.exp %300 : vector<10x10xf32>
    %cst_136 = arith.constant dense<0.000000e+00> : vector<10xf32>
    %302 = vector.multi_reduction <add>, %301, %cst_136 [1] : vector<10x10xf32> to vector<10xf32>
    %303 = vector.shape_cast %302 : vector<10xf32> to vector<10x1xf32>
    %304 = tpu.reciprocal %303 {approx = true} : vector<10x1xf32> -> vector<10x1xf32>
    %305 = vector.broadcast %304 : vector<10x1xf32> to vector<10x10xf32>
    %306 = arith.mulf %301, %305 : vector<10x10xf32>
    %cst_137 = arith.constant dense<0.000000e+00> : vector<10x8xf32>
    %307 = tpu.matmul %306, %294, %cst_137 {dimension_numbers = #tpu.dot_dimension_numbers<[1], [0], [0], [1], [0, 0, 1, 1], [], []>} : vector<10x10xf32>, vector<10x8xf32>, vector<10x8xf32> -> vector<10x8xf32>
    %c0_138 = arith.constant 0 : index
    %c24_139 = arith.constant 24 : index
    %308 = vector.load %arg11[%c0_138, %c24_139] : memref<10x32xf32, #tpu.memory_space<vmem>>, vector<10x8xf32>
    tpu.vector_store %arg11[%c0_138, %c24_139], %307 {strides = array<i32>} : memref<10x32xf32, #tpu.memory_space<vmem>>, vector<10x8xf32>,
    %c0_140 = arith.constant 0 : index
    %c0_141 = arith.constant 0 : index
    %309 = vector.load %arg11[%c0_140, %c0_141] : memref<10x32xf32, #tpu.memory_space<vmem>>, vector<10x32xf32>
    %310 = arith.truncf %309 : vector<10x32xf32> to vector<10x32xbf16>
    %c1_142 = arith.constant 1 : index
    %c0_143 = arith.constant 0 : index
    %c0_144 = arith.constant 0 : index
    %311 = vector.load %arg4[%c1_142, %c0_143, %c0_144] : memref<2x32x32xbf16, #tpu.memory_space<vmem>>, vector<1x32x32xbf16>
    %312 = vector.shape_cast %311 : vector<1x32x32xbf16> to vector<32x32xbf16>
    %cst_145 = arith.constant dense<0.000000e+00> : vector<10x32xf32>
    %313 = tpu.matmul %310, %312, %cst_145 {dimension_numbers = #tpu.dot_dimension_numbers<[1], [0], [0], [1], [0, 0, 1, 1], [], []>} : vector<10x32xbf16>, vector<32x32xbf16>, vector<10x32xf32> -> vector<10x32xf32>
    %314 = vector.broadcast %229 : vector<1x32xf32> to vector<10x32xf32>
    %315 = arith.addf %313, %314 : vector<10x32xf32>
    %316 = arith.addf %227, %315 : vector<10x32xf32>
    %cst_146 = arith.constant dense<0.000000e+00> : vector<10xf32>
    %317 = vector.multi_reduction <add>, %316, %cst_146 [1] : vector<10x32xf32> to vector<10xf32>
    %318 = vector.shape_cast %317 : vector<10xf32> to vector<10x1xf32>
    %cst_147 = arith.constant 3.200000e+01 : f32
    %319 = vector.broadcast %cst_147 : f32 to vector<10x1xf32>
    %320 = arith.divf %318, %319 : vector<10x1xf32>
    %321 = vector.broadcast %320 : vector<10x1xf32> to vector<10x32xf32>
    %322 = arith.subf %316, %321 : vector<10x32xf32>
    %323 = arith.mulf %322, %322 : vector<10x32xf32>
    %cst_148 = arith.constant dense<0.000000e+00> : vector<10xf32>
    %324 = vector.multi_reduction <add>, %323, %cst_148 [1] : vector<10x32xf32> to vector<10xf32>
    %325 = vector.shape_cast %324 : vector<10xf32> to vector<10x1xf32>
    %cst_149 = arith.constant 3.200000e+01 : f32
    %326 = vector.broadcast %cst_149 : f32 to vector<10x1xf32>
    %327 = arith.divf %325, %326 : vector<10x1xf32>
    %328 = vector.broadcast %320 : vector<10x1xf32> to vector<10x32xf32>
    %329 = arith.subf %316, %328 : vector<10x32xf32>
    %cst_150 = arith.constant 9.99999974E-6 : f32
    %330 = vector.broadcast %cst_150 : f32 to vector<10x1xf32>
    %331 = arith.addf %327, %330 : vector<10x1xf32>
    %332 = math.rsqrt %331 : vector<10x1xf32>
    %333 = vector.broadcast %332 : vector<10x1xf32> to vector<10x32xf32>
    %334 = arith.mulf %329, %333 : vector<10x32xf32>
    %335 = vector.broadcast %230 : vector<1x32xf32> to vector<10x32xf32>
    %336 = arith.mulf %334, %335 : vector<10x32xf32>
    %337 = vector.broadcast %231 : vector<1x32xf32> to vector<10x32xf32>
    %338 = arith.addf %336, %337 : vector<10x32xf32>
    %c1_i32_151 = arith.constant 1 : i32
    %c1_i32_152 = arith.constant 1 : i32
    %c0_i32_153 = arith.constant 0 : i32
    %c1_i32_154 = arith.constant 1 : i32
    %c0_i32_155 = arith.constant 0 : i32
    %c0_i32_156 = arith.constant 0 : i32
    %339 = tpu.memref_slice %arg8[%c1_i32_151, %c0_i32_155, %c0_i32_156] : memref<2x32x2048xbf16, #tpu.memory_space<any>> -> memref<1x32x2048xbf16, #tpu.memory_space<any>>
    %340 = tpu.memref_squeeze %339 : memref<1x32x2048xbf16, #tpu.memory_space<any>> -> memref<32x2048xbf16, #tpu.memory_space<any>>
    %c0_i32_157 = arith.constant 0 : i32
    %c0_i32_158 = arith.constant 0 : i32
    %341 = tpu.memref_slice %arg12[%c1_i32_152, %c0_i32_157, %c0_i32_158] : memref<2x32x2048xbf16, #tpu.memory_space<vmem>> -> memref<1x32x2048xbf16, #tpu.memory_space<vmem>>
    %342 = tpu.memref_squeeze %341 : memref<1x32x2048xbf16, #tpu.memory_space<vmem>> -> memref<32x2048xbf16, #tpu.memory_space<vmem>>
    %343 = tpu.memref_slice %arg14[%c0_i32_153, %c1_i32_154] : memref<2x2x!tpu.dma_semaphore, #tpu.memory_space<semaphore_mem>> -> memref<1x1x!tpu.dma_semaphore, #tpu.memory_space<semaphore_mem>>
    %344 = tpu.memref_squeeze %343 : memref<1x1x!tpu.dma_semaphore, #tpu.memory_space<semaphore_mem>> -> memref<!tpu.dma_semaphore, #tpu.memory_space<semaphore_mem>>
    tpu.wait_dma2 semaphore(%344 : memref<!tpu.dma_semaphore, #tpu.memory_space<semaphore_mem>>) src(%340 : memref<32x2048xbf16, #tpu.memory_space<any>>) dst(%342 : memref<32x2048xbf16, #tpu.memory_space<vmem>>)
    %c1_i32_159 = arith.constant 1 : i32
    %c1_i32_160 = arith.constant 1 : i32
    %c1_i32_161 = arith.constant 1 : i32
    %c1_i32_162 = arith.constant 1 : i32
    %c0_i32_163 = arith.constant 0 : i32
    %c0_i32_164 = arith.constant 0 : i32
    %345 = tpu.memref_slice %arg9[%c1_i32_159, %c0_i32_163, %c0_i32_164] : memref<2x512x128xbf16, #tpu.memory_space<any>> -> memref<1x512x128xbf16, #tpu.memory_space<any>>
    %346 = tpu.memref_squeeze %345 : memref<1x512x128xbf16, #tpu.memory_space<any>> -> memref<512x128xbf16, #tpu.memory_space<any>>
    %c0_i32_165 = arith.constant 0 : i32
    %c0_i32_166 = arith.constant 0 : i32
    %347 = tpu.memref_slice %arg13[%c1_i32_160, %c0_i32_165, %c0_i32_166] : memref<2x512x128xbf16, #tpu.memory_space<vmem>> -> memref<1x512x128xbf16, #tpu.memory_space<vmem>>
    %348 = tpu.memref_squeeze %347 : memref<1x512x128xbf16, #tpu.memory_space<vmem>> -> memref<512x128xbf16, #tpu.memory_space<vmem>>
    %349 = tpu.memref_slice %arg14[%c1_i32_161, %c1_i32_162] : memref<2x2x!tpu.dma_semaphore, #tpu.memory_space<semaphore_mem>> -> memref<1x1x!tpu.dma_semaphore, #tpu.memory_space<semaphore_mem>>
    %350 = tpu.memref_squeeze %349 : memref<1x1x!tpu.dma_semaphore, #tpu.memory_space<semaphore_mem>> -> memref<!tpu.dma_semaphore, #tpu.memory_space<semaphore_mem>>
    tpu.wait_dma2 semaphore(%350 : memref<!tpu.dma_semaphore, #tpu.memory_space<semaphore_mem>>) src(%346 : memref<512x128xbf16, #tpu.memory_space<any>>) dst(%348 : memref<512x128xbf16, #tpu.memory_space<vmem>>)
    %351 = arith.truncf %338 : vector<10x32xf32> to vector<10x32xbf16>
    %c1_167 = arith.constant 1 : index
    %c0_168 = arith.constant 0 : index
    %c0_169 = arith.constant 0 : index
    %352 = vector.load %arg12[%c1_167, %c0_168, %c0_169] : memref<2x32x2048xbf16, #tpu.memory_space<vmem>>, vector<1x32x2048xbf16>
    %353 = vector.shape_cast %352 : vector<1x32x2048xbf16> to vector<32x2048xbf16>
    %cst_170 = arith.constant dense<0.000000e+00> : vector<10x2048xf32>
    %354 = tpu.matmul %351, %353, %cst_170 {dimension_numbers = #tpu.dot_dimension_numbers<[1], [0], [0], [1], [0, 0, 1, 1], [], []>} : vector<10x32xbf16>, vector<32x2048xbf16>, vector<10x2048xf32> -> vector<10x2048xf32>
    %355 = vector.extract_strided_slice %25 {offsets = [1, 0], sizes = [1, 2048], strides = [1, 1]} : vector<2x2048xf32> to vector<1x2048xf32>
    %356 = vector.broadcast %355 : vector<1x2048xf32> to vector<10x2048xf32>
    %357 = arith.addf %354, %356 : vector<10x2048xf32>
    %cst_171 = arith.constant 0.000000e+00 : f32
    %358 = vector.broadcast %cst_171 : f32 to vector<10x2048xf32>
    %359 = arith.maximumf %357, %358 : vector<10x2048xf32>
    %360 = arith.truncf %359 : vector<10x2048xf32> to vector<10x2048xbf16>
    %c1_172 = arith.constant 1 : index
    %c0_173 = arith.constant 0 : index
    %c0_174 = arith.constant 0 : index
    %361 = vector.load %arg13[%c1_172, %c0_173, %c0_174] : memref<2x512x128xbf16, #tpu.memory_space<vmem>>, vector<1x512x128xbf16>
    %362 = vector.shape_cast %361 : vector<1x512x128xbf16> to vector<512x128xbf16>
    %cst_175 = arith.constant 0.000000e+00 : f32
    %363 = vector.broadcast %cst_175 : f32 to vector<10x32xf32>
    %364 = vector.extract_strided_slice %360 {offsets = [0, 0], sizes = [10, 512], strides = [1, 1]} : vector<10x2048xbf16> to vector<10x512xbf16>
    %cst_176 = arith.constant dense<0.000000e+00> : vector<10x128xf32>
    %365 = tpu.matmul %364, %362, %cst_176 {dimension_numbers = #tpu.dot_dimension_numbers<[1], [0], [0], [1], [0, 0, 1, 1], [], []>} : vector<10x512xbf16>, vector<512x128xbf16>, vector<10x128xf32> -> vector<10x128xf32>
    %366 = vector.extract_strided_slice %365 {offsets = [0, 0], sizes = [10, 32], strides = [1, 1]} : vector<10x128xf32> to vector<10x32xf32>
    %367 = arith.addf %363, %366 : vector<10x32xf32>
    %368 = vector.extract_strided_slice %360 {offsets = [0, 512], sizes = [10, 512], strides = [1, 1]} : vector<10x2048xbf16> to vector<10x512xbf16>
    %cst_177 = arith.constant dense<0.000000e+00> : vector<10x128xf32>
    %369 = tpu.matmul %368, %362, %cst_177 {dimension_numbers = #tpu.dot_dimension_numbers<[1], [0], [0], [1], [0, 0, 1, 1], [], []>} : vector<10x512xbf16>, vector<512x128xbf16>, vector<10x128xf32> -> vector<10x128xf32>
    %370 = vector.extract_strided_slice %369 {offsets = [0, 32], sizes = [10, 32], strides = [1, 1]} : vector<10x128xf32> to vector<10x32xf32>
    %371 = arith.addf %367, %370 : vector<10x32xf32>
    %372 = vector.extract_strided_slice %360 {offsets = [0, 1024], sizes = [10, 512], strides = [1, 1]} : vector<10x2048xbf16> to vector<10x512xbf16>
    %cst_178 = arith.constant dense<0.000000e+00> : vector<10x128xf32>
    %373 = tpu.matmul %372, %362, %cst_178 {dimension_numbers = #tpu.dot_dimension_numbers<[1], [0], [0], [1], [0, 0, 1, 1], [], []>} : vector<10x512xbf16>, vector<512x128xbf16>, vector<10x128xf32> -> vector<10x128xf32>
    %374 = vector.extract_strided_slice %373 {offsets = [0, 64], sizes = [10, 32], strides = [1, 1]} : vector<10x128xf32> to vector<10x32xf32>
    %375 = arith.addf %371, %374 : vector<10x32xf32>
    %376 = vector.extract_strided_slice %360 {offsets = [0, 1536], sizes = [10, 512], strides = [1, 1]} : vector<10x2048xbf16> to vector<10x512xbf16>
    %cst_179 = arith.constant dense<0.000000e+00> : vector<10x128xf32>
    %377 = tpu.matmul %376, %362, %cst_179 {dimension_numbers = #tpu.dot_dimension_numbers<[1], [0], [0], [1], [0, 0, 1, 1], [], []>} : vector<10x512xbf16>, vector<512x128xbf16>, vector<10x128xf32> -> vector<10x128xf32>
    %378 = vector.extract_strided_slice %377 {offsets = [0, 96], sizes = [10, 32], strides = [1, 1]} : vector<10x128xf32> to vector<10x32xf32>
    %379 = arith.addf %375, %378 : vector<10x32xf32>
    %380 = vector.broadcast %232 : vector<1x32xf32> to vector<10x32xf32>
    %381 = arith.addf %379, %380 : vector<10x32xf32>
    %382 = arith.addf %338, %381 : vector<10x32xf32>
    %cst_180 = arith.constant dense<0.000000e+00> : vector<10xf32>
    %383 = vector.multi_reduction <add>, %382, %cst_180 [1] : vector<10x32xf32> to vector<10xf32>
    %384 = vector.shape_cast %383 : vector<10xf32> to vector<10x1xf32>
    %cst_181 = arith.constant 3.200000e+01 : f32
    %385 = vector.broadcast %cst_181 : f32 to vector<10x1xf32>
    %386 = arith.divf %384, %385 : vector<10x1xf32>
    %387 = vector.broadcast %386 : vector<10x1xf32> to vector<10x32xf32>
    %388 = arith.subf %382, %387 : vector<10x32xf32>
    %389 = arith.mulf %388, %388 : vector<10x32xf32>
    %cst_182 = arith.constant dense<0.000000e+00> : vector<10xf32>
    %390 = vector.multi_reduction <add>, %389, %cst_182 [1] : vector<10x32xf32> to vector<10xf32>
    %391 = vector.shape_cast %390 : vector<10xf32> to vector<10x1xf32>
    %cst_183 = arith.constant 3.200000e+01 : f32
    %392 = vector.broadcast %cst_183 : f32 to vector<10x1xf32>
    %393 = arith.divf %391, %392 : vector<10x1xf32>
    %394 = vector.broadcast %386 : vector<10x1xf32> to vector<10x32xf32>
    %395 = arith.subf %382, %394 : vector<10x32xf32>
    %cst_184 = arith.constant 9.99999974E-6 : f32
    %396 = vector.broadcast %cst_184 : f32 to vector<10x1xf32>
    %397 = arith.addf %393, %396 : vector<10x1xf32>
    %398 = math.rsqrt %397 : vector<10x1xf32>
    %399 = vector.broadcast %398 : vector<10x1xf32> to vector<10x32xf32>
    %400 = arith.mulf %395, %399 : vector<10x32xf32>
    %401 = vector.broadcast %233 : vector<1x32xf32> to vector<10x32xf32>
    %402 = arith.mulf %400, %401 : vector<10x32xf32>
    %403 = vector.broadcast %234 : vector<1x32xf32> to vector<10x32xf32>
    %404 = arith.addf %402, %403 : vector<10x32xf32>
    %c0_185 = arith.constant 0 : index
    %c0_186 = arith.constant 0 : index
    %405 = vector.load %arg5[%c0_185, %c0_186] : memref<32x128xf32, #tpu.memory_space<vmem>>, vector<32x128xf32>
    %cst_187 = arith.constant dense<0.000000e+00> : vector<10x128xf32>
    %406 = tpu.matmul %404, %405, %cst_187 {dimension_numbers = #tpu.dot_dimension_numbers<[1], [0], [0], [1], [0, 0, 1, 1], [], []>} : vector<10x32xf32>, vector<32x128xf32>, vector<10x128xf32> -> vector<10x128xf32>
    %407 = vector.broadcast %27 : vector<1x128xf32> to vector<10x128xf32>
    %408 = arith.addf %406, %407 : vector<10x128xf32>
    %c0_188 = arith.constant 0 : index
    %c0_189 = arith.constant 0 : index
    %409 = vector.load %arg10[%c0_188, %c0_189] : memref<10x128xf32, #tpu.memory_space<vmem>>, vector<10x128xf32>
    tpu.vector_store %arg10[%c0_188, %c0_189], %408 {strides = array<i32>} : memref<10x128xf32, #tpu.memory_space<vmem>>, vector<10x128xf32>,
    return
  }
  func.func @transform_0(%arg0: i32) -> (i32, i32) {
    %c0_i32 = arith.constant 0 : i32
    %c0_i32_0 = arith.constant 0 : i32
    %c0_i32_1 = arith.constant 0 : i32
    return %c0_i32, %c0_i32_0 : i32, i32
  }
  func.func @transform_1(%arg0: i32) -> (i32, i32) {
    %c0_i32 = arith.constant 0 : i32
    %c0_i32_0 = arith.constant 0 : i32
    %c0_i32_1 = arith.constant 0 : i32
    return %c0_i32, %c0_i32_0 : i32, i32
  }
  func.func @transform_2(%arg0: i32) -> (i32, i32, i32) {
    %c0_i32 = arith.constant 0 : i32
    %c0_i32_0 = arith.constant 0 : i32
    %c0_i32_1 = arith.constant 0 : i32
    %c0_i32_2 = arith.constant 0 : i32
    return %c0_i32, %c0_i32_0, %c0_i32_1 : i32, i32, i32
  }
  func.func @transform_3(%arg0: i32) -> (i32, i32, i32) {
    %c0_i32 = arith.constant 0 : i32
    %c0_i32_0 = arith.constant 0 : i32
    %c0_i32_1 = arith.constant 0 : i32
    %c0_i32_2 = arith.constant 0 : i32
    return %c0_i32, %c0_i32_0, %c0_i32_1 : i32, i32, i32
  }
  func.func @transform_4(%arg0: i32) -> (i32, i32) {
    %c0_i32 = arith.constant 0 : i32
    %c0_i32_0 = arith.constant 0 : i32
    %c0_i32_1 = arith.constant 0 : i32
    return %c0_i32, %c0_i32_0 : i32, i32
  }
  func.func @transform_5(%arg0: i32) -> (i32, i32) {
    %c0_i32 = arith.constant 0 : i32
    %c0_i32_0 = arith.constant 0 : i32
    %c0_i32_1 = arith.constant 0 : i32
    return %c0_i32, %c0_i32_0 : i32, i32
  }
  func.func @transform_6(%arg0: i32) -> (i32, i32) {
    %c0_i32 = arith.constant 0 : i32
    %c0_i32_0 = arith.constant 0 : i32
    %c0_i32_1 = arith.constant 0 : i32
    return %c0_i32, %c0_i32_0 : i32, i32
  }
  func.func @transform_9(%arg0: i32) -> (i32, i32) {
    %c0_i32 = arith.constant 0 : i32
    %c0_i32_0 = arith.constant 0 : i32
    %c0_i32_1 = arith.constant 0 : i32
    return %c0_i32, %c0_i32_0 : i32, i32
  }
}

</mosaic_0001>

<llo_original>
// kernel: speech_xformer_forward.1
$region0: #{speech_xformer_forward.1}
  #allocation0 [shape = 'u32[]', space=smem, size = 0x4, offset = 0x4, fixed_abs, tag = 'smem constant byte address 0x4 - core index']
  #allocation1 [shape = 'u32[144,128]{1,0:T(1,128)}', space=vmem, size = 0x12000, scoped, tag = 'internal scratch']
  #allocation2 [shape = 'f32[10,32]{1,0:T(8,128)}', space=vmem, size = 0x2000, scoped, tag = 'scratch operand']
  #allocation3 [shape = 'bf16[2,32,2048]{2,1,0:T(8,128)(2,1)}', space=vmem, size = 0x40000, scoped, tag = 'scratch operand']
  #allocation4 [shape = 'bf16[2,512,128]{2,1,0:T(8,128)(2,1)}', space=vmem, size = 0x40000, scoped, tag = 'scratch operand']
  #allocation5 [shape = 's32[4]{0}', space=sflag, size = 0x10, scoped, tag = 'scratch operand']
  #allocation6 [shape = 's32[]', space=sflag, size = 0x4, offset = 0, fixed_abs, tag = 'sflag constant byte address 0x0 - dummy sync flag']
  #allocation7 [shape = 's32[]', space=sflag, size = 0x4, offset = 0, fixed_abs, tag = 'sflag constant byte address 0x0 - dummy sync flag']
  #allocation8 [shape = 'u32[]', space=smem, size = 0x4, offset = 0x44, fixed_abs, tag = 'smem constant byte address 0x44 - assertion arg 0']
  #allocation9 [shape = 'u32[]', space=smem, size = 0x4, offset = 0x48, fixed_abs, tag = 'smem constant byte address 0x48 - assertion arg 1']
  #allocation10 [shape = 's32[]', space=sflag, size = 0x4, offset = 0, fixed_abs, tag = 'sflag constant byte address 0x0 - dummy sync flag']
  #allocation11 [shape = 's32[]', space=sflag, size = 0x4, offset = 0, fixed_abs, tag = 'sflag constant byte address 0x0 - dummy sync flag']
  #allocation12 [shape = 's32[]', space=sflag, size = 0x4, offset = 0, fixed_abs, tag = 'sflag constant byte address 0x0 - dummy sync flag']
  #allocation13 [shape = 's32[]', space=sflag, size = 0x4, offset = 0, fixed_abs, tag = 'sflag constant byte address 0x0 - dummy sync flag']
  #allocation14 [shape = 's32[]', space=sflag, size = 0x4, offset = 0, fixed_abs, tag = 'sflag constant byte address 0x0 - dummy sync flag']
  #allocation15 [shape = 's32[]', space=sflag, size = 0x4, offset = 0, fixed_abs, tag = 'sflag constant byte address 0x0 - dummy sync flag']
  %s0 = inlined_call_operand.vmem [shape: f32[10,36], index: 0, kind: input, shape index: {}]
  %s1 = inlined_call_operand.vmem [shape: f32[36,32], index: 1, kind: input, shape index: {}]
  %s2 = inlined_call_operand.vmem [shape: bf16[2,32,96], index: 2, kind: input, shape index: {}]
  %s3 = inlined_call_operand.vmem [shape: bf16[2,32,32], index: 3, kind: input, shape index: {}]
  %s4 = inlined_call_operand.vmem [shape: f32[32,128], index: 4, kind: input, shape index: {}]
  %s5 = inlined_call_operand.vmem [shape: f32[16,128], index: 5, kind: input, shape index: {}]
  %s6 = inlined_call_operand.vmem [shape: f32[2,2048], index: 6, kind: input, shape index: {}]
  %s7 = inlined_call_operand.hbm [shape: bf16[2,32,2048], index: 7, kind: input, shape index: {}]
  %s8 = inlined_call_operand.hbm [shape: bf16[2,512,128], index: 8, kind: input, shape index: {}]
  %s9 = inlined_call_operand.vmem [shape: f32[10,128], index: 9, kind: output, shape index: {}]
  %s10 = sld [smem:[#allocation0]]
  $region54: #{speech_xformer_forward.1} parent=0
    _
  %s12 = ssub.s32 1, %s10
  %s13 = scalar_select 0, %s12, %s10
  // Predicated region
  $region2: #{speech_xformer_forward.1} parent=0 // pred_check
    _
  $region3: #{speech_xformer_forward.1} parent=0 // pred_check_branch
    %15 = sbr.rel (0) target = $region5
  $region4: #{speech_xformer_forward.1} parent=0 // pred_region
    _
  $region5: #{speech_xformer_forward.1} parent=0 // pred_fallthru
    _
  // Predicated region
  $region6: #{speech_xformer_forward.1} parent=0 // pred_check
    _
  $region7: #{speech_xformer_forward.1} parent=0 // pred_check_branch
    %17 = sbr.rel (0) target = $region9
  $region8: #{speech_xformer_forward.1} parent=0 // pred_region
    _
  $region9: #{speech_xformer_forward.1} parent=0 // pred_fallthru
    _
  // Predicated region
  $region10: #{speech_xformer_forward.1} parent=0 // pred_check
    _
  $region11: #{speech_xformer_forward.1} parent=0 // pred_check_branch
    %19 = sbr.rel (0) target = $region13
  $region12: #{speech_xformer_forward.1} parent=0 // pred_region
    _
  $region13: #{speech_xformer_forward.1} parent=0 // pred_fallthru
    _
  // Predicated region
  $region14: #{speech_xformer_forward.1} parent=0 // pred_check
    _
  $region15: #{speech_xformer_forward.1} parent=0 // pred_check_branch
    %21 = sbr.rel (0) target = $region17
  $region16: #{speech_xformer_forward.1} parent=0 // pred_region
    _
  $region17: #{speech_xformer_forward.1} parent=0 // pred_fallthru
    _
  // Predicated region
  $region18: #{speech_xformer_forward.1} parent=0 // pred_check
    _
  $region19: #{speech_xformer_forward.1} parent=0 // pred_check_branch
    %23 = sbr.rel (0) target = $region21
  $region20: #{speech_xformer_forward.1} parent=0 // pred_region
    _
  $region21: #{speech_xformer_forward.1} parent=0 // pred_fallthru
    _
  // Predicated region
  $region22: #{speech_xformer_forward.1} parent=0 // pred_check
    _
  $region23: #{speech_xformer_forward.1} parent=0 // pred_check_branch
    %25 = sbr.rel (0) target = $region25
  $region24: #{speech_xformer_forward.1} parent=0 // pred_region
    _
  $region25: #{speech_xformer_forward.1} parent=0 // pred_fallthru
    _
  // Predicated region
  $region26: #{speech_xformer_forward.1} parent=0 // pred_check
    _
  $region27: #{speech_xformer_forward.1} parent=0 // pred_check_branch
    %27 = sbr.rel (0) target = $region29
  $region28: #{speech_xformer_forward.1} parent=0 // pred_region
    _
  $region29: #{speech_xformer_forward.1} parent=0 // pred_fallthru
    _
  // Predicated region
  $region30: #{speech_xformer_forward.1} parent=0 // pred_check
    _
  $region31: #{speech_xformer_forward.1} parent=0 // pred_check_branch
    %30 = sbr.rel target = $region33
  $region32: #{speech_xformer_forward.1} parent=0 // pred_region
    %31 = sst [smem:[#allocation8]] [#allocation7]
    %32 = sst [smem:[#allocation9]] [#allocation6]
  $region33: #{speech_xformer_forward.1} parent=0 // pred_fallthru
    _
  %34 = shalt.err (0)
  %s36 = sshll.u32 [#allocation3], 4
  %s37 = int_to_ptr.vmem [resolvable:$true] %s36
  %39 = dma.hbm_to_vmem [thread:$0]  %s7, 4096, %s37, [#allocation5]
  %s40 = scalar_lea.sflag [#allocation5], 2
  // Predicated region
  $region34: #{speech_xformer_forward.1} parent=0 // pred_check
    _
  $region35: #{speech_xformer_forward.1} parent=0 // pred_check_branch
    %42 = sbr.rel target = $region37
  $region36: #{speech_xformer_forward.1} parent=0 // pred_region
    %43 = sst [smem:[#allocation8]] [#allocation11]
    %44 = sst [smem:[#allocation9]] [#allocation10]
  $region37: #{speech_xformer_forward.1} parent=0 // pred_fallthru
    _
  %46 = shalt.err (0)
  %s48 = sshll.u32 [#allocation4], 4
  %s49 = int_to_ptr.vmem [resolvable:$true] %s48
  %51 = dma.hbm_to_vmem [thread:$0]  %s8, 4096, %s49, %s40
  %s52 = scalar_lea.hbm %s7, 4096
  %s53 = scalar_lea.vmem [#allocation3], 256
  %s54 = scalar_lea.sflag [#allocation5], 1
  // Predicated region
  $region38: #{speech_xformer_forward.1} parent=0 // pred_check
    _
  $region39: #{speech_xformer_forward.1} parent=0 // pred_check_branch
    %56 = sbr.rel target = $region41
  $region40: #{speech_xformer_forward.1} parent=0 // pred_region
    %57 = sst [smem:[#allocation8]] [#allocation13]
    %58 = sst [smem:[#allocation9]] [#allocation12]
  $region41: #{speech_xformer_forward.1} parent=0 // pred_fallthru
    _
  %60 = shalt.err (0)
  %s62 = sshll.u32 %s53, 4
  %s63 = int_to_ptr.vmem [resolvable:$true] %s62
  %65 = dma.hbm_to_vmem [thread:$0]  %s52, 4096, %s63, %s54
  %s66 = scalar_lea.hbm %s8, 4096
  %s67 = scalar_lea.vmem [#allocation4], 256
  %s68 = scalar_lea.sflag [#allocation5], 3
  // Predicated region
  $region42: #{speech_xformer_forward.1} parent=0 // pred_check
    _
  $region43: #{speech_xformer_forward.1} parent=0 // pred_check_branch
    %70 = sbr.rel target = $region45
  $region44: #{speech_xformer_forward.1} parent=0 // pred_region
    %71 = sst [smem:[#allocation8]] [#allocation15]
    %72 = sst [smem:[#allocation9]] [#allocation14]
  $region45: #{speech_xformer_forward.1} parent=0 // pred_fallthru
    _
  %74 = shalt.err (0)
  %s76 = sshll.u32 %s67, 4
  %s77 = int_to_ptr.vmem [resolvable:$true] %s76
  %79 = dma.hbm_to_vmem [thread:$0]  %s66, 4096, %s77, %s68
  %v80 = vld [vmem:[%s5] sm:$0xff]
  %v81 = vld [vmem:[%s5 + $0x8] sm:$0xff]
  %v82 = vld [vmem:[%s6] sm:$0xff]
  %v83 = vld [vmem:[%s6 + $0x8] sm:$0xff]
  %v84 = vld [vmem:[%s6 + $0x10] sm:$0xff]
  %v85 = vld [vmem:[%s6 + $0x18] sm:$0xff]
  %v86 = vlaneseq
  %v87 = vshrl.u32 %v86, 7
  %v88 = vadd.s32 %v87, 8
  %v89 = vcvt.s32.f32 %v87
  %v90 = vcvt.s32.f32 %v88
  %v91 = vlaneseq
  %v92 = vand.u32 %v91, 127
  %v93 = vcvt.s32.f32 %v92
  %v94 = vadd.f32 %v89, 0.5
  %v95 = vadd.f32 %v90, 0.5
  %v96 = vmul.f32 %v94, 0.5
  %v97 = vmul.f32 %v95, 0.5
  %v98 = vfloor.f32 %v96
  %v99 = vfloor.f32 %v97
  %v100 = vadd.f32 %v93, 0.5
  %v101 = vmul.f32 %v100, 0.5
  %v102 = vfloor.f32 %v101
  %vm103 = vcmp.eq.f32.partialorder %v98, %v102
  %vm104 = vcmp.eq.f32.partialorder %v99, %v102
  %v105 = vsel %vm103, 0.0, -1e+30
  %v106 = vsel %vm104, 0.0, -1e+30
  %v107 = vld [vmem:[%s0] sm:$0xff]
  %v108 = vld [vmem:[%s0 + $0x8] sm:$0x3]
  %v109 = vld [vmem:[%s1] sm:$0xff]
  %v110 = vld [vmem:[%s1 + $0x8] sm:$0xff]
  %v111 = vld [vmem:[%s1 + $0x10] sm:$0xff]
  %v112 = vld [vmem:[%s1 + $0x18] sm:$0xff]
  %v113 = vld [vmem:[%s1 + $0x20] sm:$0xf]
  %v114 = vlaneseq
  %v115 = vshrl.u32 %v114, 7
  %v116 = vsub.s32 0, %v115
  %v117 = vrot.slane %v80, %v116
  %vm118 = vcmask 293888
  %v120 = vsel %vm118, %v107, 0
  %v123 = vsel %vm118, %v108, 0
  %vm125 = vcmask 1043456
  %v127 = vsel %vm125, %v113, 0
  %129 = vmatprep.subr.mxu0 0.0
  %130 = vmatpush1.msra.mxu0 0.0
  %131 = vmatprep.subr.mxu0 0.0
  %132 = vmatpush1.msra.mxu0 0.0
  %133 = vmatprep.subr.mxu0 0.0
  %134 = vmatpush1.msra.mxu0 0.0
  %135 = vmatprep.subr.mxu0 0.0
  %136 = vmatpush1.msra.mxu0 0.0
  %137 = vmatprep.subr.mxu0 0.0
  %138 = vmatpush1.msra.mxu0 0.0
  %139 = vmatprep.subr.mxu0 0.0
  %140 = vmatpush1.msra.mxu0 0.0
  %141 = vmatprep.subr.mxu0 0.0
  %142 = vmatpush1.msra.mxu0 0.0
  %143 = vmatprep.subr.mxu0 0.0
  %144 = vmatpush1.msra.mxu0 0.0
  %145 = vmatprep.subr.mxu0 0.0
  %146 = vmatpush1.msra.mxu0 0.0
  %147 = vmatprep.subr.mxu0 0.0
  %148 = vmatpush1.msra.mxu0 0.0
  %149 = vmatprep.subr.mxu0 0.0
  %150 = vmatpush1.msra.mxu0 0.0
  %151 = vmatprep.subr.mxu0 0.0
  %152 = vmatpush1.msra.mxu0 %v127
  %153 = vmatprep.subr.mxu0 0.0
  %154 = vmatpush1.msra.mxu0 %v112
  %155 = vmatprep.subr.mxu0 0.0
  %156 = vmatpush1.msra.mxu0 %v111
  %157 = vmatprep.subr.mxu0 0.0
  %158 = vmatpush1.msra.mxu0 %v110
  %159 = vmatprep.subr.mxu0 0.0
  %160 = vmatpush1.msra.mxu0 %v109
  %161 = vmatprep.subr.mxu0 0.0
  %162 = vmatpush2.msra.mxu0 0.0
  %163 = vmatprep.subr.mxu0 0.0
  %164 = vmatpush2.msra.mxu0 0.0
  %165 = vmatprep.subr.mxu0 0.0
  %166 = vmatpush2.msra.mxu0 0.0
  %167 = vmatprep.subr.mxu0 0.0
  %168 = vmatpush2.msra.mxu0 0.0
  %169 = vmatprep.subr.mxu0 0.0
  %170 = vmatpush2.msra.mxu0 0.0
  %171 = vmatprep.subr.mxu0 0.0
  %172 = vmatpush2.msra.mxu0 0.0
  %173 = vmatprep.subr.mxu0 0.0
  %174 = vmatpush2.msra.mxu0 0.0
  %175 = vmatprep.subr.mxu0 0.0
  %176 = vmatpush2.msra.mxu0 0.0
  %177 = vmatprep.subr.mxu0 0.0
  %178 = vmatpush2.msra.mxu0 0.0
  %179 = vmatprep.subr.mxu0 0.0
  %180 = vmatpush2.msra.mxu0 0.0
  %181 = vmatprep.subr.mxu0 0.0
  %182 = vmatpush2.msra.mxu0 0.0
  %183 = vmatprep.subr.mxu0 0.0
  %184 = vmatpush2.msra.mxu0 0.0
  %185 = vmatprep.subr.mxu0 0.0
  %186 = vmatpush2.msra.mxu0 0.0
  %187 = vmatprep.subr.mxu0 0.0
  %188 = vmatpush2.msra.mxu0 0.0
  %189 = vmatprep.subr.mxu0 0.0
  %190 = vmatpush2.msra.mxu0 0.0
  %191 = vmatprep.subr.mxu0 0.0
  %192 = vmatpush2.msra.mxu0 0.0
  %193 = vmatprep.mubr.f32.mxu0 0.0
  %194 = vmatmul.mubr.f32.gmra.mxu0 %v120
  %v195 = vpop.f32.mrf.mxu0
  %v196 = vadd.f32 %v117, %v195
  %v197 = vpop.f32.mrf.mxu0
  %198 = vmatprep.mubr.f32.mxu0 0.0
  %199 = vmatmul.mubr.f32.gmra.mxu0 %v123
  %v200 = vpop.f32.mrf.mxu0
  %v201 = vadd.f32 %v117, %v200
  %v202 = vpop.f32.mrf.mxu0
  %203 = vdwg.mxu0
  %v204 = vpack.c.bf16 %v201, %v196
  %v205 = vld [vmem:[%s2] sm:$0xf]
  %v206 = vld [vmem:[%s2 + $0x4] sm:$0xf]
  %v207 = vld [vmem:[%s2 + $0x8] sm:$0xf]
  %v208 = vld [vmem:[%s2 + $0xc] sm:$0xf]
  %v209 = vlaneseq
  %v210 = vshrl.u32 %v209, 7
  %v211 = vsub.s32 2, %v210
  %v212 = vrot.slane %v80, %v211
  %v217 = vunpack.c.l.b16 %v205
  %v218 = vunpack.c.l.b16 %v206
  %v219 = vunpack.c.l.b16 %v207
  %v220 = vunpack.c.l.b16 %v208
  %v221 = vpack.c.b16 %v218, %v217
  %v222 = vpack.c.b16 %v220, %v219
  %vm225 = vcmask 261120
  %v227 = vsel %vm225, %v204, 0
  %229 = vmatprep.subr.bf16.mxu0 0
  %230 = vmatpush1.bf16.msra.mxu0 0
  %231 = vmatprep.subr.bf16.mxu0 0
  %232 = vmatpush1.bf16.msra.mxu0 0
  %233 = vmatprep.subr.bf16.mxu0 0
  %234 = vmatpush1.bf16.msra.mxu0 0
  %235 = vmatprep.subr.bf16.mxu0 0
  %236 = vmatpush1.bf16.msra.mxu0 0
  %237 = vmatprep.subr.bf16.mxu0 0
  %238 = vmatpush1.bf16.msra.mxu0 0
  %239 = vmatprep.subr.bf16.mxu0 0
  %240 = vmatpush1.bf16.msra.mxu0 0
  %241 = vmatprep.subr.bf16.mxu0 0
  %242 = vmatpush1.bf16.msra.mxu0 %v222
  %243 = vmatprep.subr.bf16.mxu0 0
  %244 = vmatpush1.bf16.msra.mxu0 %v221
  %245 = vmatprep.subr.bf16.mxu0 0
  %246 = vmatpush2.bf16.msra.mxu0 0
  %247 = vmatprep.subr.bf16.mxu0 0
  %248 = vmatpush2.bf16.msra.mxu0 0
  %249 = vmatprep.subr.bf16.mxu0 0
  %250 = vmatpush2.bf16.msra.mxu0 0
  %251 = vmatprep.subr.bf16.mxu0 0
  %252 = vmatpush2.bf16.msra.mxu0 0
  %253 = vmatprep.subr.bf16.mxu0 0
  %254 = vmatpush2.bf16.msra.mxu0 0
  %255 = vmatprep.subr.bf16.mxu0 0
  %256 = vmatpush2.bf16.msra.mxu0 0
  %257 = vmatprep.subr.bf16.mxu0 0
  %258 = vmatpush2.bf16.msra.mxu0 0
  %259 = vmatprep.subr.bf16.mxu0 0
  %260 = vmatpush2.bf16.msra.mxu0 0
  %261 = vmatprep.mubr.bf16.mxu0 0
  %262 = vmatmul.mubr.bf16.gmra.mxu0 %v227
  %v263 = vpop.f32.mrf.mxu0
  %v264 = vadd.f32 %v212, %v263
  %v265 = vpop.f32.mrf.mxu0
  %v266 = vpop.f32.mrf.mxu0
  %v267 = vadd.f32 %v212, %v266
  %v268 = vpop.f32.mrf.mxu0
  %269 = vdwg.mxu0
  %272 = vrot.lane.b32.xlu0 %v264, 96
  %v273 = vpop.permute.xlu0 %272
  %274 = vrot.lane.b32.xlu0 %v267, 96
  %v275 = vpop.permute.xlu0 %274
  %vm276 = vcmask 64512
  %v277 = vsel %vm276, %v264, 0
  %v279 = vsel %vm276, %v267, 0
  %v281 = vsel %vm276, %v273, 0
  %v283 = vsel %vm276, %v275, 0
  %285 = vmatprep.subr.mxu0 0.0
  %286 = vmatpush1.xpose.msra.mxu0 0.0
  %287 = vmatprep.subr.mxu0 0.0
  %288 = vmatpush1.xpose.msra.mxu0 0.0
  %289 = vmatprep.subr.mxu0 0.0
  %290 = vmatpush1.xpose.msra.mxu0 0.0
  %291 = vmatprep.subr.mxu0 0.0
  %292 = vmatpush1.xpose.msra.mxu0 0.0
  %293 = vmatprep.subr.mxu0 0.0
  %294 = vmatpush1.xpose.msra.mxu0 0.0
  %295 = vmatprep.subr.mxu0 0.0
  %296 = vmatpush1.xpose.msra.mxu0 0.0
  %297 = vmatprep.subr.mxu0 0.0
  %298 = vmatpush1.xpose.msra.mxu0 0.0
  %299 = vmatprep.subr.mxu0 0.0
  %300 = vmatpush1.xpose.msra.mxu0 0.0
  %301 = vmatprep.subr.mxu0 0.0
  %302 = vmatpush1.xpose.msra.mxu0 0.0
  %303 = vmatprep.subr.mxu0 0.0
  %304 = vmatpush1.xpose.msra.mxu0 0.0
  %305 = vmatprep.subr.mxu0 0.0
  %306 = vmatpush1.xpose.msra.mxu0 0.0
  %307 = vmatprep.subr.mxu0 0.0
  %308 = vmatpush1.xpose.msra.mxu0 0.0
  %309 = vmatprep.subr.mxu0 0.0
  %310 = vmatpush1.xpose.msra.mxu0 0.0
  %311 = vmatprep.subr.mxu0 0.0
  %312 = vmatpush1.xpose.msra.mxu0 0.0
  %313 = vmatprep.subr.mxu0 0.0
  %314 = vmatpush1.xpose.msra.mxu0 %v283
  %315 = vmatprep.subr.mxu0 0.0
  %316 = vmatpush1.xpose.msra.mxu0 %v281
  %317 = vmatprep.subr.mxu0 0.0
  %318 = vmatpush2.xpose.msra.mxu0 0.0
  %319 = vmatprep.subr.mxu0 0.0
  %320 = vmatpush2.xpose.msra.mxu0 0.0
  %321 = vmatprep.subr.mxu0 0.0
  %322 = vmatpush2.xpose.msra.mxu0 0.0
  %323 = vmatprep.subr.mxu0 0.0
  %324 = vmatpush2.xpose.msra.mxu0 0.0
  %325 = vmatprep.subr.mxu0 0.0
  %326 = vmatpush2.xpose.msra.mxu0 0.0
  %327 = vmatprep.subr.mxu0 0.0
  %328 = vmatpush2.xpose.msra.mxu0 0.0
  %329 = vmatprep.subr.mxu0 0.0
  %330 = vmatpush2.xpose.msra.mxu0 0.0
  %331 = vmatprep.subr.mxu0 0.0
  %332 = vmatpush2.xpose.msra.mxu0 0.0
  %333 = vmatprep.subr.mxu0 0.0
  %334 = vmatpush2.xpose.msra.mxu0 0.0
  %335 = vmatprep.subr.mxu0 0.0
  %336 = vmatpush2.xpose.msra.mxu0 0.0
  %337 = vmatprep.subr.mxu0 0.0
  %338 = vmatpush2.xpose.msra.mxu0 0.0
  %339 = vmatprep.subr.mxu0 0.0
  %340 = vmatpush2.xpose.msra.mxu0 0.0
  %341 = vmatprep.subr.mxu0 0.0
  %342 = vmatpush2.xpose.msra.mxu0 0.0
  %343 = vmatprep.subr.mxu0 0.0
  %344 = vmatpush2.xpose.msra.mxu0 0.0
  %345 = vmatprep.subr.mxu0 0.0
  %346 = vmatpush2.xpose.msra.mxu0 0.0
  %347 = vmatprep.subr.mxu0 0.0
  %348 = vmatpush2.xpose.msra.mxu0 0.0
  %349 = vmatprep.mubr.f32.mxu0 0.0
  %350 = vmatmul.mubr.f32.gmra.mxu0 %v277
  %v351 = vpop.f32.mrf.mxu0
  %v352 = vadd.f32 %v105, %v351
  %v353 = vpop.f32.mrf.mxu0
  %354 = vmatprep.mubr.f32.mxu0 0.0
  %355 = vmatmul.mubr.f32.gmra.mxu0 %v279
  %v356 = vpop.f32.mrf.mxu0
  %v357 = vadd.f32 %v106, %v356
  %v358 = vpop.f32.mrf.mxu0
  %359 = vdwg.mxu0
  %vm360 = vcmask 80896
  %v361 = vsel %vm360, %v352, -inf
  %362 = vmax.xlane.f32.xlu0 %v361
  %v363 = vpop.xlane.xlu0 %362
  %vm364 = vcmask 74752
  %v365 = vsel %vm364, %v357, -inf
  %366 = vmax.xlane.f32.xlu0 %v365
  %v367 = vpop.xlane.xlu0 %366
  %v368 = vsub.f32 %v352, %v363
  %v369 = vsub.f32 %v357, %v367
  %v370 = vmul.f32 %v368, 1.442695
  %v371 = vpow.pop %v370
  %v372 = vmul.f32 %v369, 1.442695
  %v373 = vpow.pop %v372
  %v374 = vsel %vm360, %v371, 0.0
  %375 = vadd.xlane.f32.xlu0 %v374
  %v376 = vpop.xlane.xlu0 %375
  %v377 = vsel %vm364, %v373, 0.0
  %378 = vadd.xlane.f32.xlu0 %v377
  %v379 = vpop.xlane.xlu0 %378
  %v380 = vrcp.pop %v376
  %v381 = vrcp.pop %v379
  %v382 = vmul.f32 %v371, %v380
  %v383 = vmul.f32 %v373, %v381
  %384 = vrot.lane.b32.xlu0 %v264, 64
  %v385 = vpop.permute.xlu0 %384
  %386 = vrot.lane.b32.xlu0 %v267, 64
  %v387 = vpop.permute.xlu0 %386
  %v390 = vsel %vm360, %v382, 0
  %v393 = vsel %vm360, %v383, 0
  %vm395 = vcmask 1041408
  %v396 = vsel %vm395, %v387, 0
  %398 = vmatprep.subr.mxu0 0.0
  %399 = vmatpush1.msra.mxu0 0.0
  %400 = vmatprep.subr.mxu0 0.0
  %401 = vmatpush1.msra.mxu0 0.0
  %402 = vmatprep.subr.mxu0 0.0
  %403 = vmatpush1.msra.mxu0 0.0
  %404 = vmatprep.subr.mxu0 0.0
  %405 = vmatpush1.msra.mxu0 0.0
  %406 = vmatprep.subr.mxu0 0.0
  %407 = vmatpush1.msra.mxu0 0.0
  %408 = vmatprep.subr.mxu0 0.0
  %409 = vmatpush1.msra.mxu0 0.0
  %410 = vmatprep.subr.mxu0 0.0
  %411 = vmatpush1.msra.mxu0 0.0
  %412 = vmatprep.subr.mxu0 0.0
  %413 = vmatpush1.msra.mxu0 0.0
  %414 = vmatprep.subr.mxu0 0.0
  %415 = vmatpush1.msra.mxu0 0.0
  %416 = vmatprep.subr.mxu0 0.0
  %417 = vmatpush1.msra.mxu0 0.0
  %418 = vmatprep.subr.mxu0 0.0
  %419 = vmatpush1.msra.mxu0 0.0
  %420 = vmatprep.subr.mxu0 0.0
  %421 = vmatpush1.msra.mxu0 0.0
  %422 = vmatprep.subr.mxu0 0.0
  %423 = vmatpush1.msra.mxu0 0.0
  %424 = vmatprep.subr.mxu0 0.0
  %425 = vmatpush1.msra.mxu0 0.0
  %426 = vmatprep.subr.mxu0 0.0
  %427 = vmatpush1.msra.mxu0 %v396
  %428 = vmatprep.subr.mxu0 0.0
  %429 = vmatpush1.msra.mxu0 %v385
  %430 = vmatprep.subr.mxu0 0.0
  %431 = vmatpush2.msra.mxu0 0.0
  %432 = vmatprep.subr.mxu0 0.0
  %433 = vmatpush2.msra.mxu0 0.0
  %434 = vmatprep.subr.mxu0 0.0
  %435 = vmatpush2.msra.mxu0 0.0
  %436 = vmatprep.subr.mxu0 0.0
  %437 = vmatpush2.msra.mxu0 0.0
  %438 = vmatprep.subr.mxu0 0.0
  %439 = vmatpush2.msra.mxu0 0.0
  %440 = vmatprep.subr.mxu0 0.0
  %441 = vmatpush2.msra.mxu0 0.0
  %442 = vmatprep.subr.mxu0 0.0
  %443 = vmatpush2.msra.mxu0 0.0
  %444 = vmatprep.subr.mxu0 0.0
  %445 = vmatpush2.msra.mxu0 0.0
  %446 = vmatprep.subr.mxu0 0.0
  %447 = vmatpush2.msra.mxu0 0.0
  %448 = vmatprep.subr.mxu0 0.0
  %449 = vmatpush2.msra.mxu0 0.0
  %450 = vmatprep.subr.mxu0 0.0
  %451 = vmatpush2.msra.mxu0 0.0
  %452 = vmatprep.subr.mxu0 0.0
  %453 = vmatpush2.msra.mxu0 0.0
  %454 = vmatprep.subr.mxu0 0.0
  %455 = vmatpush2.msra.mxu0 0.0
  %456 = vmatprep.subr.mxu0 0.0
  %457 = vmatpush2.msra.mxu0 0.0
  %458 = vmatprep.subr.mxu0 0.0
  %459 = vmatpush2.msra.mxu0 0.0
  %460 = vmatprep.subr.mxu0 0.0
  %461 = vmatpush2.msra.mxu0 0.0
  %462 = vmatprep.mubr.f32.mxu0 0.0
  %463 = vmatmul.mubr.f32.gmra.mxu0 %v390
  %v464 = vpop.f32.mrf.mxu0
  %v465 = vadd.f32 0.0, %v464
  %v466 = vpop.f32.mrf.mxu0
  %467 = vmatprep.mubr.f32.mxu0 0.0
  %468 = vmatmul.mubr.f32.gmra.mxu0 %v393
  %v469 = vpop.f32.mrf.mxu0
  %v470 = vadd.f32 0.0, %v469
  %v471 = vpop.f32.mrf.mxu0
  %472 = vdwg.mxu0
  %473 = vst.msk [vmem:[#allocation2] sm:$0xff] %vm276, %v465
  %vm474 = vcmask 58368
  %475 = vst.msk [vmem:[#allocation2 + $0x8] sm:$0x3] %vm474, %v470
  %476 = vrot.lane.b32.xlu0 %v264, 120
  %v477 = vpop.permute.xlu0 %476
  %478 = vrot.lane.b32.xlu0 %v267, 120
  %v479 = vpop.permute.xlu0 %478
  %480 = vrot.lane.b32.xlu0 %v264, 88
  %v481 = vpop.permute.xlu0 %480
  %482 = vrot.lane.b32.xlu0 %v267, 88
  %v483 = vpop.permute.xlu0 %482
  %v484 = vsel %vm276, %v477, 0
  %v486 = vsel %vm276, %v479, 0
  %v488 = vsel %vm276, %v481, 0
  %v490 = vsel %vm276, %v483, 0
  %492 = vmatprep.subr.mxu0 0.0
  %493 = vmatpush1.xpose.msra.mxu0 0.0
  %494 = vmatprep.subr.mxu0 0.0
  %495 = vmatpush1.xpose.msra.mxu0 0.0
  %496 = vmatprep.subr.mxu0 0.0
  %497 = vmatpush1.xpose.msra.mxu0 0.0
  %498 = vmatprep.subr.mxu0 0.0
  %499 = vmatpush1.xpose.msra.mxu0 0.0
  %500 = vmatprep.subr.mxu0 0.0
  %501 = vmatpush1.xpose.msra.mxu0 0.0
  %502 = vmatprep.subr.mxu0 0.0
  %503 = vmatpush1.xpose.msra.mxu0 0.0
  %504 = vmatprep.subr.mxu0 0.0
  %505 = vmatpush1.xpose.msra.mxu0 0.0
  %506 = vmatprep.subr.mxu0 0.0
  %507 = vmatpush1.xpose.msra.mxu0 0.0
  %508 = vmatprep.subr.mxu0 0.0
  %509 = vmatpush1.xpose.msra.mxu0 0.0
  %510 = vmatprep.subr.mxu0 0.0
  %511 = vmatpush1.xpose.msra.mxu0 0.0
  %512 = vmatprep.subr.mxu0 0.0
  %513 = vmatpush1.xpose.msra.mxu0 0.0
  %514 = vmatprep.subr.mxu0 0.0
  %515 = vmatpush1.xpose.msra.mxu0 0.0
  %516 = vmatprep.subr.mxu0 0.0
  %517 = vmatpush1.xpose.msra.mxu0 0.0
  %518 = vmatprep.subr.mxu0 0.0
  %519 = vmatpush1.xpose.msra.mxu0 0.0
  %520 = vmatprep.subr.mxu0 0.0
  %521 = vmatpush1.xpose.msra.mxu0 %v490
  %522 = vmatprep.subr.mxu0 0.0
  %523 = vmatpush1.xpose.msra.mxu0 %v488
  %524 = vmatprep.subr.mxu0 0.0
  %525 = vmatpush2.xpose.msra.mxu0 0.0
  %526 = vmatprep.subr.mxu0 0.0
  %527 = vmatpush2.xpose.msra.mxu0 0.0
  %528 = vmatprep.subr.mxu0 0.0
  %529 = vmatpush2.xpose.msra.mxu0 0.0
  %530 = vmatprep.subr.mxu0 0.0
  %531 = vmatpush2.xpose.msra.mxu0 0.0
  %532 = vmatprep.subr.mxu0 0.0
  %533 = vmatpush2.xpose.msra.mxu0 0.0
  %534 = vmatprep.subr.mxu0 0.0
  %535 = vmatpush2.xpose.msra.mxu0 0.0
  %536 = vmatprep.subr.mxu0 0.0
  %537 = vmatpush2.xpose.msra.mxu0 0.0
  %538 = vmatprep.subr.mxu0 0.0
  %539 = vmatpush2.xpose.msra.mxu0 0.0
  %540 = vmatprep.subr.mxu0 0.0
  %541 = vmatpush2.xpose.msra.mxu0 0.0
  %542 = vmatprep.subr.mxu0 0.0
  %543 = vmatpush2.xpose.msra.mxu0 0.0
  %544 = vmatprep.subr.mxu0 0.0
  %545 = vmatpush2.xpose.msra.mxu0 0.0
  %546 = vmatprep.subr.mxu0 0.0
  %547 = vmatpush2.xpose.msra.mxu0 0.0
  %548 = vmatprep.subr.mxu0 0.0
  %549 = vmatpush2.xpose.msra.mxu0 0.0
  %550 = vmatprep.subr.mxu0 0.0
  %551 = vmatpush2.xpose.msra.mxu0 0.0
  %552 = vmatprep.subr.mxu0 0.0
  %553 = vmatpush2.xpose.msra.mxu0 0.0
  %554 = vmatprep.subr.mxu0 0.0
  %555 = vmatpush2.xpose.msra.mxu0 0.0
  %556 = vmatprep.mubr.f32.mxu0 0.0
  %557 = vmatmul.mubr.f32.gmra.mxu0 %v484
  %v558 = vpop.f32.mrf.mxu0
  %v559 = vadd.f32 %v105, %v558
  %v560 = vpop.f32.mrf.mxu0
  %561 = vmatprep.mubr.f32.mxu0 0.0
  %562 = vmatmul.mubr.f32.gmra.mxu0 %v486
  %v563 = vpop.f32.mrf.mxu0
  %v564 = vadd.f32 %v106, %v563
  %v565 = vpop.f32.mrf.mxu0
  %566 = vdwg.mxu0
  %v567 = vsel %vm360, %v559, -inf
  %568 = vmax.xlane.f32.xlu0 %v567
  %v569 = vpop.xlane.xlu0 %568
  %v570 = vsel %vm364, %v564, -inf
  %571 = vmax.xlane.f32.xlu0 %v570
  %v572 = vpop.xlane.xlu0 %571
  %v573 = vsub.f32 %v559, %v569
  %v574 = vsub.f32 %v564, %v572
  %v575 = vmul.f32 %v573, 1.442695
  %v576 = vpow.pop %v575
  %v577 = vmul.f32 %v574, 1.442695
  %v578 = vpow.pop %v577
  %v579 = vsel %vm360, %v576, 0.0
  %580 = vadd.xlane.f32.xlu0 %v579
  %v581 = vpop.xlane.xlu0 %580
  %v582 = vsel %vm364, %v578, 0.0
  %583 = vadd.xlane.f32.xlu0 %v582
  %v584 = vpop.xlane.xlu0 %583
  %v585 = vrcp.pop %v581
  %v586 = vrcp.pop %v584
  %v587 = vmul.f32 %v576, %v585
  %v588 = vmul.f32 %v578, %v586
  %589 = vrot.lane.b32.xlu0 %v264, 56
  %v590 = vpop.permute.xlu0 %589
  %591 = vrot.lane.b32.xlu0 %v267, 56
  %v592 = vpop.permute.xlu0 %591
  %v595 = vsel %vm360, %v587, 0
  %v598 = vsel %vm360, %v588, 0
  %v600 = vsel %vm395, %v592, 0
  %602 = vmatprep.subr.mxu0 0.0
  %603 = vmatpush1.msra.mxu0 0.0
  %604 = vmatprep.subr.mxu0 0.0
  %605 = vmatpush1.msra.mxu0 0.0
  %606 = vmatprep.subr.mxu0 0.0
  %607 = vmatpush1.msra.mxu0 0.0
  %608 = vmatprep.subr.mxu0 0.0
  %609 = vmatpush1.msra.mxu0 0.0
  %610 = vmatprep.subr.mxu0 0.0
  %611 = vmatpush1.msra.mxu0 0.0
  %612 = vmatprep.subr.mxu0 0.0
  %613 = vmatpush1.msra.mxu0 0.0
  %614 = vmatprep.subr.mxu0 0.0
  %615 = vmatpush1.msra.mxu0 0.0
  %616 = vmatprep.subr.mxu0 0.0
  %617 = vmatpush1.msra.mxu0 0.0
  %618 = vmatprep.subr.mxu0 0.0
  %619 = vmatpush1.msra.mxu0 0.0
  %620 = vmatprep.subr.mxu0 0.0
  %621 = vmatpush1.msra.mxu0 0.0
  %622 = vmatprep.subr.mxu0 0.0
  %623 = vmatpush1.msra.mxu0 0.0
  %624 = vmatprep.subr.mxu0 0.0
  %625 = vmatpush1.msra.mxu0 0.0
  %626 = vmatprep.subr.mxu0 0.0
  %627 = vmatpush1.msra.mxu0 0.0
  %628 = vmatprep.subr.mxu0 0.0
  %629 = vmatpush1.msra.mxu0 0.0
  %630 = vmatprep.subr.mxu0 0.0
  %631 = vmatpush1.msra.mxu0 %v600
  %632 = vmatprep.subr.mxu0 0.0
  %633 = vmatpush1.msra.mxu0 %v590
  %634 = vmatprep.subr.mxu0 0.0
  %635 = vmatpush2.msra.mxu0 0.0
  %636 = vmatprep.subr.mxu0 0.0
  %637 = vmatpush2.msra.mxu0 0.0
  %638 = vmatprep.subr.mxu0 0.0
  %639 = vmatpush2.msra.mxu0 0.0
  %640 = vmatprep.subr.mxu0 0.0
  %641 = vmatpush2.msra.mxu0 0.0
  %642 = vmatprep.subr.mxu0 0.0
  %643 = vmatpush2.msra.mxu0 0.0
  %644 = vmatprep.subr.mxu0 0.0
  %645 = vmatpush2.msra.mxu0 0.0
  %646 = vmatprep.subr.mxu0 0.0
  %647 = vmatpush2.msra.mxu0 0.0
  %648 = vmatprep.subr.mxu0 0.0
  %649 = vmatpush2.msra.mxu0 0.0
  %650 = vmatprep.subr.mxu0 0.0
  %651 = vmatpush2.msra.mxu0 0.0
  %652 = vmatprep.subr.mxu0 0.0
  %653 = vmatpush2.msra.mxu0 0.0
  %654 = vmatprep.subr.mxu0 0.0
  %655 = vmatpush2.msra.mxu0 0.0
  %656 = vmatprep.subr.mxu0 0.0
  %657 = vmatpush2.msra.mxu0 0.0
  %658 = vmatprep.subr.mxu0 0.0
  %659 = vmatpush2.msra.mxu0 0.0
  %660 = vmatprep.subr.mxu0 0.0
  %661 = vmatpush2.msra.mxu0 0.0
  %662 = vmatprep.subr.mxu0 0.0
  %663 = vmatpush2.msra.mxu0 0.0
  %664 = vmatprep.subr.mxu0 0.0
  %665 = vmatpush2.msra.mxu0 0.0
  %666 = vmatprep.mubr.f32.mxu0 0.0
  %667 = vmatmul.mubr.f32.gmra.mxu0 %v595
  %v668 = vpop.f32.mrf.mxu0
  %v669 = vadd.f32 0.0, %v668
  %v670 = vpop.f32.mrf.mxu0
  %671 = vmatprep.mubr.f32.mxu0 0.0
  %672 = vmatmul.mubr.f32.gmra.mxu0 %v598
  %v673 = vpop.f32.mrf.mxu0
  %v674 = vadd.f32 0.0, %v673
  %v675 = vpop.f32.mrf.mxu0
  %676 = vdwg.mxu0
  %679 = vrot.lane.b32.xlu0 %v669, 8
  %v680 = vpop.permute.xlu0 %679
  %681 = vrot.lane.b32.xlu0 %v674, 8
  %v682 = vpop.permute.xlu0 %681
  %vm685 = vcmask 130112
  %686 = vst.msk [vmem:[#allocation2] sm:$0xff] %vm685, %v680
  %vm687 = vcmask 123968
  %688 = vst.msk [vmem:[#allocation2 + $0x8] sm:$0x3] %vm687, %v682
  %689 = vrot.lane.b32.xlu0 %v264, 112
  %v690 = vpop.permute.xlu0 %689
  %691 = vrot.lane.b32.xlu0 %v267, 112
  %v692 = vpop.permute.xlu0 %691
  %693 = vrot.lane.b32.xlu0 %v264, 80
  %v694 = vpop.permute.xlu0 %693
  %695 = vrot.lane.b32.xlu0 %v267, 80
  %v696 = vpop.permute.xlu0 %695
  %v697 = vsel %vm276, %v690, 0
  %v699 = vsel %vm276, %v692, 0
  %v701 = vsel %vm276, %v694, 0
  %v703 = vsel %vm276, %v696, 0
  %705 = vmatprep.subr.mxu0 0.0
  %706 = vmatpush1.xpose.msra.mxu0 0.0
  %707 = vmatprep.subr.mxu0 0.0
  %708 = vmatpush1.xpose.msra.mxu0 0.0
  %709 = vmatprep.subr.mxu0 0.0
  %710 = vmatpush1.xpose.msra.mxu0 0.0
  %711 = vmatprep.subr.mxu0 0.0
  %712 = vmatpush1.xpose.msra.mxu0 0.0
  %713 = vmatprep.subr.mxu0 0.0
  %714 = vmatpush1.xpose.msra.mxu0 0.0
  %715 = vmatprep.subr.mxu0 0.0
  %716 = vmatpush1.xpose.msra.mxu0 0.0
  %717 = vmatprep.subr.mxu0 0.0
  %718 = vmatpush1.xpose.msra.mxu0 0.0
  %719 = vmatprep.subr.mxu0 0.0
  %720 = vmatpush1.xpose.msra.mxu0 0.0
  %721 = vmatprep.subr.mxu0 0.0
  %722 = vmatpush1.xpose.msra.mxu0 0.0
  %723 = vmatprep.subr.mxu0 0.0
  %724 = vmatpush1.xpose.msra.mxu0 0.0
  %725 = vmatprep.subr.mxu0 0.0
  %726 = vmatpush1.xpose.msra.mxu0 0.0
  %727 = vmatprep.subr.mxu0 0.0
  %728 = vmatpush1.xpose.msra.mxu0 0.0
  %729 = vmatprep.subr.mxu0 0.0
  %730 = vmatpush1.xpose.msra.mxu0 0.0
  %731 = vmatprep.subr.mxu0 0.0
  %732 = vmatpush1.xpose.msra.mxu0 0.0
  %733 = vmatprep.subr.mxu0 0.0
  %734 = vmatpush1.xpose.msra.mxu0 %v703
  %735 = vmatprep.subr.mxu0 0.0
  %736 = vmatpush1.xpose.msra.mxu0 %v701
  %737 = vmatprep.subr.mxu0 0.0
  %738 = vmatpush2.xpose.msra.mxu0 0.0
  %739 = vmatprep.subr.mxu0 0.0
  %740 = vmatpush2.xpose.msra.mxu0 0.0
  %741 = vmatprep.subr.mxu0 0.0
  %742 = vmatpush2.xpose.msra.mxu0 0.0
  %743 = vmatprep.subr.mxu0 0.0
  %744 = vmatpush2.xpose.msra.mxu0 0.0
  %745 = vmatprep.subr.mxu0 0.0
  %746 = vmatpush2.xpose.msra.mxu0 0.0
  %747 = vmatprep.subr.mxu0 0.0
  %748 = vmatpush2.xpose.msra.mxu0 0.0
  %749 = vmatprep.subr.mxu0 0.0
  %750 = vmatpush2.xpose.msra.mxu0 0.0
  %751 = vmatprep.subr.mxu0 0.0
  %752 = vmatpush2.xpose.msra.mxu0 0.0
  %753 = vmatprep.subr.mxu0 0.0
  %754 = vmatpush2.xpose.msra.mxu0 0.0
  %755 = vmatprep.subr.mxu0 0.0
  %756 = vmatpush2.xpose.msra.mxu0 0.0
  %757 = vmatprep.subr.mxu0 0.0
  %758 = vmatpush2.xpose.msra.mxu0 0.0
  %759 = vmatprep.subr.mxu0 0.0
  %760 = vmatpush2.xpose.msra.mxu0 0.0
  %761 = vmatprep.subr.mxu0 0.0
  %762 = vmatpush2.xpose.msra.mxu0 0.0
  %763 = vmatprep.subr.mxu0 0.0
  %764 = vmatpush2.xpose.msra.mxu0 0.0
  %765 = vmatprep.subr.mxu0 0.0
  %766 = vmatpush2.xpose.msra.mxu0 0.0
  %767 = vmatprep.subr.mxu0 0.0
  %768 = vmatpush2.xpose.msra.mxu0 0.0
  %769 = vmatprep.mubr.f32.mxu0 0.0
  %770 = vmatmul.mubr.f32.gmra.mxu0 %v697
  %v771 = vpop.f32.mrf.mxu0
  %v772 = vadd.f32 %v105, %v771
  %v773 = vpop.f32.mrf.mxu0
  %774 = vmatprep.mubr.f32.mxu0 0.0
  %775 = vmatmul.mubr.f32.gmra.mxu0 %v699
  %v776 = vpop.f32.mrf.mxu0
  %v777 = vadd.f32 %v106, %v776
  %v778 = vpop.f32.mrf.mxu0
  %779 = vdwg.mxu0
  %v780 = vsel %vm360, %v772, -inf
  %781 = vmax.xlane.f32.xlu0 %v780
  %v782 = vpop.xlane.xlu0 %781
  %v783 = vsel %vm364, %v777, -inf
  %784 = vmax.xlane.f32.xlu0 %v783
  %v785 = vpop.xlane.xlu0 %784
  %v786 = vsub.f32 %v772, %v782
  %v787 = vsub.f32 %v777, %v785
  %v788 = vmul.f32 %v786, 1.442695
  %v789 = vpow.pop %v788
  %v790 = vmul.f32 %v787, 1.442695
  %v791 = vpow.pop %v790
  %v792 = vsel %vm360, %v789, 0.0
  %793 = vadd.xlane.f32.xlu0 %v792
  %v794 = vpop.xlane.xlu0 %793
  %v795 = vsel %vm364, %v791, 0.0
  %796 = vadd.xlane.f32.xlu0 %v795
  %v797 = vpop.xlane.xlu0 %796
  %v798 = vrcp.pop %v794
  %v799 = vrcp.pop %v797
  %v800 = vmul.f32 %v789, %v798
  %v801 = vmul.f32 %v791, %v799
  %802 = vrot.lane.b32.xlu0 %v264, 48
  %v803 = vpop.permute.xlu0 %802
  %804 = vrot.lane.b32.xlu0 %v267, 48
  %v805 = vpop.permute.xlu0 %804
  %v808 = vsel %vm360, %v800, 0
  %v811 = vsel %vm360, %v801, 0
  %v813 = vsel %vm395, %v805, 0
  %815 = vmatprep.subr.mxu0 0.0
  %816 = vmatpush1.msra.mxu0 0.0
  %817 = vmatprep.subr.mxu0 0.0
  %818 = vmatpush1.msra.mxu0 0.0
  %819 = vmatprep.subr.mxu0 0.0
  %820 = vmatpush1.msra.mxu0 0.0
  %821 = vmatprep.subr.mxu0 0.0
  %822 = vmatpush1.msra.mxu0 0.0
  %823 = vmatprep.subr.mxu0 0.0
  %824 = vmatpush1.msra.mxu0 0.0
  %825 = vmatprep.subr.mxu0 0.0
  %826 = vmatpush1.msra.mxu0 0.0
  %827 = vmatprep.subr.mxu0 0.0
  %828 = vmatpush1.msra.mxu0 0.0
  %829 = vmatprep.subr.mxu0 0.0
  %830 = vmatpush1.msra.mxu0 0.0
  %831 = vmatprep.subr.mxu0 0.0
  %832 = vmatpush1.msra.mxu0 0.0
  %833 = vmatprep.subr.mxu0 0.0
  %834 = vmatpush1.msra.mxu0 0.0
  %835 = vmatprep.subr.mxu0 0.0
  %836 = vmatpush1.msra.mxu0 0.0
  %837 = vmatprep.subr.mxu0 0.0
  %838 = vmatpush1.msra.mxu0 0.0
  %839 = vmatprep.subr.mxu0 0.0
  %840 = vmatpush1.msra.mxu0 0.0
  %841 = vmatprep.subr.mxu0 0.0
  %842 = vmatpush1.msra.mxu0 0.0
  %843 = vmatprep.subr.mxu0 0.0
  %844 = vmatpush1.msra.mxu0 %v813
  %845 = vmatprep.subr.mxu0 0.0
  %846 = vmatpush1.msra.mxu0 %v803
  %847 = vmatprep.subr.mxu0 0.0
  %848 = vmatpush2.msra.mxu0 0.0
  %849 = vmatprep.subr.mxu0 0.0
  %850 = vmatpush2.msra.mxu0 0.0
  %851 = vmatprep.subr.mxu0 0.0
  %852 = vmatpush2.msra.mxu0 0.0
  %853 = vmatprep.subr.mxu0 0.0
  %854 = vmatpush2.msra.mxu0 0.0
  %855 = vmatprep.subr.mxu0 0.0
  %856 = vmatpush2.msra.mxu0 0.0
  %857 = vmatprep.subr.mxu0 0.0
  %858 = vmatpush2.msra.mxu0 0.0
  %859 = vmatprep.subr.mxu0 0.0
  %860 = vmatpush2.msra.mxu0 0.0
  %861 = vmatprep.subr.mxu0 0.0
  %862 = vmatpush2.msra.mxu0 0.0
  %863 = vmatprep.subr.mxu0 0.0
  %864 = vmatpush2.msra.mxu0 0.0
  %865 = vmatprep.subr.mxu0 0.0
  %866 = vmatpush2.msra.mxu0 0.0
  %867 = vmatprep.subr.mxu0 0.0
  %868 = vmatpush2.msra.mxu0 0.0
  %869 = vmatprep.subr.mxu0 0.0
  %870 = vmatpush2.msra.mxu0 0.0
  %871 = vmatprep.subr.mxu0 0.0
  %872 = vmatpush2.msra.mxu0 0.0
  %873 = vmatprep.subr.mxu0 0.0
  %874 = vmatpush2.msra.mxu0 0.0
  %875 = vmatprep.subr.mxu0 0.0
  %876 = vmatpush2.msra.mxu0 0.0
  %877 = vmatprep.subr.mxu0 0.0
  %878 = vmatpush2.msra.mxu0 0.0
  %879 = vmatprep.mubr.f32.mxu0 0.0
  %880 = vmatmul.mubr.f32.gmra.mxu0 %v808
  %v881 = vpop.f32.mrf.mxu0
  %v882 = vadd.f32 0.0, %v881
  %v883 = vpop.f32.mrf.mxu0
  %884 = vmatprep.mubr.f32.mxu0 0.0
  %885 = vmatmul.mubr.f32.gmra.mxu0 %v811
  %v886 = vpop.f32.mrf.mxu0
  %v887 = vadd.f32 0.0, %v886
  %v888 = vpop.f32.mrf.mxu0
  %889 = vdwg.mxu0
  %892 = vrot.lane.b32.xlu0 %v882, 16
  %v893 = vpop.permute.xlu0 %892
  %894 = vrot.lane.b32.xlu0 %v887, 16
  %v895 = vpop.permute.xlu0 %894
  %vm898 = vcmask 195712
  %899 = vst.msk [vmem:[#allocation2] sm:$0xff] %vm898, %v893
  %vm900 = vcmask 189568
  %901 = vst.msk [vmem:[#allocation2 + $0x8] sm:$0x3] %vm900, %v895
  %902 = vrot.lane.b32.xlu0 %v264, 104
  %v903 = vpop.permute.xlu0 %902
  %904 = vrot.lane.b32.xlu0 %v267, 104
  %v905 = vpop.permute.xlu0 %904
  %906 = vrot.lane.b32.xlu0 %v264, 72
  %v907 = vpop.permute.xlu0 %906
  %908 = vrot.lane.b32.xlu0 %v267, 72
  %v909 = vpop.permute.xlu0 %908
  %v910 = vsel %vm276, %v903, 0
  %v912 = vsel %vm276, %v905, 0
  %v914 = vsel %vm276, %v907, 0
  %v916 = vsel %vm276, %v909, 0
  %918 = vmatprep.subr.mxu0 0.0
  %919 = vmatpush1.xpose.msra.mxu0 0.0
  %920 = vmatprep.subr.mxu0 0.0
  %921 = vmatpush1.xpose.msra.mxu0 0.0
  %922 = vmatprep.subr.mxu0 0.0
  %923 = vmatpush1.xpose.msra.mxu0 0.0
  %924 = vmatprep.subr.mxu0 0.0
  %925 = vmatpush1.xpose.msra.mxu0 0.0
  %926 = vmatprep.subr.mxu0 0.0
  %927 = vmatpush1.xpose.msra.mxu0 0.0
  %928 = vmatprep.subr.mxu0 0.0
  %929 = vmatpush1.xpose.msra.mxu0 0.0
  %930 = vmatprep.subr.mxu0 0.0
  %931 = vmatpush1.xpose.msra.mxu0 0.0
  %932 = vmatprep.subr.mxu0 0.0
  %933 = vmatpush1.xpose.msra.mxu0 0.0
  %934 = vmatprep.subr.mxu0 0.0
  %935 = vmatpush1.xpose.msra.mxu0 0.0
  %936 = vmatprep.subr.mxu0 0.0
  %937 = vmatpush1.xpose.msra.mxu0 0.0
  %938 = vmatprep.subr.mxu0 0.0
  %939 = vmatpush1.xpose.msra.mxu0 0.0
  %940 = vmatprep.subr.mxu0 0.0
  %941 = vmatpush1.xpose.msra.mxu0 0.0
  %942 = vmatprep.subr.mxu0 0.0
  %943 = vmatpush1.xpose.msra.mxu0 0.0
  %944 = vmatprep.subr.mxu0 0.0
  %945 = vmatpush1.xpose.msra.mxu0 0.0
  %946 = vmatprep.subr.mxu0 0.0
  %947 = vmatpush1.xpose.msra.mxu0 %v916
  %948 = vmatprep.subr.mxu0 0.0
  %949 = vmatpush1.xpose.msra.mxu0 %v914
  %950 = vmatprep.subr.mxu0 0.0
  %951 = vmatpush2.xpose.msra.mxu0 0.0
  %952 = vmatprep.subr.mxu0 0.0
  %953 = vmatpush2.xpose.msra.mxu0 0.0
  %954 = vmatprep.subr.mxu0 0.0
  %955 = vmatpush2.xpose.msra.mxu0 0.0
  %956 = vmatprep.subr.mxu0 0.0
  %957 = vmatpush2.xpose.msra.mxu0 0.0
  %958 = vmatprep.subr.mxu0 0.0
  %959 = vmatpush2.xpose.msra.mxu0 0.0
  %960 = vmatprep.subr.mxu0 0.0
  %961 = vmatpush2.xpose.msra.mxu0 0.0
  %962 = vmatprep.subr.mxu0 0.0
  %963 = vmatpush2.xpose.msra.mxu0 0.0
  %964 = vmatprep.subr.mxu0 0.0
  %965 = vmatpush2.xpose.msra.mxu0 0.0
  %966 = vmatprep.subr.mxu0 0.0
  %967 = vmatpush2.xpose.msra.mxu0 0.0
  %968 = vmatprep.subr.mxu0 0.0
  %969 = vmatpush2.xpose.msra.mxu0 0.0
  %970 = vmatprep.subr.mxu0 0.0
  %971 = vmatpush2.xpose.msra.mxu0 0.0
  %972 = vmatprep.subr.mxu0 0.0
  %973 = vmatpush2.xpose.msra.mxu0 0.0
  %974 = vmatprep.subr.mxu0 0.0
  %975 = vmatpush2.xpose.msra.mxu0 0.0
  %976 = vmatprep.subr.mxu0 0.0
  %977 = vmatpush2.xpose.msra.mxu0 0.0
  %978 = vmatprep.subr.mxu0 0.0
  %979 = vmatpush2.xpose.msra.mxu0 0.0
  %980 = vmatprep.subr.mxu0 0.0
  %981 = vmatpush2.xpose.msra.mxu0 0.0
  %982 = vmatprep.mubr.f32.mxu0 0.0
  %983 = vmatmul.mubr.f32.gmra.mxu0 %v910
  %v984 = vpop.f32.mrf.mxu0
  %v985 = vadd.f32 %v105, %v984
  %v986 = vpop.f32.mrf.mxu0
  %987 = vmatprep.mubr.f32.mxu0 0.0
  %988 = vmatmul.mubr.f32.gmra.mxu0 %v912
  %v989 = vpop.f32.mrf.mxu0
  %v990 = vadd.f32 %v106, %v989
  %v991 = vpop.f32.mrf.mxu0
  %992 = vdwg.mxu0
  %v993 = vsel %vm360, %v985, -inf
  %994 = vmax.xlane.f32.xlu0 %v993
  %v995 = vpop.xlane.xlu0 %994
  %v996 = vsel %vm364, %v990, -inf
  %997 = vmax.xlane.f32.xlu0 %v996
  %v998 = vpop.xlane.xlu0 %997
  %v999 = vsub.f32 %v985, %v995
  %v1000 = vsub.f32 %v990, %v998
  %v1001 = vmul.f32 %v999, 1.442695
  %v1002 = vpow.pop %v1001
  %v1003 = vmul.f32 %v1000, 1.442695
  %v1004 = vpow.pop %v1003
  %v1005 = vsel %vm360, %v1002, 0.0
  %1006 = vadd.xlane.f32.xlu0 %v1005
  %v1007 = vpop.xlane.xlu0 %1006
  %v1008 = vsel %vm364, %v1004, 0.0
  %1009 = vadd.xlane.f32.xlu0 %v1008
  %v1010 = vpop.xlane.xlu0 %1009
  %v1011 = vrcp.pop %v1007
  %v1012 = vrcp.pop %v1010
  %v1013 = vmul.f32 %v1002, %v1011
  %v1014 = vmul.f32 %v1004, %v1012
  %1015 = vrot.lane.b32.xlu0 %v264, 40
  %v1016 = vpop.permute.xlu0 %1015
  %1017 = vrot.lane.b32.xlu0 %v267, 40
  %v1018 = vpop.permute.xlu0 %1017
  %v1021 = vsel %vm360, %v1013, 0
  %v1024 = vsel %vm360, %v1014, 0
  %v1026 = vsel %vm395, %v1018, 0
  %1028 = vmatprep.subr.mxu0 0.0
  %1029 = vmatpush1.msra.mxu0 0.0
  %1030 = vmatprep.subr.mxu0 0.0
  %1031 = vmatpush1.msra.mxu0 0.0
  %1032 = vmatprep.subr.mxu0 0.0
  %1033 = vmatpush1.msra.mxu0 0.0
  %1034 = vmatprep.subr.mxu0 0.0
  %1035 = vmatpush1.msra.mxu0 0.0
  %1036 = vmatprep.subr.mxu0 0.0
  %1037 = vmatpush1.msra.mxu0 0.0
  %1038 = vmatprep.subr.mxu0 0.0
  %1039 = vmatpush1.msra.mxu0 0.0
  %1040 = vmatprep.subr.mxu0 0.0
  %1041 = vmatpush1.msra.mxu0 0.0
  %1042 = vmatprep.subr.mxu0 0.0
  %1043 = vmatpush1.msra.mxu0 0.0
  %1044 = vmatprep.subr.mxu0 0.0
  %1045 = vmatpush1.msra.mxu0 0.0
  %1046 = vmatprep.subr.mxu0 0.0
  %1047 = vmatpush1.msra.mxu0 0.0
  %1048 = vmatprep.subr.mxu0 0.0
  %1049 = vmatpush1.msra.mxu0 0.0
  %1050 = vmatprep.subr.mxu0 0.0
  %1051 = vmatpush1.msra.mxu0 0.0
  %1052 = vmatprep.subr.mxu0 0.0
  %1053 = vmatpush1.msra.mxu0 0.0
  %1054 = vmatprep.subr.mxu0 0.0
  %1055 = vmatpush1.msra.mxu0 0.0
  %1056 = vmatprep.subr.mxu0 0.0
  %1057 = vmatpush1.msra.mxu0 %v1026
  %1058 = vmatprep.subr.mxu0 0.0
  %1059 = vmatpush1.msra.mxu0 %v1016
  %1060 = vmatprep.subr.mxu0 0.0
  %1061 = vmatpush2.msra.mxu0 0.0
  %1062 = vmatprep.subr.mxu0 0.0
  %1063 = vmatpush2.msra.mxu0 0.0
  %1064 = vmatprep.subr.mxu0 0.0
  %1065 = vmatpush2.msra.mxu0 0.0
  %1066 = vmatprep.subr.mxu0 0.0
  %1067 = vmatpush2.msra.mxu0 0.0
  %1068 = vmatprep.subr.mxu0 0.0
  %1069 = vmatpush2.msra.mxu0 0.0
  %1070 = vmatprep.subr.mxu0 0.0
  %1071 = vmatpush2.msra.mxu0 0.0
  %1072 = vmatprep.subr.mxu0 0.0
  %1073 = vmatpush2.msra.mxu0 0.0
  %1074 = vmatprep.subr.mxu0 0.0
  %1075 = vmatpush2.msra.mxu0 0.0
  %1076 = vmatprep.subr.mxu0 0.0
  %1077 = vmatpush2.msra.mxu0 0.0
  %1078 = vmatprep.subr.mxu0 0.0
  %1079 = vmatpush2.msra.mxu0 0.0
  %1080 = vmatprep.subr.mxu0 0.0
  %1081 = vmatpush2.msra.mxu0 0.0
  %1082 = vmatprep.subr.mxu0 0.0
  %1083 = vmatpush2.msra.mxu0 0.0
  %1084 = vmatprep.subr.mxu0 0.0
  %1085 = vmatpush2.msra.mxu0 0.0
  %1086 = vmatprep.subr.mxu0 0.0
  %1087 = vmatpush2.msra.mxu0 0.0
  %1088 = vmatprep.subr.mxu0 0.0
  %1089 = vmatpush2.msra.mxu0 0.0
  %1090 = vmatprep.subr.mxu0 0.0
  %1091 = vmatpush2.msra.mxu0 0.0
  %1092 = vmatprep.mubr.f32.mxu0 0.0
  %1093 = vmatmul.mubr.f32.gmra.mxu0 %v1021
  %v1094 = vpop.f32.mrf.mxu0
  %v1095 = vadd.f32 0.0, %v1094
  %v1096 = vpop.f32.mrf.mxu0
  %1097 = vmatprep.mubr.f32.mxu0 0.0
  %1098 = vmatmul.mubr.f32.gmra.mxu0 %v1024
  %v1099 = vpop.f32.mrf.mxu0
  %v1100 = vadd.f32 0.0, %v1099
  %v1101 = vpop.f32.mrf.mxu0
  %1102 = vdwg.mxu0
  %1105 = vrot.lane.b32.xlu0 %v1095, 24
  %v1106 = vpop.permute.xlu0 %1105
  %1107 = vrot.lane.b32.xlu0 %v1100, 24
  %v1108 = vpop.permute.xlu0 %1107
  %vm1111 = vcmask 261312
  %1112 = vst.msk [vmem:[#allocation2] sm:$0xff] %vm1111, %v1106
  %vm1113 = vcmask 255168
  %1114 = vst.msk [vmem:[#allocation2 + $0x8] sm:$0x3] %vm1113, %v1108
  %v1115 = vld [vmem:[#allocation2] sm:$0xff]
  %v1116 = vld [vmem:[#allocation2 + $0x8] sm:$0x3]
  %v1117 = vpack.c.bf16 %v1116, %v1115
  %v1118 = vld [vmem:[%s3] sm:$0xf]
  %v1119 = vld [vmem:[%s3 + $0x4] sm:$0xf]
  %v1120 = vld [vmem:[%s3 + $0x8] sm:$0xf]
  %v1121 = vld [vmem:[%s3 + $0xc] sm:$0xf]
  %v1122 = vlaneseq
  %v1123 = vshrl.u32 %v1122, 7
  %v1124 = vsub.s32 3, %v1123
  %v1125 = vrot.slane %v80, %v1124
  %v1130 = vunpack.c.l.b16 %v1118
  %v1131 = vunpack.c.l.b16 %v1119
  %v1132 = vunpack.c.l.b16 %v1120
  %v1133 = vunpack.c.l.b16 %v1121
  %v1134 = vpack.c.b16 %v1131, %v1130
  %v1135 = vpack.c.b16 %v1133, %v1132
  %v1139 = vsel %vm225, %v1117, 0
  %1141 = vmatprep.subr.bf16.mxu0 0
  %1142 = vmatpush1.bf16.msra.mxu0 0
  %1143 = vmatprep.subr.bf16.mxu0 0
  %1144 = vmatpush1.bf16.msra.mxu0 0
  %1145 = vmatprep.subr.bf16.mxu0 0
  %1146 = vmatpush1.bf16.msra.mxu0 0
  %1147 = vmatprep.subr.bf16.mxu0 0
  %1148 = vmatpush1.bf16.msra.mxu0 0
  %1149 = vmatprep.subr.bf16.mxu0 0
  %1150 = vmatpush1.bf16.msra.mxu0 0
  %1151 = vmatprep.subr.bf16.mxu0 0
  %1152 = vmatpush1.bf16.msra.mxu0 0
  %1153 = vmatprep.subr.bf16.mxu0 0
  %1154 = vmatpush1.bf16.msra.mxu0 %v1135
  %1155 = vmatprep.subr.bf16.mxu0 0
  %1156 = vmatpush1.bf16.msra.mxu0 %v1134
  %1157 = vmatprep.subr.bf16.mxu0 0
  %1158 = vmatpush2.bf16.msra.mxu0 0
  %1159 = vmatprep.subr.bf16.mxu0 0
  %1160 = vmatpush2.bf16.msra.mxu0 0
  %1161 = vmatprep.subr.bf16.mxu0 0
  %1162 = vmatpush2.bf16.msra.mxu0 0
  %1163 = vmatprep.subr.bf16.mxu0 0
  %1164 = vmatpush2.bf16.msra.mxu0 0
  %1165 = vmatprep.subr.bf16.mxu0 0
  %1166 = vmatpush2.bf16.msra.mxu0 0
  %1167 = vmatprep.subr.bf16.mxu0 0
  %1168 = vmatpush2.bf16.msra.mxu0 0
  %1169 = vmatprep.subr.bf16.mxu0 0
  %1170 = vmatpush2.bf16.msra.mxu0 0
  %1171 = vmatprep.subr.bf16.mxu0 0
  %1172 = vmatpush2.bf16.msra.mxu0 0
  %1173 = vmatprep.mubr.bf16.mxu0 0
  %1174 = vmatmul.mubr.bf16.gmra.mxu0 %v1139
  %v1175 = vpop.f32.mrf.mxu0
  %v1176 = vadd.f32 %v1125, %v1175
  %v1177 = vpop.f32.mrf.mxu0
  %v1178 = vpop.f32.mrf.mxu0
  %v1179 = vadd.f32 %v1125, %v1178
  %v1180 = vpop.f32.mrf.mxu0
  %1181 = vdwg.mxu0
  %v1182 = vadd.f32 %v196, %v1176
  %v1183 = vadd.f32 %v201, %v1179
  %v1184 = vsel %vm225, %v1182, 0.0
  %1185 = vadd.xlane.f32.xlu0 %v1184
  %v1186 = vpop.xlane.xlu0 %1185
  %vm1187 = vcmask 254976
  %v1188 = vsel %vm1187, %v1183, 0.0
  %1189 = vadd.xlane.f32.xlu0 %v1188
  %v1190 = vpop.xlane.xlu0 %1189
  %v1191 = vrcp.pop 32.0
  %v1192 = vmul.f32 %v1186, %v1191
  %v1193 = vmul.f32 %v1190, %v1191
  %v1194 = vsub.f32 %v1182, %v1192
  %v1195 = vsub.f32 %v1183, %v1193
  %v1196 = vmul.f32 %v1194, %v1194
  %v1197 = vmul.f32 %v1195, %v1195
  %v1198 = vsel %vm225, %v1196, 0.0
  %1199 = vadd.xlane.f32.xlu0 %v1198
  %v1200 = vpop.xlane.xlu0 %1199
  %v1201 = vsel %vm1187, %v1197, 0.0
  %1202 = vadd.xlane.f32.xlu0 %v1201
  %v1203 = vpop.xlane.xlu0 %1202
  %v1204 = vmul.f32 %v1200, %v1191
  %v1205 = vmul.f32 %v1203, %v1191
  %v1206 = vadd.f32 %v1204, 1e-05
  %v1207 = vadd.f32 %v1205, 1e-05
  %v1208 = vrsqrt.pop %v1206
  %v1209 = vrsqrt.pop %v1207
  %v1210 = vmul.f32 %v1194, %v1208
  %v1211 = vmul.f32 %v1195, %v1209
  %v1212 = vlaneseq
  %v1213 = vshrl.u32 %v1212, 7
  %v1214 = vsub.s32 4, %v1213
  %v1215 = vrot.slane %v80, %v1214
  %v1216 = vmul.f32 %v1210, %v1215
  %v1217 = vmul.f32 %v1211, %v1215
  %v1218 = vlaneseq
  %v1219 = vshrl.u32 %v1218, 7
  %v1220 = vsub.s32 5, %v1219
  %v1221 = vrot.slane %v80, %v1220
  %v1222 = vadd.f32 %v1216, %v1221
  %v1223 = vadd.f32 %v1217, %v1221
  %s1224 = smul.u32 4, 4
  %s1225 = smul.u32 %s1224, 16
  %s1226 = sshll.u32 %s1225, 4
  %1227 = dma.done [#allocation5], %s1226
  %s1228 = smul.u32 4, 64
  %s1229 = smul.u32 %s1228, 1
  %s1230 = sshll.u32 %s1229, 4
  %1231 = dma.done %s40, %s1230
  %v1232 = vpack.c.bf16 %v1223, %v1222
  %v1233 = vld [vmem:[#allocation3] sm:$0xff]
  %v1234 = vld [vmem:[#allocation3 + $0x8] sm:$0xff]
  %v1235 = vld [vmem:[#allocation3 + $0x10] sm:$0xff]
  %v1236 = vld [vmem:[#allocation3 + $0x18] sm:$0xff]
  %v1237 = vld [vmem:[#allocation3 + $0x20] sm:$0xff]
  %v1238 = vld [vmem:[#allocation3 + $0x28] sm:$0xff]
  %v1239 = vld [vmem:[#allocation3 + $0x30] sm:$0xff]
  %v1240 = vld [vmem:[#allocation3 + $0x38] sm:$0xff]
  %v1241 = vld [vmem:[#allocation3 + $0x40] sm:$0xff]
  %v1242 = vld [vmem:[#allocation3 + $0x48] sm:$0xff]
  %v1243 = vld [vmem:[#allocation3 + $0x50] sm:$0xff]
  %v1244 = vld [vmem:[#allocation3 + $0x58] sm:$0xff]
  %v1245 = vld [vmem:[#allocation3 + $0x60] sm:$0xff]
  %v1246 = vld [vmem:[#allocation3 + $0x68] sm:$0xff]
  %v1247 = vld [vmem:[#allocation3 + $0x70] sm:$0xff]
  %v1248 = vld [vmem:[#allocation3 + $0x78] sm:$0xff]
  %v1249 = vld [vmem:[#allocation3 + $0x80] sm:$0xff]
  %v1250 = vld [vmem:[#allocation3 + $0x88] sm:$0xff]
  %v1251 = vld [vmem:[#allocation3 + $0x90] sm:$0xff]
  %v1252 = vld [vmem:[#allocation3 + $0x98] sm:$0xff]
  %v1253 = vld [vmem:[#allocation3 + $0xa0] sm:$0xff]
  %v1254 = vld [vmem:[#allocation3 + $0xa8] sm:$0xff]
  %v1255 = vld [vmem:[#allocation3 + $0xb0] sm:$0xff]
  %v1256 = vld [vmem:[#allocation3 + $0xb8] sm:$0xff]
  %v1257 = vld [vmem:[#allocation3 + $0xc0] sm:$0xff]
  %v1258 = vld [vmem:[#allocation3 + $0xc8] sm:$0xff]
  %v1259 = vld [vmem:[#allocation3 + $0xd0] sm:$0xff]
  %v1260 = vld [vmem:[#allocation3 + $0xd8] sm:$0xff]
  %v1261 = vld [vmem:[#allocation3 + $0xe0] sm:$0xff]
  %v1262 = vld [vmem:[#allocation3 + $0xe8] sm:$0xff]
  %v1263 = vld [vmem:[#allocation3 + $0xf0] sm:$0xff]
  %v1264 = vld [vmem:[#allocation3 + $0xf8] sm:$0xff]
  %v1269 = vlaneseq
  %v1270 = vshrl.u32 %v1269, 7
  %v1271 = vsub.s32 0, %v1270
  %v1272 = vrot.slane %v82, %v1271
  %v1273 = vlaneseq
  %v1274 = vshrl.u32 %v1273, 7
  %v1275 = vsub.s32 2, %v1274
  %v1276 = vrot.slane %v82, %v1275
  %v1277 = vlaneseq
  %v1278 = vshrl.u32 %v1277, 7
  %v1279 = vsub.s32 4, %v1278
  %v1280 = vrot.slane %v82, %v1279
  %v1281 = vlaneseq
  %v1282 = vshrl.u32 %v1281, 7
  %v1283 = vsub.s32 6, %v1282
  %v1284 = vrot.slane %v82, %v1283
  %v1285 = vlaneseq
  %v1286 = vshrl.u32 %v1285, 7
  %v1287 = vsub.s32 0, %v1286
  %v1288 = vrot.slane %v83, %v1287
  %v1289 = vlaneseq
  %v1290 = vshrl.u32 %v1289, 7
  %v1291 = vsub.s32 2, %v1290
  %v1292 = vrot.slane %v83, %v1291
  %v1293 = vlaneseq
  %v1294 = vshrl.u32 %v1293, 7
  %v1295 = vsub.s32 4, %v1294
  %v1296 = vrot.slane %v83, %v1295
  %v1297 = vlaneseq
  %v1298 = vshrl.u32 %v1297, 7
  %v1299 = vsub.s32 6, %v1298
  %v1300 = vrot.slane %v83, %v1299
  %v1301 = vlaneseq
  %v1302 = vshrl.u32 %v1301, 7
  %v1303 = vsub.s32 0, %v1302
  %v1304 = vrot.slane %v84, %v1303
  %v1305 = vlaneseq
  %v1306 = vshrl.u32 %v1305, 7
  %v1307 = vsub.s32 2, %v1306
  %v1308 = vrot.slane %v84, %v1307
  %v1309 = vlaneseq
  %v1310 = vshrl.u32 %v1309, 7
  %v1311 = vsub.s32 4, %v1310
  %v1312 = vrot.slane %v84, %v1311
  %v1313 = vlaneseq
  %v1314 = vshrl.u32 %v1313, 7
  %v1315 = vsub.s32 6, %v1314
  %v1316 = vrot.slane %v84, %v1315
  %v1317 = vlaneseq
  %v1318 = vshrl.u32 %v1317, 7
  %v1319 = vsub.s32 0, %v1318
  %v1320 = vrot.slane %v85, %v1319
  %v1321 = vlaneseq
  %v1322 = vshrl.u32 %v1321, 7
  %v1323 = vsub.s32 2, %v1322
  %v1324 = vrot.slane %v85, %v1323
  %v1325 = vlaneseq
  %v1326 = vshrl.u32 %v1325, 7
  %v1327 = vsub.s32 4, %v1326
  %v1328 = vrot.slane %v85, %v1327
  %v1329 = vlaneseq
  %v1330 = vshrl.u32 %v1329, 7
  %v1331 = vsub.s32 6, %v1330
  %v1332 = vrot.slane %v85, %v1331
  %v1349 = vlaneseq
  %v1350 = vshrl.u32 %v1349, 7
  %v1351 = vsub.s32 0, %v1350
  %v1352 = vrot.slane %v1272, %v1351
  %v1353 = vlaneseq
  %v1354 = vshrl.u32 %v1353, 7
  %v1355 = vsub.s32 0, %v1354
  %v1356 = vrot.slane %v1276, %v1355
  %v1357 = vlaneseq
  %v1358 = vshrl.u32 %v1357, 7
  %v1359 = vsub.s32 0, %v1358
  %v1360 = vrot.slane %v1280, %v1359
  %v1361 = vlaneseq
  %v1362 = vshrl.u32 %v1361, 7
  %v1363 = vsub.s32 0, %v1362
  %v1364 = vrot.slane %v1284, %v1363
  %v1365 = vlaneseq
  %v1366 = vshrl.u32 %v1365, 7
  %v1367 = vsub.s32 0, %v1366
  %v1368 = vrot.slane %v1288, %v1367
  %v1369 = vlaneseq
  %v1370 = vshrl.u32 %v1369, 7
  %v1371 = vsub.s32 0, %v1370
  %v1372 = vrot.slane %v1292, %v1371
  %v1373 = vlaneseq
  %v1374 = vshrl.u32 %v1373, 7
  %v1375 = vsub.s32 0, %v1374
  %v1376 = vrot.slane %v1296, %v1375
  %v1377 = vlaneseq
  %v1378 = vshrl.u32 %v1377, 7
  %v1379 = vsub.s32 0, %v1378
  %v1380 = vrot.slane %v1300, %v1379
  %v1381 = vlaneseq
  %v1382 = vshrl.u32 %v1381, 7
  %v1383 = vsub.s32 0, %v1382
  %v1384 = vrot.slane %v1304, %v1383
  %v1385 = vlaneseq
  %v1386 = vshrl.u32 %v1385, 7
  %v1387 = vsub.s32 0, %v1386
  %v1388 = vrot.slane %v1308, %v1387
  %v1389 = vlaneseq
  %v1390 = vshrl.u32 %v1389, 7
  %v1391 = vsub.s32 0, %v1390
  %v1392 = vrot.slane %v1312, %v1391
  %v1393 = vlaneseq
  %v1394 = vshrl.u32 %v1393, 7
  %v1395 = vsub.s32 0, %v1394
  %v1396 = vrot.slane %v1316, %v1395
  %v1397 = vlaneseq
  %v1398 = vshrl.u32 %v1397, 7
  %v1399 = vsub.s32 0, %v1398
  %v1400 = vrot.slane %v1320, %v1399
  %v1401 = vlaneseq
  %v1402 = vshrl.u32 %v1401, 7
  %v1403 = vsub.s32 0, %v1402
  %v1404 = vrot.slane %v1324, %v1403
  %v1405 = vlaneseq
  %v1406 = vshrl.u32 %v1405, 7
  %v1407 = vsub.s32 0, %v1406
  %v1408 = vrot.slane %v1328, %v1407
  %v1409 = vlaneseq
  %v1410 = vshrl.u32 %v1409, 7
  %v1411 = vsub.s32 0, %v1410
  %v1412 = vrot.slane %v1332, %v1411
  %v1445 = vunpack.c.l.b16 %v1233
  %v1446 = vunpack.c.h.b16 %v1233
  %v1447 = vunpack.c.l.b16 %v1234
  %v1448 = vunpack.c.h.b16 %v1234
  %v1449 = vunpack.c.l.b16 %v1235
  %v1450 = vunpack.c.h.b16 %v1235
  %v1451 = vunpack.c.l.b16 %v1236
  %v1452 = vunpack.c.h.b16 %v1236
  %v1453 = vunpack.c.l.b16 %v1237
  %v1454 = vunpack.c.h.b16 %v1237
  %v1455 = vunpack.c.l.b16 %v1238
  %v1456 = vunpack.c.h.b16 %v1238
  %v1457 = vunpack.c.l.b16 %v1239
  %v1458 = vunpack.c.h.b16 %v1239
  %v1459 = vunpack.c.l.b16 %v1240
  %v1460 = vunpack.c.h.b16 %v1240
  %v1461 = vunpack.c.l.b16 %v1241
  %v1462 = vunpack.c.h.b16 %v1241
  %v1463 = vunpack.c.l.b16 %v1242
  %v1464 = vunpack.c.h.b16 %v1242
  %v1465 = vunpack.c.l.b16 %v1243
  %v1466 = vunpack.c.h.b16 %v1243
  %v1467 = vunpack.c.l.b16 %v1244
  %v1468 = vunpack.c.h.b16 %v1244
  %v1469 = vunpack.c.l.b16 %v1245
  %v1470 = vunpack.c.h.b16 %v1245
  %v1471 = vunpack.c.l.b16 %v1246
  %v1472 = vunpack.c.h.b16 %v1246
  %v1473 = vunpack.c.l.b16 %v1247
  %v1474 = vunpack.c.h.b16 %v1247
  %v1475 = vunpack.c.l.b16 %v1248
  %v1476 = vunpack.c.h.b16 %v1248
  %v1477 = vunpack.c.l.b16 %v1249
  %v1478 = vunpack.c.h.b16 %v1249
  %v1479 = vunpack.c.l.b16 %v1250
  %v1480 = vunpack.c.h.b16 %v1250
  %v1481 = vunpack.c.l.b16 %v1251
  %v1482 = vunpack.c.h.b16 %v1251
  %v1483 = vunpack.c.l.b16 %v1252
  %v1484 = vunpack.c.h.b16 %v1252
  %v1485 = vunpack.c.l.b16 %v1253
  %v1486 = vunpack.c.h.b16 %v1253
  %v1487 = vunpack.c.l.b16 %v1254
  %v1488 = vunpack.c.h.b16 %v1254
  %v1489 = vunpack.c.l.b16 %v1255
  %v1490 = vunpack.c.h.b16 %v1255
  %v1491 = vunpack.c.l.b16 %v1256
  %v1492 = vunpack.c.h.b16 %v1256
  %v1493 = vunpack.c.l.b16 %v1257
  %v1494 = vunpack.c.h.b16 %v1257
  %v1495 = vunpack.c.l.b16 %v1258
  %v1496 = vunpack.c.h.b16 %v1258
  %v1497 = vunpack.c.l.b16 %v1259
  %v1498 = vunpack.c.h.b16 %v1259
  %v1499 = vunpack.c.l.b16 %v1260
  %v1500 = vunpack.c.h.b16 %v1260
  %v1501 = vunpack.c.l.b16 %v1261
  %v1502 = vunpack.c.h.b16 %v1261
  %v1503 = vunpack.c.l.b16 %v1262
  %v1504 = vunpack.c.h.b16 %v1262
  %v1505 = vunpack.c.l.b16 %v1263
  %v1506 = vunpack.c.h.b16 %v1263
  %v1507 = vunpack.c.l.b16 %v1264
  %v1508 = vunpack.c.h.b16 %v1264
  %v1509 = vpack.c.b16 %v1461, %v1445
  %v1510 = vpack.c.b16 %v1462, %v1446
  %v1511 = vpack.c.b16 %v1463, %v1447
  %v1512 = vpack.c.b16 %v1464, %v1448
  %v1513 = vpack.c.b16 %v1465, %v1449
  %v1514 = vpack.c.b16 %v1466, %v1450
  %v1515 = vpack.c.b16 %v1467, %v1451
  %v1516 = vpack.c.b16 %v1468, %v1452
  %v1517 = vpack.c.b16 %v1469, %v1453
  %v1518 = vpack.c.b16 %v1470, %v1454
  %v1519 = vpack.c.b16 %v1471, %v1455
  %v1520 = vpack.c.b16 %v1472, %v1456
  %v1521 = vpack.c.b16 %v1473, %v1457
  %v1522 = vpack.c.b16 %v1474, %v1458
  %v1523 = vpack.c.b16 %v1475, %v1459
  %v1524 = vpack.c.b16 %v1476, %v1460
  %v1525 = vpack.c.b16 %v1493, %v1477
  %v1526 = vpack.c.b16 %v1494, %v1478
  %v1527 = vpack.c.b16 %v1495, %v1479
  %v1528 = vpack.c.b16 %v1496, %v1480
  %v1529 = vpack.c.b16 %v1497, %v1481
  %v1530 = vpack.c.b16 %v1498, %v1482
  %v1531 = vpack.c.b16 %v1499, %v1483
  %v1532 = vpack.c.b16 %v1500, %v1484
  %v1533 = vpack.c.b16 %v1501, %v1485
  %v1534 = vpack.c.b16 %v1502, %v1486
  %v1535 = vpack.c.b16 %v1503, %v1487
  %v1536 = vpack.c.b16 %v1504, %v1488
  %v1537 = vpack.c.b16 %v1505, %v1489
  %v1538 = vpack.c.b16 %v1506, %v1490
  %v1539 = vpack.c.b16 %v1507, %v1491
  %v1540 = vpack.c.b16 %v1508, %v1492
  %v1574 = vsel %vm225, %v1232, 0
  %1576 = vmatprep.subr.bf16.mxu0 0
  %1577 = vmatpush1.bf16.msra.mxu0 0
  %1578 = vmatprep.subr.bf16.mxu0 0
  %1579 = vmatpush1.bf16.msra.mxu0 0
  %1580 = vmatprep.subr.bf16.mxu0 0
  %1581 = vmatpush1.bf16.msra.mxu0 0
  %1582 = vmatprep.subr.bf16.mxu0 0
  %1583 = vmatpush1.bf16.msra.mxu0 0
  %1584 = vmatprep.subr.bf16.mxu0 0
  %1585 = vmatpush1.bf16.msra.mxu0 0
  %1586 = vmatprep.subr.bf16.mxu0 0
  %1587 = vmatpush1.bf16.msra.mxu0 0
  %1588 = vmatprep.subr.bf16.mxu0 %v1526
  %1589 = vmatpush1.bf16.msra.mxu0 %v1525
  %1590 = vmatprep.subr.bf16.mxu0 %v1510
  %1591 = vmatpush1.bf16.msra.mxu0 %v1509
  %1592 = vmatprep.subr.bf16.mxu0 0
  %1593 = vmatpush2.bf16.msra.mxu0 0
  %1594 = vmatprep.subr.bf16.mxu0 0
  %1595 = vmatpush2.bf16.msra.mxu0 0
  %1596 = vmatprep.subr.bf16.mxu0 0
  %1597 = vmatpush2.bf16.msra.mxu0 0
  %1598 = vmatprep.subr.bf16.mxu0 0
  %1599 = vmatpush2.bf16.msra.mxu0 0
  %1600 = vmatprep.subr.bf16.mxu0 0
  %1601 = vmatpush2.bf16.msra.mxu0 0
  %1602 = vmatprep.subr.bf16.mxu0 0
  %1603 = vmatpush2.bf16.msra.mxu0 0
  %1604 = vmatprep.subr.bf16.mxu0 0
  %1605 = vmatpush2.bf16.msra.mxu0 0
  %1606 = vmatprep.subr.bf16.mxu0 0
  %1607 = vmatpush2.bf16.msra.mxu0 0
  %1608 = vmatprep.mubr.bf16.mxu0 0
  %1609 = vmatmul.mubr.bf16.gmra.mxu0 %v1574
  %v1610 = vpop.f32.mrf.mxu0
  %v1611 = vadd.f32 %v1352, %v1610
  %v1612 = vpop.f32.mrf.mxu0
  %v1613 = vadd.f32 %v1356, %v1612
  %v1614 = vpop.f32.mrf.mxu0
  %v1615 = vadd.f32 %v1352, %v1614
  %v1616 = vpop.f32.mrf.mxu0
  %v1617 = vadd.f32 %v1356, %v1616
  %1618 = vdwg.mxu0
  %1619 = vmatprep.subr.bf16.mxu0 0
  %1620 = vmatpush1.bf16.msra.mxu0 0
  %1621 = vmatprep.subr.bf16.mxu0 0
  %1622 = vmatpush1.bf16.msra.mxu0 0
  %1623 = vmatprep.subr.bf16.mxu0 0
  %1624 = vmatpush1.bf16.msra.mxu0 0
  %1625 = vmatprep.subr.bf16.mxu0 0
  %1626 = vmatpush1.bf16.msra.mxu0 0
  %1627 = vmatprep.subr.bf16.mxu0 0
  %1628 = vmatpush1.bf16.msra.mxu0 0
  %1629 = vmatprep.subr.bf16.mxu0 0
  %1630 = vmatpush1.bf16.msra.mxu0 0
  %1631 = vmatprep.subr.bf16.mxu0 %v1528
  %1632 = vmatpush1.bf16.msra.mxu0 %v1527
  %1633 = vmatprep.subr.bf16.mxu0 %v1512
  %1634 = vmatpush1.bf16.msra.mxu0 %v1511
  %1635 = vmatprep.subr.bf16.mxu0 0
  %1636 = vmatpush2.bf16.msra.mxu0 0
  %1637 = vmatprep.subr.bf16.mxu0 0
  %1638 = vmatpush2.bf16.msra.mxu0 0
  %1639 = vmatprep.subr.bf16.mxu0 0
  %1640 = vmatpush2.bf16.msra.mxu0 0
  %1641 = vmatprep.subr.bf16.mxu0 0
  %1642 = vmatpush2.bf16.msra.mxu0 0
  %1643 = vmatprep.subr.bf16.mxu0 0
  %1644 = vmatpush2.bf16.msra.mxu0 0
  %1645 = vmatprep.subr.bf16.mxu0 0
  %1646 = vmatpush2.bf16.msra.mxu0 0
  %1647 = vmatprep.subr.bf16.mxu0 0
  %1648 = vmatpush2.bf16.msra.mxu0 0
  %1649 = vmatprep.subr.bf16.mxu0 0
  %1650 = vmatpush2.bf16.msra.mxu0 0
  %1651 = vmatprep.mubr.bf16.mxu0 0
  %1652 = vmatmul.mubr.bf16.gmra.mxu0 %v1574
  %v1653 = vpop.f32.mrf.mxu0
  %v1654 = vadd.f32 %v1360, %v1653
  %v1655 = vpop.f32.mrf.mxu0
  %v1656 = vadd.f32 %v1364, %v1655
  %v1657 = vpop.f32.mrf.mxu0
  %v1658 = vadd.f32 %v1360, %v1657
  %v1659 = vpop.f32.mrf.mxu0
  %v1660 = vadd.f32 %v1364, %v1659
  %1661 = vdwg.mxu0
  %1662 = vmatprep.subr.bf16.mxu0 0
  %1663 = vmatpush1.bf16.msra.mxu0 0
  %1664 = vmatprep.subr.bf16.mxu0 0
  %1665 = vmatpush1.bf16.msra.mxu0 0
  %1666 = vmatprep.subr.bf16.mxu0 0
  %1667 = vmatpush1.bf16.msra.mxu0 0
  %1668 = vmatprep.subr.bf16.mxu0 0
  %1669 = vmatpush1.bf16.msra.mxu0 0
  %1670 = vmatprep.subr.bf16.mxu0 0
  %1671 = vmatpush1.bf16.msra.mxu0 0
  %1672 = vmatprep.subr.bf16.mxu0 0
  %1673 = vmatpush1.bf16.msra.mxu0 0
  %1674 = vmatprep.subr.bf16.mxu0 %v1530
  %1675 = vmatpush1.bf16.msra.mxu0 %v1529
  %1676 = vmatprep.subr.bf16.mxu0 %v1514
  %1677 = vmatpush1.bf16.msra.mxu0 %v1513
  %1678 = vmatprep.subr.bf16.mxu0 0
  %1679 = vmatpush2.bf16.msra.mxu0 0
  %1680 = vmatprep.subr.bf16.mxu0 0
  %1681 = vmatpush2.bf16.msra.mxu0 0
  %1682 = vmatprep.subr.bf16.mxu0 0
  %1683 = vmatpush2.bf16.msra.mxu0 0
  %1684 = vmatprep.subr.bf16.mxu0 0
  %1685 = vmatpush2.bf16.msra.mxu0 0
  %1686 = vmatprep.subr.bf16.mxu0 0
  %1687 = vmatpush2.bf16.msra.mxu0 0
  %1688 = vmatprep.subr.bf16.mxu0 0
  %1689 = vmatpush2.bf16.msra.mxu0 0
  %1690 = vmatprep.subr.bf16.mxu0 0
  %1691 = vmatpush2.bf16.msra.mxu0 0
  %1692 = vmatprep.subr.bf16.mxu0 0
  %1693 = vmatpush2.bf16.msra.mxu0 0
  %1694 = vmatprep.mubr.bf16.mxu0 0
  %1695 = vmatmul.mubr.bf16.gmra.mxu0 %v1574
  %v1696 = vpop.f32.mrf.mxu0
  %v1697 = vadd.f32 %v1368, %v1696
  %v1698 = vpop.f32.mrf.mxu0
  %v1699 = vadd.f32 %v1372, %v1698
  %v1700 = vpop.f32.mrf.mxu0
  %v1701 = vadd.f32 %v1368, %v1700
  %v1702 = vpop.f32.mrf.mxu0
  %v1703 = vadd.f32 %v1372, %v1702
  %1704 = vdwg.mxu0
  %1705 = vmatprep.subr.bf16.mxu0 0
  %1706 = vmatpush1.bf16.msra.mxu0 0
  %1707 = vmatprep.subr.bf16.mxu0 0
  %1708 = vmatpush1.bf16.msra.mxu0 0
  %1709 = vmatprep.subr.bf16.mxu0 0
  %1710 = vmatpush1.bf16.msra.mxu0 0
  %1711 = vmatprep.subr.bf16.mxu0 0
  %1712 = vmatpush1.bf16.msra.mxu0 0
  %1713 = vmatprep.subr.bf16.mxu0 0
  %1714 = vmatpush1.bf16.msra.mxu0 0
  %1715 = vmatprep.subr.bf16.mxu0 0
  %1716 = vmatpush1.bf16.msra.mxu0 0
  %1717 = vmatprep.subr.bf16.mxu0 %v1532
  %1718 = vmatpush1.bf16.msra.mxu0 %v1531
  %1719 = vmatprep.subr.bf16.mxu0 %v1516
  %1720 = vmatpush1.bf16.msra.mxu0 %v1515
  %1721 = vmatprep.subr.bf16.mxu0 0
  %1722 = vmatpush2.bf16.msra.mxu0 0
  %1723 = vmatprep.subr.bf16.mxu0 0
  %1724 = vmatpush2.bf16.msra.mxu0 0
  %1725 = vmatprep.subr.bf16.mxu0 0
  %1726 = vmatpush2.bf16.msra.mxu0 0
  %1727 = vmatprep.subr.bf16.mxu0 0
  %1728 = vmatpush2.bf16.msra.mxu0 0
  %1729 = vmatprep.subr.bf16.mxu0 0
  %1730 = vmatpush2.bf16.msra.mxu0 0
  %1731 = vmatprep.subr.bf16.mxu0 0
  %1732 = vmatpush2.bf16.msra.mxu0 0
  %1733 = vmatprep.subr.bf16.mxu0 0
  %1734 = vmatpush2.bf16.msra.mxu0 0
  %1735 = vmatprep.subr.bf16.mxu0 0
  %1736 = vmatpush2.bf16.msra.mxu0 0
  %1737 = vmatprep.mubr.bf16.mxu0 0
  %1738 = vmatmul.mubr.bf16.gmra.mxu0 %v1574
  %v1739 = vpop.f32.mrf.mxu0
  %v1740 = vadd.f32 %v1376, %v1739
  %v1741 = vpop.f32.mrf.mxu0
  %v1742 = vadd.f32 %v1380, %v1741
  %v1743 = vpop.f32.mrf.mxu0
  %v1744 = vadd.f32 %v1376, %v1743
  %v1745 = vpop.f32.mrf.mxu0
  %v1746 = vadd.f32 %v1380, %v1745
  %1747 = vdwg.mxu0
  %1748 = vmatprep.subr.bf16.mxu0 0
  %1749 = vmatpush1.bf16.msra.mxu0 0
  %1750 = vmatprep.subr.bf16.mxu0 0
  %1751 = vmatpush1.bf16.msra.mxu0 0
  %1752 = vmatprep.subr.bf16.mxu0 0
  %1753 = vmatpush1.bf16.msra.mxu0 0
  %1754 = vmatprep.subr.bf16.mxu0 0
  %1755 = vmatpush1.bf16.msra.mxu0 0
  %1756 = vmatprep.subr.bf16.mxu0 0
  %1757 = vmatpush1.bf16.msra.mxu0 0
  %1758 = vmatprep.subr.bf16.mxu0 0
  %1759 = vmatpush1.bf16.msra.mxu0 0
  %1760 = vmatprep.subr.bf16.mxu0 %v1534
  %1761 = vmatpush1.bf16.msra.mxu0 %v1533
  %1762 = vmatprep.subr.bf16.mxu0 %v1518
  %1763 = vmatpush1.bf16.msra.mxu0 %v1517
  %1764 = vmatprep.subr.bf16.mxu0 0
  %1765 = vmatpush2.bf16.msra.mxu0 0
  %1766 = vmatprep.subr.bf16.mxu0 0
  %1767 = vmatpush2.bf16.msra.mxu0 0
  %1768 = vmatprep.subr.bf16.mxu0 0
  %1769 = vmatpush2.bf16.msra.mxu0 0
  %1770 = vmatprep.subr.bf16.mxu0 0
  %1771 = vmatpush2.bf16.msra.mxu0 0
  %1772 = vmatprep.subr.bf16.mxu0 0
  %1773 = vmatpush2.bf16.msra.mxu0 0
  %1774 = vmatprep.subr.bf16.mxu0 0
  %1775 = vmatpush2.bf16.msra.mxu0 0
  %1776 = vmatprep.subr.bf16.mxu0 0
  %1777 = vmatpush2.bf16.msra.mxu0 0
  %1778 = vmatprep.subr.bf16.mxu0 0
  %1779 = vmatpush2.bf16.msra.mxu0 0
  %1780 = vmatprep.mubr.bf16.mxu0 0
  %1781 = vmatmul.mubr.bf16.gmra.mxu0 %v1574
  %v1782 = vpop.f32.mrf.mxu0
  %v1783 = vadd.f32 %v1384, %v1782
  %v1784 = vpop.f32.mrf.mxu0
  %v1785 = vadd.f32 %v1388, %v1784
  %v1786 = vpop.f32.mrf.mxu0
  %v1787 = vadd.f32 %v1384, %v1786
  %v1788 = vpop.f32.mrf.mxu0
  %v1789 = vadd.f32 %v1388, %v1788
  %1790 = vdwg.mxu0
  %1791 = vmatprep.subr.bf16.mxu0 0
  %1792 = vmatpush1.bf16.msra.mxu0 0
  %1793 = vmatprep.subr.bf16.mxu0 0
  %1794 = vmatpush1.bf16.msra.mxu0 0
  %1795 = vmatprep.subr.bf16.mxu0 0
  %1796 = vmatpush1.bf16.msra.mxu0 0
  %1797 = vmatprep.subr.bf16.mxu0 0
  %1798 = vmatpush1.bf16.msra.mxu0 0
  %1799 = vmatprep.subr.bf16.mxu0 0
  %1800 = vmatpush1.bf16.msra.mxu0 0
  %1801 = vmatprep.subr.bf16.mxu0 0
  %1802 = vmatpush1.bf16.msra.mxu0 0
  %1803 = vmatprep.subr.bf16.mxu0 %v1536
  %1804 = vmatpush1.bf16.msra.mxu0 %v1535
  %1805 = vmatprep.subr.bf16.mxu0 %v1520
  %1806 = vmatpush1.bf16.msra.mxu0 %v1519
  %1807 = vmatprep.subr.bf16.mxu0 0
  %1808 = vmatpush2.bf16.msra.mxu0 0
  %1809 = vmatprep.subr.bf16.mxu0 0
  %1810 = vmatpush2.bf16.msra.mxu0 0
  %1811 = vmatprep.subr.bf16.mxu0 0
  %1812 = vmatpush2.bf16.msra.mxu0 0
  %1813 = vmatprep.subr.bf16.mxu0 0
  %1814 = vmatpush2.bf16.msra.mxu0 0
  %1815 = vmatprep.subr.bf16.mxu0 0
  %1816 = vmatpush2.bf16.msra.mxu0 0
  %1817 = vmatprep.subr.bf16.mxu0 0
  %1818 = vmatpush2.bf16.msra.mxu0 0
  %1819 = vmatprep.subr.bf16.mxu0 0
  %1820 = vmatpush2.bf16.msra.mxu0 0
  %1821 = vmatprep.subr.bf16.mxu0 0
  %1822 = vmatpush2.bf16.msra.mxu0 0
  %1823 = vmatprep.mubr.bf16.mxu0 0
  %1824 = vmatmul.mubr.bf16.gmra.mxu0 %v1574
  %v1825 = vpop.f32.mrf.mxu0
  %v1826 = vadd.f32 %v1392, %v1825
  %v1827 = vpop.f32.mrf.mxu0
  %v1828 = vadd.f32 %v1396, %v1827
  %v1829 = vpop.f32.mrf.mxu0
  %v1830 = vadd.f32 %v1392, %v1829
  %v1831 = vpop.f32.mrf.mxu0
  %v1832 = vadd.f32 %v1396, %v1831
  %1833 = vdwg.mxu0
  %1834 = vmatprep.subr.bf16.mxu0 0
  %1835 = vmatpush1.bf16.msra.mxu0 0
  %1836 = vmatprep.subr.bf16.mxu0 0
  %1837 = vmatpush1.bf16.msra.mxu0 0
  %1838 = vmatprep.subr.bf16.mxu0 0
  %1839 = vmatpush1.bf16.msra.mxu0 0
  %1840 = vmatprep.subr.bf16.mxu0 0
  %1841 = vmatpush1.bf16.msra.mxu0 0
  %1842 = vmatprep.subr.bf16.mxu0 0
  %1843 = vmatpush1.bf16.msra.mxu0 0
  %1844 = vmatprep.subr.bf16.mxu0 0
  %1845 = vmatpush1.bf16.msra.mxu0 0
  %1846 = vmatprep.subr.bf16.mxu0 %v1538
  %1847 = vmatpush1.bf16.msra.mxu0 %v1537
  %1848 = vmatprep.subr.bf16.mxu0 %v1522
  %1849 = vmatpush1.bf16.msra.mxu0 %v1521
  %1850 = vmatprep.subr.bf16.mxu0 0
  %1851 = vmatpush2.bf16.msra.mxu0 0
  %1852 = vmatprep.subr.bf16.mxu0 0
  %1853 = vmatpush2.bf16.msra.mxu0 0
  %1854 = vmatprep.subr.bf16.mxu0 0
  %1855 = vmatpush2.bf16.msra.mxu0 0
  %1856 = vmatprep.subr.bf16.mxu0 0
  %1857 = vmatpush2.bf16.msra.mxu0 0
  %1858 = vmatprep.subr.bf16.mxu0 0
  %1859 = vmatpush2.bf16.msra.mxu0 0
  %1860 = vmatprep.subr.bf16.mxu0 0
  %1861 = vmatpush2.bf16.msra.mxu0 0
  %1862 = vmatprep.subr.bf16.mxu0 0
  %1863 = vmatpush2.bf16.msra.mxu0 0
  %1864 = vmatprep.subr.bf16.mxu0 0
  %1865 = vmatpush2.bf16.msra.mxu0 0
  %1866 = vmatprep.mubr.bf16.mxu0 0
  %1867 = vmatmul.mubr.bf16.gmra.mxu0 %v1574
  %v1868 = vpop.f32.mrf.mxu0
  %v1869 = vadd.f32 %v1400, %v1868
  %v1870 = vpop.f32.mrf.mxu0
  %v1871 = vadd.f32 %v1404, %v1870
  %v1872 = vpop.f32.mrf.mxu0
  %v1873 = vadd.f32 %v1400, %v1872
  %v1874 = vpop.f32.mrf.mxu0
  %v1875 = vadd.f32 %v1404, %v1874
  %1876 = vdwg.mxu0
  %1877 = vmatprep.subr.bf16.mxu0 0
  %1878 = vmatpush1.bf16.msra.mxu0 0
  %1879 = vmatprep.subr.bf16.mxu0 0
  %1880 = vmatpush1.bf16.msra.mxu0 0
  %1881 = vmatprep.subr.bf16.mxu0 0
  %1882 = vmatpush1.bf16.msra.mxu0 0
  %1883 = vmatprep.subr.bf16.mxu0 0
  %1884 = vmatpush1.bf16.msra.mxu0 0
  %1885 = vmatprep.subr.bf16.mxu0 0
  %1886 = vmatpush1.bf16.msra.mxu0 0
  %1887 = vmatprep.subr.bf16.mxu0 0
  %1888 = vmatpush1.bf16.msra.mxu0 0
  %1889 = vmatprep.subr.bf16.mxu0 %v1540
  %1890 = vmatpush1.bf16.msra.mxu0 %v1539
  %1891 = vmatprep.subr.bf16.mxu0 %v1524
  %1892 = vmatpush1.bf16.msra.mxu0 %v1523
  %1893 = vmatprep.subr.bf16.mxu0 0
  %1894 = vmatpush2.bf16.msra.mxu0 0
  %1895 = vmatprep.subr.bf16.mxu0 0
  %1896 = vmatpush2.bf16.msra.mxu0 0
  %1897 = vmatprep.subr.bf16.mxu0 0
  %1898 = vmatpush2.bf16.msra.mxu0 0
  %1899 = vmatprep.subr.bf16.mxu0 0
  %1900 = vmatpush2.bf16.msra.mxu0 0
  %1901 = vmatprep.subr.bf16.mxu0 0
  %1902 = vmatpush2.bf16.msra.mxu0 0
  %1903 = vmatprep.subr.bf16.mxu0 0
  %1904 = vmatpush2.bf16.msra.mxu0 0
  %1905 = vmatprep.subr.bf16.mxu0 0
  %1906 = vmatpush2.bf16.msra.mxu0 0
  %1907 = vmatprep.subr.bf16.mxu0 0
  %1908 = vmatpush2.bf16.msra.mxu0 0
  %1909 = vmatprep.mubr.bf16.mxu0 0
  %1910 = vmatmul.mubr.bf16.gmra.mxu0 %v1574
  %v1911 = vpop.f32.mrf.mxu0
  %v1912 = vadd.f32 %v1408, %v1911
  %v1913 = vpop.f32.mrf.mxu0
  %v1914 = vadd.f32 %v1412, %v1913
  %v1915 = vpop.f32.mrf.mxu0
  %v1916 = vadd.f32 %v1408, %v1915
  %v1917 = vpop.f32.mrf.mxu0
  %v1918 = vadd.f32 %v1412, %v1917
  %1919 = vdwg.mxu0
  %v1920 = vmax.f32 %v1611, 0.0
  %v1921 = vmax.f32 %v1613, 0.0
  %v1922 = vmax.f32 %v1654, 0.0
  %v1923 = vmax.f32 %v1656, 0.0
  %v1924 = vmax.f32 %v1697, 0.0
  %v1925 = vmax.f32 %v1699, 0.0
  %v1926 = vmax.f32 %v1740, 0.0
  %v1927 = vmax.f32 %v1742, 0.0
  %v1928 = vmax.f32 %v1783, 0.0
  %v1929 = vmax.f32 %v1785, 0.0
  %v1930 = vmax.f32 %v1826, 0.0
  %v1931 = vmax.f32 %v1828, 0.0
  %v1932 = vmax.f32 %v1869, 0.0
  %v1933 = vmax.f32 %v1871, 0.0
  %v1934 = vmax.f32 %v1912, 0.0
  %v1935 = vmax.f32 %v1914, 0.0
  %v1936 = vmax.f32 %v1615, 0.0
  %v1937 = vmax.f32 %v1617, 0.0
  %v1938 = vmax.f32 %v1658, 0.0
  %v1939 = vmax.f32 %v1660, 0.0
  %v1940 = vmax.f32 %v1701, 0.0
  %v1941 = vmax.f32 %v1703, 0.0
  %v1942 = vmax.f32 %v1744, 0.0
  %v1943 = vmax.f32 %v1746, 0.0
  %v1944 = vmax.f32 %v1787, 0.0
  %v1945 = vmax.f32 %v1789, 0.0
  %v1946 = vmax.f32 %v1830, 0.0
  %v1947 = vmax.f32 %v1832, 0.0
  %v1948 = vmax.f32 %v1873, 0.0
  %v1949 = vmax.f32 %v1875, 0.0
  %v1950 = vmax.f32 %v1916, 0.0
  %v1951 = vmax.f32 %v1918, 0.0
  %v1952 = vpack.c.bf16 %v1936, %v1920
  %v1953 = vpack.c.bf16 %v1937, %v1921
  %v1954 = vpack.c.bf16 %v1938, %v1922
  %v1955 = vpack.c.bf16 %v1939, %v1923
  %v1956 = vpack.c.bf16 %v1940, %v1924
  %v1957 = vpack.c.bf16 %v1941, %v1925
  %v1958 = vpack.c.bf16 %v1942, %v1926
  %v1959 = vpack.c.bf16 %v1943, %v1927
  %v1960 = vpack.c.bf16 %v1944, %v1928
  %v1961 = vpack.c.bf16 %v1945, %v1929
  %v1962 = vpack.c.bf16 %v1946, %v1930
  %v1963 = vpack.c.bf16 %v1947, %v1931
  %v1964 = vpack.c.bf16 %v1948, %v1932
  %v1965 = vpack.c.bf16 %v1949, %v1933
  %v1966 = vpack.c.bf16 %v1950, %v1934
  %v1967 = vpack.c.bf16 %v1951, %v1935
  %v1968 = vld [vmem:[#allocation4] sm:$0xf]
  %v1969 = vld [vmem:[#allocation4 + $0x4] sm:$0xf]
  %v1970 = vld [vmem:[#allocation4 + $0x8] sm:$0xf]
  %v1971 = vld [vmem:[#allocation4 + $0xc] sm:$0xf]
  %v1972 = vld [vmem:[#allocation4 + $0x10] sm:$0xf]
  %v1973 = vld [vmem:[#allocation4 + $0x14] sm:$0xf]
  %v1974 = vld [vmem:[#allocation4 + $0x18] sm:$0xf]
  %v1975 = vld [vmem:[#allocation4 + $0x1c] sm:$0xf]
  %v1976 = vld [vmem:[#allocation4 + $0x20] sm:$0xf]
  %v1977 = vld [vmem:[#allocation4 + $0x24] sm:$0xf]
  %v1978 = vld [vmem:[#allocation4 + $0x28] sm:$0xf]
  %v1979 = vld [vmem:[#allocation4 + $0x2c] sm:$0xf]
  %v1980 = vld [vmem:[#allocation4 + $0x30] sm:$0xf]
  %v1981 = vld [vmem:[#allocation4 + $0x34] sm:$0xf]
  %v1982 = vld [vmem:[#allocation4 + $0x38] sm:$0xf]
  %v1983 = vld [vmem:[#allocation4 + $0x3c] sm:$0xf]
  %v1984 = vld [vmem:[#allocation4 + $0x40] sm:$0xf]
  %v1985 = vld [vmem:[#allocation4 + $0x44] sm:$0xf]
  %v1986 = vld [vmem:[#allocation4 + $0x48] sm:$0xf]
  %v1987 = vld [vmem:[#allocation4 + $0x4c] sm:$0xf]
  %v1988 = vld [vmem:[#allocation4 + $0x50] sm:$0xf]
  %v1989 = vld [vmem:[#allocation4 + $0x54] sm:$0xf]
  %v1990 = vld [vmem:[#allocation4 + $0x58] sm:$0xf]
  %v1991 = vld [vmem:[#allocation4 + $0x5c] sm:$0xf]
  %v1992 = vld [vmem:[#allocation4 + $0x60] sm:$0xf]
  %v1993 = vld [vmem:[#allocation4 + $0x64] sm:$0xf]
  %v1994 = vld [vmem:[#allocation4 + $0x68] sm:$0xf]
  %v1995 = vld [vmem:[#allocation4 + $0x6c] sm:$0xf]
  %v1996 = vld [vmem:[#allocation4 + $0x70] sm:$0xf]
  %v1997 = vld [vmem:[#allocation4 + $0x74] sm:$0xf]
  %v1998 = vld [vmem:[#allocation4 + $0x78] sm:$0xf]
  %v1999 = vld [vmem:[#allocation4 + $0x7c] sm:$0xf]
  %v2000 = vld [vmem:[#allocation4 + $0x80] sm:$0xf]
  %v2001 = vld [vmem:[#allocation4 + $0x84] sm:$0xf]
  %v2002 = vld [vmem:[#allocation4 + $0x88] sm:$0xf]
  %v2003 = vld [vmem:[#allocation4 + $0x8c] sm:$0xf]
  %v2004 = vld [vmem:[#allocation4 + $0x90] sm:$0xf]
  %v2005 = vld [vmem:[#allocation4 + $0x94] sm:$0xf]
  %v2006 = vld [vmem:[#allocation4 + $0x98] sm:$0xf]
  %v2007 = vld [vmem:[#allocation4 + $0x9c] sm:$0xf]
  %v2008 = vld [vmem:[#allocation4 + $0xa0] sm:$0xf]
  %v2009 = vld [vmem:[#allocation4 + $0xa4] sm:$0xf]
  %v2010 = vld [vmem:[#allocation4 + $0xa8] sm:$0xf]
  %v2011 = vld [vmem:[#allocation4 + $0xac] sm:$0xf]
  %v2012 = vld [vmem:[#allocation4 + $0xb0] sm:$0xf]
  %v2013 = vld [vmem:[#allocation4 + $0xb4] sm:$0xf]
  %v2014 = vld [vmem:[#allocation4 + $0xb8] sm:$0xf]
  %v2015 = vld [vmem:[#allocation4 + $0xbc] sm:$0xf]
  %v2016 = vld [vmem:[#allocation4 + $0xc0] sm:$0xf]
  %v2017 = vld [vmem:[#allocation4 + $0xc4] sm:$0xf]
  %v2018 = vld [vmem:[#allocation4 + $0xc8] sm:$0xf]
  %v2019 = vld [vmem:[#allocation4 + $0xcc] sm:$0xf]
  %v2020 = vld [vmem:[#allocation4 + $0xd0] sm:$0xf]
  %v2021 = vld [vmem:[#allocation4 + $0xd4] sm:$0xf]
  %v2022 = vld [vmem:[#allocation4 + $0xd8] sm:$0xf]
  %v2023 = vld [vmem:[#allocation4 + $0xdc] sm:$0xf]
  %v2024 = vld [vmem:[#allocation4 + $0xe0] sm:$0xf]
  %v2025 = vld [vmem:[#allocation4 + $0xe4] sm:$0xf]
  %v2026 = vld [vmem:[#allocation4 + $0xe8] sm:$0xf]
  %v2027 = vld [vmem:[#allocation4 + $0xec] sm:$0xf]
  %v2028 = vld [vmem:[#allocation4 + $0xf0] sm:$0xf]
  %v2029 = vld [vmem:[#allocation4 + $0xf4] sm:$0xf]
  %v2030 = vld [vmem:[#allocation4 + $0xf8] sm:$0xf]
  %v2031 = vld [vmem:[#allocation4 + $0xfc] sm:$0xf]
  %v2096 = vunpack.c.l.b16 %v1968
  %v2097 = vunpack.c.l.b16 %v1969
  %v2098 = vunpack.c.l.b16 %v1970
  %v2099 = vunpack.c.l.b16 %v1971
  %v2100 = vunpack.c.l.b16 %v1972
  %v2101 = vunpack.c.l.b16 %v1973
  %v2102 = vunpack.c.l.b16 %v1974
  %v2103 = vunpack.c.l.b16 %v1975
  %v2104 = vunpack.c.l.b16 %v1976
  %v2105 = vunpack.c.l.b16 %v1977
  %v2106 = vunpack.c.l.b16 %v1978
  %v2107 = vunpack.c.l.b16 %v1979
  %v2108 = vunpack.c.l.b16 %v1980
  %v2109 = vunpack.c.l.b16 %v1981
  %v2110 = vunpack.c.l.b16 %v1982
  %v2111 = vunpack.c.l.b16 %v1983
  %v2112 = vunpack.c.l.b16 %v1984
  %v2113 = vunpack.c.l.b16 %v1985
  %v2114 = vunpack.c.l.b16 %v1986
  %v2115 = vunpack.c.l.b16 %v1987
  %v2116 = vunpack.c.l.b16 %v1988
  %v2117 = vunpack.c.l.b16 %v1989
  %v2118 = vunpack.c.l.b16 %v1990
  %v2119 = vunpack.c.l.b16 %v1991
  %v2120 = vunpack.c.l.b16 %v1992
  %v2121 = vunpack.c.l.b16 %v1993
  %v2122 = vunpack.c.l.b16 %v1994
  %v2123 = vunpack.c.l.b16 %v1995
  %v2124 = vunpack.c.l.b16 %v1996
  %v2125 = vunpack.c.l.b16 %v1997
  %v2126 = vunpack.c.l.b16 %v1998
  %v2127 = vunpack.c.l.b16 %v1999
  %v2128 = vunpack.c.l.b16 %v2000
  %v2129 = vunpack.c.l.b16 %v2001
  %v2130 = vunpack.c.l.b16 %v2002
  %v2131 = vunpack.c.l.b16 %v2003
  %v2132 = vunpack.c.l.b16 %v2004
  %v2133 = vunpack.c.l.b16 %v2005
  %v2134 = vunpack.c.l.b16 %v2006
  %v2135 = vunpack.c.l.b16 %v2007
  %v2136 = vunpack.c.l.b16 %v2008
  %v2137 = vunpack.c.l.b16 %v2009
  %v2138 = vunpack.c.l.b16 %v2010
  %v2139 = vunpack.c.l.b16 %v2011
  %v2140 = vunpack.c.l.b16 %v2012
  %v2141 = vunpack.c.l.b16 %v2013
  %v2142 = vunpack.c.l.b16 %v2014
  %v2143 = vunpack.c.l.b16 %v2015
  %v2144 = vunpack.c.l.b16 %v2016
  %v2145 = vunpack.c.l.b16 %v2017
  %v2146 = vunpack.c.l.b16 %v2018
  %v2147 = vunpack.c.l.b16 %v2019
  %v2148 = vunpack.c.l.b16 %v2020
  %v2149 = vunpack.c.l.b16 %v2021
  %v2150 = vunpack.c.l.b16 %v2022
  %v2151 = vunpack.c.l.b16 %v2023
  %v2152 = vunpack.c.l.b16 %v2024
  %v2153 = vunpack.c.l.b16 %v2025
  %v2154 = vunpack.c.l.b16 %v2026
  %v2155 = vunpack.c.l.b16 %v2027
  %v2156 = vunpack.c.l.b16 %v2028
  %v2157 = vunpack.c.l.b16 %v2029
  %v2158 = vunpack.c.l.b16 %v2030
  %v2159 = vunpack.c.l.b16 %v2031
  %v2160 = vpack.c.b16 %v2097, %v2096
  %v2161 = vpack.c.b16 %v2099, %v2098
  %v2162 = vpack.c.b16 %v2101, %v2100
  %v2163 = vpack.c.b16 %v2103, %v2102
  %v2164 = vpack.c.b16 %v2105, %v2104
  %v2165 = vpack.c.b16 %v2107, %v2106
  %v2166 = vpack.c.b16 %v2109, %v2108
  %v2167 = vpack.c.b16 %v2111, %v2110
  %v2168 = vpack.c.b16 %v2113, %v2112
  %v2169 = vpack.c.b16 %v2115, %v2114
  %v2170 = vpack.c.b16 %v2117, %v2116
  %v2171 = vpack.c.b16 %v2119, %v2118
  %v2172 = vpack.c.b16 %v2121, %v2120
  %v2173 = vpack.c.b16 %v2123, %v2122
  %v2174 = vpack.c.b16 %v2125, %v2124
  %v2175 = vpack.c.b16 %v2127, %v2126
  %v2176 = vpack.c.b16 %v2129, %v2128
  %v2177 = vpack.c.b16 %v2131, %v2130
  %v2178 = vpack.c.b16 %v2133, %v2132
  %v2179 = vpack.c.b16 %v2135, %v2134
  %v2180 = vpack.c.b16 %v2137, %v2136
  %v2181 = vpack.c.b16 %v2139, %v2138
  %v2182 = vpack.c.b16 %v2141, %v2140
  %v2183 = vpack.c.b16 %v2143, %v2142
  %v2184 = vpack.c.b16 %v2145, %v2144
  %v2185 = vpack.c.b16 %v2147, %v2146
  %v2186 = vpack.c.b16 %v2149, %v2148
  %v2187 = vpack.c.b16 %v2151, %v2150
  %v2188 = vpack.c.b16 %v2153, %v2152
  %v2189 = vpack.c.b16 %v2155, %v2154
  %v2190 = vpack.c.b16 %v2157, %v2156
  %v2191 = vpack.c.b16 %v2159, %v2158
  %2224 = vmatprep.subr.bf16.mxu0 0
  %2225 = vmatpush1.bf16.msra.mxu0 %v2167
  %2226 = vmatprep.subr.bf16.mxu0 0
  %2227 = vmatpush1.bf16.msra.mxu0 %v2166
  %2228 = vmatprep.subr.bf16.mxu0 0
  %2229 = vmatpush1.bf16.msra.mxu0 %v2165
  %2230 = vmatprep.subr.bf16.mxu0 0
  %2231 = vmatpush1.bf16.msra.mxu0 %v2164
  %2232 = vmatprep.subr.bf16.mxu0 0
  %2233 = vmatpush1.bf16.msra.mxu0 %v2163
  %2234 = vmatprep.subr.bf16.mxu0 0
  %2235 = vmatpush1.bf16.msra.mxu0 %v2162
  %2236 = vmatprep.subr.bf16.mxu0 0
  %2237 = vmatpush1.bf16.msra.mxu0 %v2161
  %2238 = vmatprep.subr.bf16.mxu0 0
  %2239 = vmatpush1.bf16.msra.mxu0 %v2160
  %2240 = vmatprep.subr.bf16.mxu0 0
  %2241 = vmatpush2.bf16.msra.mxu0 %v2175
  %2242 = vmatprep.subr.bf16.mxu0 0
  %2243 = vmatpush2.bf16.msra.mxu0 %v2174
  %2244 = vmatprep.subr.bf16.mxu0 0
  %2245 = vmatpush2.bf16.msra.mxu0 %v2173
  %2246 = vmatprep.subr.bf16.mxu0 0
  %2247 = vmatpush2.bf16.msra.mxu0 %v2172
  %2248 = vmatprep.subr.bf16.mxu0 0
  %2249 = vmatpush2.bf16.msra.mxu0 %v2171
  %2250 = vmatprep.subr.bf16.mxu0 0
  %2251 = vmatpush2.bf16.msra.mxu0 %v2170
  %2252 = vmatprep.subr.bf16.mxu0 0
  %2253 = vmatpush2.bf16.msra.mxu0 %v2169
  %2254 = vmatprep.subr.bf16.mxu0 0
  %2255 = vmatpush2.bf16.msra.mxu0 %v2168
  %2256 = vmatprep.mubr.bf16.mxu0 %v1953
  %2257 = vmatmul.mubr.bf16.gmra.mxu0 %v1952
  %v2258 = vpop.f32.mrf.mxu0
  %v2259 = vadd.f32 0.0, %v2258
  %v2260 = vpop.f32.mrf.mxu0
  %v2261 = vpop.f32.mrf.mxu0
  %v2262 = vadd.f32 0.0, %v2261
  %v2263 = vpop.f32.mrf.mxu0
  %2264 = vdwg.mxu0
  %2265 = vmatprep.subr.bf16.mxu0 0
  %2266 = vmatpush1.bf16.msra.mxu0 %v2183
  %2267 = vmatprep.subr.bf16.mxu0 0
  %2268 = vmatpush1.bf16.msra.mxu0 %v2182
  %2269 = vmatprep.subr.bf16.mxu0 0
  %2270 = vmatpush1.bf16.msra.mxu0 %v2181
  %2271 = vmatprep.subr.bf16.mxu0 0
  %2272 = vmatpush1.bf16.msra.mxu0 %v2180
  %2273 = vmatprep.subr.bf16.mxu0 0
  %2274 = vmatpush1.bf16.msra.mxu0 %v2179
  %2275 = vmatprep.subr.bf16.mxu0 0
  %2276 = vmatpush1.bf16.msra.mxu0 %v2178
  %2277 = vmatprep.subr.bf16.mxu0 0
  %2278 = vmatpush1.bf16.msra.mxu0 %v2177
  %2279 = vmatprep.subr.bf16.mxu0 0
  %2280 = vmatpush1.bf16.msra.mxu0 %v2176
  %2281 = vmatprep.subr.bf16.mxu0 0
  %2282 = vmatpush2.bf16.msra.mxu0 %v2191
  %2283 = vmatprep.subr.bf16.mxu0 0
  %2284 = vmatpush2.bf16.msra.mxu0 %v2190
  %2285 = vmatprep.subr.bf16.mxu0 0
  %2286 = vmatpush2.bf16.msra.mxu0 %v2189
  %2287 = vmatprep.subr.bf16.mxu0 0
  %2288 = vmatpush2.bf16.msra.mxu0 %v2188
  %2289 = vmatprep.subr.bf16.mxu0 0
  %2290 = vmatpush2.bf16.msra.mxu0 %v2187
  %2291 = vmatprep.subr.bf16.mxu0 0
  %2292 = vmatpush2.bf16.msra.mxu0 %v2186
  %2293 = vmatprep.subr.bf16.mxu0 0
  %2294 = vmatpush2.bf16.msra.mxu0 %v2185
  %2295 = vmatprep.subr.bf16.mxu0 0
  %2296 = vmatpush2.bf16.msra.mxu0 %v2184
  %2297 = vmatprep.mubr.bf16.mxu0 %v1955
  %2298 = vmatmul.mubr.bf16.gmra.mxu0 %v1954
  %v2299 = vpop.f32.mrf.mxu0
  %v2300 = vadd.f32 %v2259, %v2299
  %v2301 = vpop.f32.mrf.mxu0
  %v2302 = vpop.f32.mrf.mxu0
  %v2303 = vadd.f32 %v2262, %v2302
  %v2304 = vpop.f32.mrf.mxu0
  %2305 = vdwg.mxu0
  %v2306 = vadd.f32 %v2300, 0.0
  %v2307 = vadd.f32 %v2303, 0.0
  %2308 = vmatprep.subr.bf16.mxu0 0
  %2309 = vmatpush1.bf16.msra.mxu0 %v2167
  %2310 = vmatprep.subr.bf16.mxu0 0
  %2311 = vmatpush1.bf16.msra.mxu0 %v2166
  %2312 = vmatprep.subr.bf16.mxu0 0
  %2313 = vmatpush1.bf16.msra.mxu0 %v2165
  %2314 = vmatprep.subr.bf16.mxu0 0
  %2315 = vmatpush1.bf16.msra.mxu0 %v2164
  %2316 = vmatprep.subr.bf16.mxu0 0
  %2317 = vmatpush1.bf16.msra.mxu0 %v2163
  %2318 = vmatprep.subr.bf16.mxu0 0
  %2319 = vmatpush1.bf16.msra.mxu0 %v2162
  %2320 = vmatprep.subr.bf16.mxu0 0
  %2321 = vmatpush1.bf16.msra.mxu0 %v2161
  %2322 = vmatprep.subr.bf16.mxu0 0
  %2323 = vmatpush1.bf16.msra.mxu0 %v2160
  %2324 = vmatprep.subr.bf16.mxu0 0
  %2325 = vmatpush2.bf16.msra.mxu0 %v2175
  %2326 = vmatprep.subr.bf16.mxu0 0
  %2327 = vmatpush2.bf16.msra.mxu0 %v2174
  %2328 = vmatprep.subr.bf16.mxu0 0
  %2329 = vmatpush2.bf16.msra.mxu0 %v2173
  %2330 = vmatprep.subr.bf16.mxu0 0
  %2331 = vmatpush2.bf16.msra.mxu0 %v2172
  %2332 = vmatprep.subr.bf16.mxu0 0
  %2333 = vmatpush2.bf16.msra.mxu0 %v2171
  %2334 = vmatprep.subr.bf16.mxu0 0
  %2335 = vmatpush2.bf16.msra.mxu0 %v2170
  %2336 = vmatprep.subr.bf16.mxu0 0
  %2337 = vmatpush2.bf16.msra.mxu0 %v2169
  %2338 = vmatprep.subr.bf16.mxu0 0
  %2339 = vmatpush2.bf16.msra.mxu0 %v2168
  %2340 = vmatprep.mubr.bf16.mxu0 %v1957
  %2341 = vmatmul.mubr.bf16.gmra.mxu0 %v1956
  %v2342 = vpop.f32.mrf.mxu0
  %v2343 = vadd.f32 0.0, %v2342
  %v2344 = vpop.f32.mrf.mxu0
  %v2345 = vpop.f32.mrf.mxu0
  %v2346 = vadd.f32 0.0, %v2345
  %v2347 = vpop.f32.mrf.mxu0
  %2348 = vdwg.mxu0
  %2349 = vmatprep.subr.bf16.mxu0 0
  %2350 = vmatpush1.bf16.msra.mxu0 %v2183
  %2351 = vmatprep.subr.bf16.mxu0 0
  %2352 = vmatpush1.bf16.msra.mxu0 %v2182
  %2353 = vmatprep.subr.bf16.mxu0 0
  %2354 = vmatpush1.bf16.msra.mxu0 %v2181
  %2355 = vmatprep.subr.bf16.mxu0 0
  %2356 = vmatpush1.bf16.msra.mxu0 %v2180
  %2357 = vmatprep.subr.bf16.mxu0 0
  %2358 = vmatpush1.bf16.msra.mxu0 %v2179
  %2359 = vmatprep.subr.bf16.mxu0 0
  %2360 = vmatpush1.bf16.msra.mxu0 %v2178
  %2361 = vmatprep.subr.bf16.mxu0 0
  %2362 = vmatpush1.bf16.msra.mxu0 %v2177
  %2363 = vmatprep.subr.bf16.mxu0 0
  %2364 = vmatpush1.bf16.msra.mxu0 %v2176
  %2365 = vmatprep.subr.bf16.mxu0 0
  %2366 = vmatpush2.bf16.msra.mxu0 %v2191
  %2367 = vmatprep.subr.bf16.mxu0 0
  %2368 = vmatpush2.bf16.msra.mxu0 %v2190
  %2369 = vmatprep.subr.bf16.mxu0 0
  %2370 = vmatpush2.bf16.msra.mxu0 %v2189
  %2371 = vmatprep.subr.bf16.mxu0 0
  %2372 = vmatpush2.bf16.msra.mxu0 %v2188
  %2373 = vmatprep.subr.bf16.mxu0 0
  %2374 = vmatpush2.bf16.msra.mxu0 %v2187
  %2375 = vmatprep.subr.bf16.mxu0 0
  %2376 = vmatpush2.bf16.msra.mxu0 %v2186
  %2377 = vmatprep.subr.bf16.mxu0 0
  %2378 = vmatpush2.bf16.msra.mxu0 %v2185
  %2379 = vmatprep.subr.bf16.mxu0 0
  %2380 = vmatpush2.bf16.msra.mxu0 %v2184
  %2381 = vmatprep.mubr.bf16.mxu0 %v1959
  %2382 = vmatmul.mubr.bf16.gmra.mxu0 %v1958
  %v2383 = vpop.f32.mrf.mxu0
  %v2384 = vadd.f32 %v2343, %v2383
  %v2385 = vpop.f32.mrf.mxu0
  %v2386 = vpop.f32.mrf.mxu0
  %v2387 = vadd.f32 %v2346, %v2386
  %v2388 = vpop.f32.mrf.mxu0
  %2389 = vdwg.mxu0
  %2392 = vrot.lane.b32.xlu0 %v2384, 96
  %v2393 = vpop.permute.xlu0 %2392
  %2394 = vrot.lane.b32.xlu0 %v2387, 96
  %v2395 = vpop.permute.xlu0 %2394
  %v2398 = vadd.f32 %v2306, %v2393
  %v2399 = vadd.f32 %v2307, %v2395
  %2400 = vmatprep.subr.bf16.mxu0 0
  %2401 = vmatpush1.bf16.msra.mxu0 %v2167
  %2402 = vmatprep.subr.bf16.mxu0 0
  %2403 = vmatpush1.bf16.msra.mxu0 %v2166
  %2404 = vmatprep.subr.bf16.mxu0 0
  %2405 = vmatpush1.bf16.msra.mxu0 %v2165
  %2406 = vmatprep.subr.bf16.mxu0 0
  %2407 = vmatpush1.bf16.msra.mxu0 %v2164
  %2408 = vmatprep.subr.bf16.mxu0 0
  %2409 = vmatpush1.bf16.msra.mxu0 %v2163
  %2410 = vmatprep.subr.bf16.mxu0 0
  %2411 = vmatpush1.bf16.msra.mxu0 %v2162
  %2412 = vmatprep.subr.bf16.mxu0 0
  %2413 = vmatpush1.bf16.msra.mxu0 %v2161
  %2414 = vmatprep.subr.bf16.mxu0 0
  %2415 = vmatpush1.bf16.msra.mxu0 %v2160
  %2416 = vmatprep.subr.bf16.mxu0 0
  %2417 = vmatpush2.bf16.msra.mxu0 %v2175
  %2418 = vmatprep.subr.bf16.mxu0 0
  %2419 = vmatpush2.bf16.msra.mxu0 %v2174
  %2420 = vmatprep.subr.bf16.mxu0 0
  %2421 = vmatpush2.bf16.msra.mxu0 %v2173
  %2422 = vmatprep.subr.bf16.mxu0 0
  %2423 = vmatpush2.bf16.msra.mxu0 %v2172
  %2424 = vmatprep.subr.bf16.mxu0 0
  %2425 = vmatpush2.bf16.msra.mxu0 %v2171
  %2426 = vmatprep.subr.bf16.mxu0 0
  %2427 = vmatpush2.bf16.msra.mxu0 %v2170
  %2428 = vmatprep.subr.bf16.mxu0 0
  %2429 = vmatpush2.bf16.msra.mxu0 %v2169
  %2430 = vmatprep.subr.bf16.mxu0 0
  %2431 = vmatpush2.bf16.msra.mxu0 %v2168
  %2432 = vmatprep.mubr.bf16.mxu0 %v1961
  %2433 = vmatmul.mubr.bf16.gmra.mxu0 %v1960
  %v2434 = vpop.f32.mrf.mxu0
  %v2435 = vadd.f32 0.0, %v2434
  %v2436 = vpop.f32.mrf.mxu0
  %v2437 = vpop.f32.mrf.mxu0
  %v2438 = vadd.f32 0.0, %v2437
  %v2439 = vpop.f32.mrf.mxu0
  %2440 = vdwg.mxu0
  %2441 = vmatprep.subr.bf16.mxu0 0
  %2442 = vmatpush1.bf16.msra.mxu0 %v2183
  %2443 = vmatprep.subr.bf16.mxu0 0
  %2444 = vmatpush1.bf16.msra.mxu0 %v2182
  %2445 = vmatprep.subr.bf16.mxu0 0
  %2446 = vmatpush1.bf16.msra.mxu0 %v2181
  %2447 = vmatprep.subr.bf16.mxu0 0
  %2448 = vmatpush1.bf16.msra.mxu0 %v2180
  %2449 = vmatprep.subr.bf16.mxu0 0
  %2450 = vmatpush1.bf16.msra.mxu0 %v2179
  %2451 = vmatprep.subr.bf16.mxu0 0
  %2452 = vmatpush1.bf16.msra.mxu0 %v2178
  %2453 = vmatprep.subr.bf16.mxu0 0
  %2454 = vmatpush1.bf16.msra.mxu0 %v2177
  %2455 = vmatprep.subr.bf16.mxu0 0
  %2456 = vmatpush1.bf16.msra.mxu0 %v2176
  %2457 = vmatprep.subr.bf16.mxu0 0
  %2458 = vmatpush2.bf16.msra.mxu0 %v2191
  %2459 = vmatprep.subr.bf16.mxu0 0
  %2460 = vmatpush2.bf16.msra.mxu0 %v2190
  %2461 = vmatprep.subr.bf16.mxu0 0
  %2462 = vmatpush2.bf16.msra.mxu0 %v2189
  %2463 = vmatprep.subr.bf16.mxu0 0
  %2464 = vmatpush2.bf16.msra.mxu0 %v2188
  %2465 = vmatprep.subr.bf16.mxu0 0
  %2466 = vmatpush2.bf16.msra.mxu0 %v2187
  %2467 = vmatprep.subr.bf16.mxu0 0
  %2468 = vmatpush2.bf16.msra.mxu0 %v2186
  %2469 = vmatprep.subr.bf16.mxu0 0
  %2470 = vmatpush2.bf16.msra.mxu0 %v2185
  %2471 = vmatprep.subr.bf16.mxu0 0
  %2472 = vmatpush2.bf16.msra.mxu0 %v2184
  %2473 = vmatprep.mubr.bf16.mxu0 %v1963
  %2474 = vmatmul.mubr.bf16.gmra.mxu0 %v1962
  %v2475 = vpop.f32.mrf.mxu0
  %v2476 = vadd.f32 %v2435, %v2475
  %v2477 = vpop.f32.mrf.mxu0
  %v2478 = vpop.f32.mrf.mxu0
  %v2479 = vadd.f32 %v2438, %v2478
  %v2480 = vpop.f32.mrf.mxu0
  %2481 = vdwg.mxu0
  %2484 = vrot.lane.b32.xlu0 %v2476, 64
  %v2485 = vpop.permute.xlu0 %2484
  %2486 = vrot.lane.b32.xlu0 %v2479, 64
  %v2487 = vpop.permute.xlu0 %2486
  %v2490 = vadd.f32 %v2398, %v2485
  %v2491 = vadd.f32 %v2399, %v2487
  %2492 = vmatprep.subr.bf16.mxu0 0
  %2493 = vmatpush1.bf16.msra.mxu0 %v2167
  %2494 = vmatprep.subr.bf16.mxu0 0
  %2495 = vmatpush1.bf16.msra.mxu0 %v2166
  %2496 = vmatprep.subr.bf16.mxu0 0
  %2497 = vmatpush1.bf16.msra.mxu0 %v2165
  %2498 = vmatprep.subr.bf16.mxu0 0
  %2499 = vmatpush1.bf16.msra.mxu0 %v2164
  %2500 = vmatprep.subr.bf16.mxu0 0
  %2501 = vmatpush1.bf16.msra.mxu0 %v2163
  %2502 = vmatprep.subr.bf16.mxu0 0
  %2503 = vmatpush1.bf16.msra.mxu0 %v2162
  %2504 = vmatprep.subr.bf16.mxu0 0
  %2505 = vmatpush1.bf16.msra.mxu0 %v2161
  %2506 = vmatprep.subr.bf16.mxu0 0
  %2507 = vmatpush1.bf16.msra.mxu0 %v2160
  %2508 = vmatprep.subr.bf16.mxu0 0
  %2509 = vmatpush2.bf16.msra.mxu0 %v2175
  %2510 = vmatprep.subr.bf16.mxu0 0
  %2511 = vmatpush2.bf16.msra.mxu0 %v2174
  %2512 = vmatprep.subr.bf16.mxu0 0
  %2513 = vmatpush2.bf16.msra.mxu0 %v2173
  %2514 = vmatprep.subr.bf16.mxu0 0
  %2515 = vmatpush2.bf16.msra.mxu0 %v2172
  %2516 = vmatprep.subr.bf16.mxu0 0
  %2517 = vmatpush2.bf16.msra.mxu0 %v2171
  %2518 = vmatprep.subr.bf16.mxu0 0
  %2519 = vmatpush2.bf16.msra.mxu0 %v2170
  %2520 = vmatprep.subr.bf16.mxu0 0
  %2521 = vmatpush2.bf16.msra.mxu0 %v2169
  %2522 = vmatprep.subr.bf16.mxu0 0
  %2523 = vmatpush2.bf16.msra.mxu0 %v2168
  %2524 = vmatprep.mubr.bf16.mxu0 %v1965
  %2525 = vmatmul.mubr.bf16.gmra.mxu0 %v1964
  %v2526 = vpop.f32.mrf.mxu0
  %v2527 = vadd.f32 0.0, %v2526
  %v2528 = vpop.f32.mrf.mxu0
  %v2529 = vpop.f32.mrf.mxu0
  %v2530 = vadd.f32 0.0, %v2529
  %v2531 = vpop.f32.mrf.mxu0
  %2532 = vdwg.mxu0
  %2533 = vmatprep.subr.bf16.mxu0 0
  %2534 = vmatpush1.bf16.msra.mxu0 %v2183
  %2535 = vmatprep.subr.bf16.mxu0 0
  %2536 = vmatpush1.bf16.msra.mxu0 %v2182
  %2537 = vmatprep.subr.bf16.mxu0 0
  %2538 = vmatpush1.bf16.msra.mxu0 %v2181
  %2539 = vmatprep.subr.bf16.mxu0 0
  %2540 = vmatpush1.bf16.msra.mxu0 %v2180
  %2541 = vmatprep.subr.bf16.mxu0 0
  %2542 = vmatpush1.bf16.msra.mxu0 %v2179
  %2543 = vmatprep.subr.bf16.mxu0 0
  %2544 = vmatpush1.bf16.msra.mxu0 %v2178
  %2545 = vmatprep.subr.bf16.mxu0 0
  %2546 = vmatpush1.bf16.msra.mxu0 %v2177
  %2547 = vmatprep.subr.bf16.mxu0 0
  %2548 = vmatpush1.bf16.msra.mxu0 %v2176
  %2549 = vmatprep.subr.bf16.mxu0 0
  %2550 = vmatpush2.bf16.msra.mxu0 %v2191
  %2551 = vmatprep.subr.bf16.mxu0 0
  %2552 = vmatpush2.bf16.msra.mxu0 %v2190
  %2553 = vmatprep.subr.bf16.mxu0 0
  %2554 = vmatpush2.bf16.msra.mxu0 %v2189
  %2555 = vmatprep.subr.bf16.mxu0 0
  %2556 = vmatpush2.bf16.msra.mxu0 %v2188
  %2557 = vmatprep.subr.bf16.mxu0 0
  %2558 = vmatpush2.bf16.msra.mxu0 %v2187
  %2559 = vmatprep.subr.bf16.mxu0 0
  %2560 = vmatpush2.bf16.msra.mxu0 %v2186
  %2561 = vmatprep.subr.bf16.mxu0 0
  %2562 = vmatpush2.bf16.msra.mxu0 %v2185
  %2563 = vmatprep.subr.bf16.mxu0 0
  %2564 = vmatpush2.bf16.msra.mxu0 %v2184
  %2565 = vmatprep.mubr.bf16.mxu0 %v1967
  %2566 = vmatmul.mubr.bf16.gmra.mxu0 %v1966
  %v2567 = vpop.f32.mrf.mxu0
  %v2568 = vadd.f32 %v2527, %v2567
  %v2569 = vpop.f32.mrf.mxu0
  %v2570 = vpop.f32.mrf.mxu0
  %v2571 = vadd.f32 %v2530, %v2570
  %v2572 = vpop.f32.mrf.mxu0
  %2573 = vdwg.mxu0
  %2576 = vrot.lane.b32.xlu0 %v2568, 32
  %v2577 = vpop.permute.xlu0 %2576
  %2578 = vrot.lane.b32.xlu0 %v2571, 32
  %v2579 = vpop.permute.xlu0 %2578
  %v2582 = vadd.f32 %v2490, %v2577
  %v2583 = vadd.f32 %v2491, %v2579
  %v2584 = vlaneseq
  %v2585 = vshrl.u32 %v2584, 7
  %v2586 = vsub.s32 6, %v2585
  %v2587 = vrot.slane %v80, %v2586
  %v2588 = vadd.f32 %v2582, %v2587
  %v2589 = vadd.f32 %v2583, %v2587
  %v2590 = vadd.f32 %v1222, %v2588
  %v2591 = vadd.f32 %v1223, %v2589
  %v2592 = vsel %vm225, %v2590, 0.0
  %2593 = vadd.xlane.f32.xlu0 %v2592
  %v2594 = vpop.xlane.xlu0 %2593
  %v2595 = vsel %vm1187, %v2591, 0.0
  %2596 = vadd.xlane.f32.xlu0 %v2595
  %v2597 = vpop.xlane.xlu0 %2596
  %v2598 = vmul.f32 %v2594, %v1191
  %v2599 = vmul.f32 %v2597, %v1191
  %v2600 = vsub.f32 %v2590, %v2598
  %v2601 = vsub.f32 %v2591, %v2599
  %v2602 = vmul.f32 %v2600, %v2600
  %v2603 = vmul.f32 %v2601, %v2601
  %v2604 = vsel %vm225, %v2602, 0.0
  %2605 = vadd.xlane.f32.xlu0 %v2604
  %v2606 = vpop.xlane.xlu0 %2605
  %v2607 = vsel %vm1187, %v2603, 0.0
  %2608 = vadd.xlane.f32.xlu0 %v2607
  %v2609 = vpop.xlane.xlu0 %2608
  %v2610 = vmul.f32 %v2606, %v1191
  %v2611 = vmul.f32 %v2609, %v1191
  %v2612 = vadd.f32 %v2610, 1e-05
  %v2613 = vadd.f32 %v2611, 1e-05
  %v2614 = vrsqrt.pop %v2612
  %v2615 = vrsqrt.pop %v2613
  %v2616 = vmul.f32 %v2600, %v2614
  %v2617 = vmul.f32 %v2601, %v2615
  %v2618 = vlaneseq
  %v2619 = vshrl.u32 %v2618, 7
  %v2620 = vsub.s32 7, %v2619
  %v2621 = vrot.slane %v80, %v2620
  %v2622 = vmul.f32 %v2616, %v2621
  %v2623 = vmul.f32 %v2617, %v2621
  %v2624 = vlaneseq
  %v2625 = vshrl.u32 %v2624, 7
  %v2626 = vsub.s32 0, %v2625
  %v2627 = vrot.slane %v81, %v2626
  %v2628 = vadd.f32 %v2622, %v2627
  %v2629 = vadd.f32 %v2623, %v2627
  %v2630 = vpack.c.bf16 %v2629, %v2628
  %s2631 = scalar_lea.vmem %s2, 16
  %v2632 = vld [vmem:[%s2631] sm:$0xf]
  %v2633 = vld [vmem:[%s2631 + $0x4] sm:$0xf]
  %v2634 = vld [vmem:[%s2631 + $0x8] sm:$0xf]
  %v2635 = vld [vmem:[%s2631 + $0xc] sm:$0xf]
  %v2636 = vlaneseq
  %v2637 = vshrl.u32 %v2636, 7
  %v2638 = vsub.s32 1, %v2637
  %v2639 = vrot.slane %v81, %v2638
  %v2644 = vunpack.c.l.b16 %v2632
  %v2645 = vunpack.c.l.b16 %v2633
  %v2646 = vunpack.c.l.b16 %v2634
  %v2647 = vunpack.c.l.b16 %v2635
  %v2648 = vpack.c.b16 %v2645, %v2644
  %v2649 = vpack.c.b16 %v2647, %v2646
  %v2653 = vsel %vm225, %v2630, 0
  %2655 = vmatprep.subr.bf16.mxu0 0
  %2656 = vmatpush1.bf16.msra.mxu0 0
  %2657 = vmatprep.subr.bf16.mxu0 0
  %2658 = vmatpush1.bf16.msra.mxu0 0
  %2659 = vmatprep.subr.bf16.mxu0 0
  %2660 = vmatpush1.bf16.msra.mxu0 0
  %2661 = vmatprep.subr.bf16.mxu0 0
  %2662 = vmatpush1.bf16.msra.mxu0 0
  %2663 = vmatprep.subr.bf16.mxu0 0
  %2664 = vmatpush1.bf16.msra.mxu0 0
  %2665 = vmatprep.subr.bf16.mxu0 0
  %2666 = vmatpush1.bf16.msra.mxu0 0
  %2667 = vmatprep.subr.bf16.mxu0 0
  %2668 = vmatpush1.bf16.msra.mxu0 %v2649
  %2669 = vmatprep.subr.bf16.mxu0 0
  %2670 = vmatpush1.bf16.msra.mxu0 %v2648
  %2671 = vmatprep.subr.bf16.mxu0 0
  %2672 = vmatpush2.bf16.msra.mxu0 0
  %2673 = vmatprep.subr.bf16.mxu0 0
  %2674 = vmatpush2.bf16.msra.mxu0 0
  %2675 = vmatprep.subr.bf16.mxu0 0
  %2676 = vmatpush2.bf16.msra.mxu0 0
  %2677 = vmatprep.subr.bf16.mxu0 0
  %2678 = vmatpush2.bf16.msra.mxu0 0
  %2679 = vmatprep.subr.bf16.mxu0 0
  %2680 = vmatpush2.bf16.msra.mxu0 0
  %2681 = vmatprep.subr.bf16.mxu0 0
  %2682 = vmatpush2.bf16.msra.mxu0 0
  %2683 = vmatprep.subr.bf16.mxu0 0
  %2684 = vmatpush2.bf16.msra.mxu0 0
  %2685 = vmatprep.subr.bf16.mxu0 0
  %2686 = vmatpush2.bf16.msra.mxu0 0
  %2687 = vmatprep.mubr.bf16.mxu0 0
  %2688 = vmatmul.mubr.bf16.gmra.mxu0 %v2653
  %v2689 = vpop.f32.mrf.mxu0
  %v2690 = vadd.f32 %v2639, %v2689
  %v2691 = vpop.f32.mrf.mxu0
  %v2692 = vpop.f32.mrf.mxu0
  %v2693 = vadd.f32 %v2639, %v2692
  %v2694 = vpop.f32.mrf.mxu0
  %2695 = vdwg.mxu0
  %2698 = vrot.lane.b32.xlu0 %v2690, 96
  %v2699 = vpop.permute.xlu0 %2698
  %2700 = vrot.lane.b32.xlu0 %v2693, 96
  %v2701 = vpop.permute.xlu0 %2700
  %v2702 = vsel %vm276, %v2690, 0
  %v2704 = vsel %vm276, %v2693, 0
  %v2706 = vsel %vm276, %v2699, 0
  %v2708 = vsel %vm276, %v2701, 0
  %2710 = vmatprep.subr.mxu0 0.0
  %2711 = vmatpush1.xpose.msra.mxu0 0.0
  %2712 = vmatprep.subr.mxu0 0.0
  %2713 = vmatpush1.xpose.msra.mxu0 0.0
  %2714 = vmatprep.subr.mxu0 0.0
  %2715 = vmatpush1.xpose.msra.mxu0 0.0
  %2716 = vmatprep.subr.mxu0 0.0
  %2717 = vmatpush1.xpose.msra.mxu0 0.0
  %2718 = vmatprep.subr.mxu0 0.0
  %2719 = vmatpush1.xpose.msra.mxu0 0.0
  %2720 = vmatprep.subr.mxu0 0.0
  %2721 = vmatpush1.xpose.msra.mxu0 0.0
  %2722 = vmatprep.subr.mxu0 0.0
  %2723 = vmatpush1.xpose.msra.mxu0 0.0
  %2724 = vmatprep.subr.mxu0 0.0
  %2725 = vmatpush1.xpose.msra.mxu0 0.0
  %2726 = vmatprep.subr.mxu0 0.0
  %2727 = vmatpush1.xpose.msra.mxu0 0.0
  %2728 = vmatprep.subr.mxu0 0.0
  %2729 = vmatpush1.xpose.msra.mxu0 0.0
  %2730 = vmatprep.subr.mxu0 0.0
  %2731 = vmatpush1.xpose.msra.mxu0 0.0
  %2732 = vmatprep.subr.mxu0 0.0
  %2733 = vmatpush1.xpose.msra.mxu0 0.0
  %2734 = vmatprep.subr.mxu0 0.0
  %2735 = vmatpush1.xpose.msra.mxu0 0.0
  %2736 = vmatprep.subr.mxu0 0.0
  %2737 = vmatpush1.xpose.msra.mxu0 0.0
  %2738 = vmatprep.subr.mxu0 0.0
  %2739 = vmatpush1.xpose.msra.mxu0 %v2708
  %2740 = vmatprep.subr.mxu0 0.0
  %2741 = vmatpush1.xpose.msra.mxu0 %v2706
  %2742 = vmatprep.subr.mxu0 0.0
  %2743 = vmatpush2.xpose.msra.mxu0 0.0
  %2744 = vmatprep.subr.mxu0 0.0
  %2745 = vmatpush2.xpose.msra.mxu0 0.0
  %2746 = vmatprep.subr.mxu0 0.0
  %2747 = vmatpush2.xpose.msra.mxu0 0.0
  %2748 = vmatprep.subr.mxu0 0.0
  %2749 = vmatpush2.xpose.msra.mxu0 0.0
  %2750 = vmatprep.subr.mxu0 0.0
  %2751 = vmatpush2.xpose.msra.mxu0 0.0
  %2752 = vmatprep.subr.mxu0 0.0
  %2753 = vmatpush2.xpose.msra.mxu0 0.0
  %2754 = vmatprep.subr.mxu0 0.0
  %2755 = vmatpush2.xpose.msra.mxu0 0.0
  %2756 = vmatprep.subr.mxu0 0.0
  %2757 = vmatpush2.xpose.msra.mxu0 0.0
  %2758 = vmatprep.subr.mxu0 0.0
  %2759 = vmatpush2.xpose.msra.mxu0 0.0
  %2760 = vmatprep.subr.mxu0 0.0
  %2761 = vmatpush2.xpose.msra.mxu0 0.0
  %2762 = vmatprep.subr.mxu0 0.0
  %2763 = vmatpush2.xpose.msra.mxu0 0.0
  %2764 = vmatprep.subr.mxu0 0.0
  %2765 = vmatpush2.xpose.msra.mxu0 0.0
  %2766 = vmatprep.subr.mxu0 0.0
  %2767 = vmatpush2.xpose.msra.mxu0 0.0
  %2768 = vmatprep.subr.mxu0 0.0
  %2769 = vmatpush2.xpose.msra.mxu0 0.0
  %2770 = vmatprep.subr.mxu0 0.0
  %2771 = vmatpush2.xpose.msra.mxu0 0.0
  %2772 = vmatprep.subr.mxu0 0.0
  %2773 = vmatpush2.xpose.msra.mxu0 0.0
  %2774 = vmatprep.mubr.f32.mxu0 0.0
  %2775 = vmatmul.mubr.f32.gmra.mxu0 %v2702
  %v2776 = vpop.f32.mrf.mxu0
  %v2777 = vadd.f32 %v105, %v2776
  %v2778 = vpop.f32.mrf.mxu0
  %2779 = vmatprep.mubr.f32.mxu0 0.0
  %2780 = vmatmul.mubr.f32.gmra.mxu0 %v2704
  %v2781 = vpop.f32.mrf.mxu0
  %v2782 = vadd.f32 %v106, %v2781
  %v2783 = vpop.f32.mrf.mxu0
  %2784 = vdwg.mxu0
  %v2785 = vsel %vm360, %v2777, -inf
  %2786 = vmax.xlane.f32.xlu0 %v2785
  %v2787 = vpop.xlane.xlu0 %2786
  %v2788 = vsel %vm364, %v2782, -inf
  %2789 = vmax.xlane.f32.xlu0 %v2788
  %v2790 = vpop.xlane.xlu0 %2789
  %v2791 = vsub.f32 %v2777, %v2787
  %v2792 = vsub.f32 %v2782, %v2790
  %v2793 = vmul.f32 %v2791, 1.442695
  %v2794 = vpow.pop %v2793
  %v2795 = vmul.f32 %v2792, 1.442695
  %v2796 = vpow.pop %v2795
  %v2797 = vsel %vm360, %v2794, 0.0
  %2798 = vadd.xlane.f32.xlu0 %v2797
  %v2799 = vpop.xlane.xlu0 %2798
  %v2800 = vsel %vm364, %v2796, 0.0
  %2801 = vadd.xlane.f32.xlu0 %v2800
  %v2802 = vpop.xlane.xlu0 %2801
  %v2803 = vrcp.pop %v2799
  %v2804 = vrcp.pop %v2802
  %v2805 = vmul.f32 %v2794, %v2803
  %v2806 = vmul.f32 %v2796, %v2804
  %2807 = vrot.lane.b32.xlu0 %v2690, 64
  %v2808 = vpop.permute.xlu0 %2807
  %2809 = vrot.lane.b32.xlu0 %v2693, 64
  %v2810 = vpop.permute.xlu0 %2809
  %v2813 = vsel %vm360, %v2805, 0
  %v2816 = vsel %vm360, %v2806, 0
  %v2818 = vsel %vm395, %v2810, 0
  %2820 = vmatprep.subr.mxu0 0.0
  %2821 = vmatpush1.msra.mxu0 0.0
  %2822 = vmatprep.subr.mxu0 0.0
  %2823 = vmatpush1.msra.mxu0 0.0
  %2824 = vmatprep.subr.mxu0 0.0
  %2825 = vmatpush1.msra.mxu0 0.0
  %2826 = vmatprep.subr.mxu0 0.0
  %2827 = vmatpush1.msra.mxu0 0.0
  %2828 = vmatprep.subr.mxu0 0.0
  %2829 = vmatpush1.msra.mxu0 0.0
  %2830 = vmatprep.subr.mxu0 0.0
  %2831 = vmatpush1.msra.mxu0 0.0
  %2832 = vmatprep.subr.mxu0 0.0
  %2833 = vmatpush1.msra.mxu0 0.0
  %2834 = vmatprep.subr.mxu0 0.0
  %2835 = vmatpush1.msra.mxu0 0.0
  %2836 = vmatprep.subr.mxu0 0.0
  %2837 = vmatpush1.msra.mxu0 0.0
  %2838 = vmatprep.subr.mxu0 0.0
  %2839 = vmatpush1.msra.mxu0 0.0
  %2840 = vmatprep.subr.mxu0 0.0
  %2841 = vmatpush1.msra.mxu0 0.0
  %2842 = vmatprep.subr.mxu0 0.0
  %2843 = vmatpush1.msra.mxu0 0.0
  %2844 = vmatprep.subr.mxu0 0.0
  %2845 = vmatpush1.msra.mxu0 0.0
  %2846 = vmatprep.subr.mxu0 0.0
  %2847 = vmatpush1.msra.mxu0 0.0
  %2848 = vmatprep.subr.mxu0 0.0
  %2849 = vmatpush1.msra.mxu0 %v2818
  %2850 = vmatprep.subr.mxu0 0.0
  %2851 = vmatpush1.msra.mxu0 %v2808
  %2852 = vmatprep.subr.mxu0 0.0
  %2853 = vmatpush2.msra.mxu0 0.0
  %2854 = vmatprep.subr.mxu0 0.0
  %2855 = vmatpush2.msra.mxu0 0.0
  %2856 = vmatprep.subr.mxu0 0.0
  %2857 = vmatpush2.msra.mxu0 0.0
  %2858 = vmatprep.subr.mxu0 0.0
  %2859 = vmatpush2.msra.mxu0 0.0
  %2860 = vmatprep.subr.mxu0 0.0
  %2861 = vmatpush2.msra.mxu0 0.0
  %2862 = vmatprep.subr.mxu0 0.0
  %2863 = vmatpush2.msra.mxu0 0.0
  %2864 = vmatprep.subr.mxu0 0.0
  %2865 = vmatpush2.msra.mxu0 0.0
  %2866 = vmatprep.subr.mxu0 0.0
  %2867 = vmatpush2.msra.mxu0 0.0
  %2868 = vmatprep.subr.mxu0 0.0
  %2869 = vmatpush2.msra.mxu0 0.0
  %2870 = vmatprep.subr.mxu0 0.0
  %2871 = vmatpush2.msra.mxu0 0.0
  %2872 = vmatprep.subr.mxu0 0.0
  %2873 = vmatpush2.msra.mxu0 0.0
  %2874 = vmatprep.subr.mxu0 0.0
  %2875 = vmatpush2.msra.mxu0 0.0
  %2876 = vmatprep.subr.mxu0 0.0
  %2877 = vmatpush2.msra.mxu0 0.0
  %2878 = vmatprep.subr.mxu0 0.0
  %2879 = vmatpush2.msra.mxu0 0.0
  %2880 = vmatprep.subr.mxu0 0.0
  %2881 = vmatpush2.msra.mxu0 0.0
  %2882 = vmatprep.subr.mxu0 0.0
  %2883 = vmatpush2.msra.mxu0 0.0
  %2884 = vmatprep.mubr.f32.mxu0 0.0
  %2885 = vmatmul.mubr.f32.gmra.mxu0 %v2813
  %v2886 = vpop.f32.mrf.mxu0
  %v2887 = vadd.f32 0.0, %v2886
  %v2888 = vpop.f32.mrf.mxu0
  %2889 = vmatprep.mubr.f32.mxu0 0.0
  %2890 = vmatmul.mubr.f32.gmra.mxu0 %v2816
  %v2891 = vpop.f32.mrf.mxu0
  %v2892 = vadd.f32 0.0, %v2891
  %v2893 = vpop.f32.mrf.mxu0
  %2894 = vdwg.mxu0
  %2895 = vst.msk [vmem:[#allocation2] sm:$0xff] %vm276, %v2887
  %2896 = vst.msk [vmem:[#allocation2 + $0x8] sm:$0x3] %vm474, %v2892
  %2897 = vrot.lane.b32.xlu0 %v2690, 120
  %v2898 = vpop.permute.xlu0 %2897
  %2899 = vrot.lane.b32.xlu0 %v2693, 120
  %v2900 = vpop.permute.xlu0 %2899
  %2901 = vrot.lane.b32.xlu0 %v2690, 88
  %v2902 = vpop.permute.xlu0 %2901
  %2903 = vrot.lane.b32.xlu0 %v2693, 88
  %v2904 = vpop.permute.xlu0 %2903
  %v2905 = vsel %vm276, %v2898, 0
  %v2907 = vsel %vm276, %v2900, 0
  %v2909 = vsel %vm276, %v2902, 0
  %v2911 = vsel %vm276, %v2904, 0
  %2913 = vmatprep.subr.mxu0 0.0
  %2914 = vmatpush1.xpose.msra.mxu0 0.0
  %2915 = vmatprep.subr.mxu0 0.0
  %2916 = vmatpush1.xpose.msra.mxu0 0.0
  %2917 = vmatprep.subr.mxu0 0.0
  %2918 = vmatpush1.xpose.msra.mxu0 0.0
  %2919 = vmatprep.subr.mxu0 0.0
  %2920 = vmatpush1.xpose.msra.mxu0 0.0
  %2921 = vmatprep.subr.mxu0 0.0
  %2922 = vmatpush1.xpose.msra.mxu0 0.0
  %2923 = vmatprep.subr.mxu0 0.0
  %2924 = vmatpush1.xpose.msra.mxu0 0.0
  %2925 = vmatprep.subr.mxu0 0.0
  %2926 = vmatpush1.xpose.msra.mxu0 0.0
  %2927 = vmatprep.subr.mxu0 0.0
  %2928 = vmatpush1.xpose.msra.mxu0 0.0
  %2929 = vmatprep.subr.mxu0 0.0
  %2930 = vmatpush1.xpose.msra.mxu0 0.0
  %2931 = vmatprep.subr.mxu0 0.0
  %2932 = vmatpush1.xpose.msra.mxu0 0.0
  %2933 = vmatprep.subr.mxu0 0.0
  %2934 = vmatpush1.xpose.msra.mxu0 0.0
  %2935 = vmatprep.subr.mxu0 0.0
  %2936 = vmatpush1.xpose.msra.mxu0 0.0
  %2937 = vmatprep.subr.mxu0 0.0
  %2938 = vmatpush1.xpose.msra.mxu0 0.0
  %2939 = vmatprep.subr.mxu0 0.0
  %2940 = vmatpush1.xpose.msra.mxu0 0.0
  %2941 = vmatprep.subr.mxu0 0.0
  %2942 = vmatpush1.xpose.msra.mxu0 %v2911
  %2943 = vmatprep.subr.mxu0 0.0
  %2944 = vmatpush1.xpose.msra.mxu0 %v2909
  %2945 = vmatprep.subr.mxu0 0.0
  %2946 = vmatpush2.xpose.msra.mxu0 0.0
  %2947 = vmatprep.subr.mxu0 0.0
  %2948 = vmatpush2.xpose.msra.mxu0 0.0
  %2949 = vmatprep.subr.mxu0 0.0
  %2950 = vmatpush2.xpose.msra.mxu0 0.0
  %2951 = vmatprep.subr.mxu0 0.0
  %2952 = vmatpush2.xpose.msra.mxu0 0.0
  %2953 = vmatprep.subr.mxu0 0.0
  %2954 = vmatpush2.xpose.msra.mxu0 0.0
  %2955 = vmatprep.subr.mxu0 0.0
  %2956 = vmatpush2.xpose.msra.mxu0 0.0
  %2957 = vmatprep.subr.mxu0 0.0
  %2958 = vmatpush2.xpose.msra.mxu0 0.0
  %2959 = vmatprep.subr.mxu0 0.0
  %2960 = vmatpush2.xpose.msra.mxu0 0.0
  %2961 = vmatprep.subr.mxu0 0.0
  %2962 = vmatpush2.xpose.msra.mxu0 0.0
  %2963 = vmatprep.subr.mxu0 0.0
  %2964 = vmatpush2.xpose.msra.mxu0 0.0
  %2965 = vmatprep.subr.mxu0 0.0
  %2966 = vmatpush2.xpose.msra.mxu0 0.0
  %2967 = vmatprep.subr.mxu0 0.0
  %2968 = vmatpush2.xpose.msra.mxu0 0.0
  %2969 = vmatprep.subr.mxu0 0.0
  %2970 = vmatpush2.xpose.msra.mxu0 0.0
  %2971 = vmatprep.subr.mxu0 0.0
  %2972 = vmatpush2.xpose.msra.mxu0 0.0
  %2973 = vmatprep.subr.mxu0 0.0
  %2974 = vmatpush2.xpose.msra.mxu0 0.0
  %2975 = vmatprep.subr.mxu0 0.0
  %2976 = vmatpush2.xpose.msra.mxu0 0.0
  %2977 = vmatprep.mubr.f32.mxu0 0.0
  %2978 = vmatmul.mubr.f32.gmra.mxu0 %v2905
  %v2979 = vpop.f32.mrf.mxu0
  %v2980 = vadd.f32 %v105, %v2979
  %v2981 = vpop.f32.mrf.mxu0
  %2982 = vmatprep.mubr.f32.mxu0 0.0
  %2983 = vmatmul.mubr.f32.gmra.mxu0 %v2907
  %v2984 = vpop.f32.mrf.mxu0
  %v2985 = vadd.f32 %v106, %v2984
  %v2986 = vpop.f32.mrf.mxu0
  %2987 = vdwg.mxu0
  %v2988 = vsel %vm360, %v2980, -inf
  %2989 = vmax.xlane.f32.xlu0 %v2988
  %v2990 = vpop.xlane.xlu0 %2989
  %v2991 = vsel %vm364, %v2985, -inf
  %2992 = vmax.xlane.f32.xlu0 %v2991
  %v2993 = vpop.xlane.xlu0 %2992
  %v2994 = vsub.f32 %v2980, %v2990
  %v2995 = vsub.f32 %v2985, %v2993
  %v2996 = vmul.f32 %v2994, 1.442695
  %v2997 = vpow.pop %v2996
  %v2998 = vmul.f32 %v2995, 1.442695
  %v2999 = vpow.pop %v2998
  %v3000 = vsel %vm360, %v2997, 0.0
  %3001 = vadd.xlane.f32.xlu0 %v3000
  %v3002 = vpop.xlane.xlu0 %3001
  %v3003 = vsel %vm364, %v2999, 0.0
  %3004 = vadd.xlane.f32.xlu0 %v3003
  %v3005 = vpop.xlane.xlu0 %3004
  %v3006 = vrcp.pop %v3002
  %v3007 = vrcp.pop %v3005
  %v3008 = vmul.f32 %v2997, %v3006
  %v3009 = vmul.f32 %v2999, %v3007
  %3010 = vrot.lane.b32.xlu0 %v2690, 56
  %v3011 = vpop.permute.xlu0 %3010
  %3012 = vrot.lane.b32.xlu0 %v2693, 56
  %v3013 = vpop.permute.xlu0 %3012
  %v3016 = vsel %vm360, %v3008, 0
  %v3019 = vsel %vm360, %v3009, 0
  %v3021 = vsel %vm395, %v3013, 0
  %3023 = vmatprep.subr.mxu0 0.0
  %3024 = vmatpush1.msra.mxu0 0.0
  %3025 = vmatprep.subr.mxu0 0.0
  %3026 = vmatpush1.msra.mxu0 0.0
  %3027 = vmatprep.subr.mxu0 0.0
  %3028 = vmatpush1.msra.mxu0 0.0
  %3029 = vmatprep.subr.mxu0 0.0
  %3030 = vmatpush1.msra.mxu0 0.0
  %3031 = vmatprep.subr.mxu0 0.0
  %3032 = vmatpush1.msra.mxu0 0.0
  %3033 = vmatprep.subr.mxu0 0.0
  %3034 = vmatpush1.msra.mxu0 0.0
  %3035 = vmatprep.subr.mxu0 0.0
  %3036 = vmatpush1.msra.mxu0 0.0
  %3037 = vmatprep.subr.mxu0 0.0
  %3038 = vmatpush1.msra.mxu0 0.0
  %3039 = vmatprep.subr.mxu0 0.0
  %3040 = vmatpush1.msra.mxu0 0.0
  %3041 = vmatprep.subr.mxu0 0.0
  %3042 = vmatpush1.msra.mxu0 0.0
  %3043 = vmatprep.subr.mxu0 0.0
  %3044 = vmatpush1.msra.mxu0 0.0
  %3045 = vmatprep.subr.mxu0 0.0
  %3046 = vmatpush1.msra.mxu0 0.0
  %3047 = vmatprep.subr.mxu0 0.0
  %3048 = vmatpush1.msra.mxu0 0.0
  %3049 = vmatprep.subr.mxu0 0.0
  %3050 = vmatpush1.msra.mxu0 0.0
  %3051 = vmatprep.subr.mxu0 0.0
  %3052 = vmatpush1.msra.mxu0 %v3021
  %3053 = vmatprep.subr.mxu0 0.0
  %3054 = vmatpush1.msra.mxu0 %v3011
  %3055 = vmatprep.subr.mxu0 0.0
  %3056 = vmatpush2.msra.mxu0 0.0
  %3057 = vmatprep.subr.mxu0 0.0
  %3058 = vmatpush2.msra.mxu0 0.0
  %3059 = vmatprep.subr.mxu0 0.0
  %3060 = vmatpush2.msra.mxu0 0.0
  %3061 = vmatprep.subr.mxu0 0.0
  %3062 = vmatpush2.msra.mxu0 0.0
  %3063 = vmatprep.subr.mxu0 0.0
  %3064 = vmatpush2.msra.mxu0 0.0
  %3065 = vmatprep.subr.mxu0 0.0
  %3066 = vmatpush2.msra.mxu0 0.0
  %3067 = vmatprep.subr.mxu0 0.0
  %3068 = vmatpush2.msra.mxu0 0.0
  %3069 = vmatprep.subr.mxu0 0.0
  %3070 = vmatpush2.msra.mxu0 0.0
  %3071 = vmatprep.subr.mxu0 0.0
  %3072 = vmatpush2.msra.mxu0 0.0
  %3073 = vmatprep.subr.mxu0 0.0
  %3074 = vmatpush2.msra.mxu0 0.0
  %3075 = vmatprep.subr.mxu0 0.0
  %3076 = vmatpush2.msra.mxu0 0.0
  %3077 = vmatprep.subr.mxu0 0.0
  %3078 = vmatpush2.msra.mxu0 0.0
  %3079 = vmatprep.subr.mxu0 0.0
  %3080 = vmatpush2.msra.mxu0 0.0
  %3081 = vmatprep.subr.mxu0 0.0
  %3082 = vmatpush2.msra.mxu0 0.0
  %3083 = vmatprep.subr.mxu0 0.0
  %3084 = vmatpush2.msra.mxu0 0.0
  %3085 = vmatprep.subr.mxu0 0.0
  %3086 = vmatpush2.msra.mxu0 0.0
  %3087 = vmatprep.mubr.f32.mxu0 0.0
  %3088 = vmatmul.mubr.f32.gmra.mxu0 %v3016
  %v3089 = vpop.f32.mrf.mxu0
  %v3090 = vadd.f32 0.0, %v3089
  %v3091 = vpop.f32.mrf.mxu0
  %3092 = vmatprep.mubr.f32.mxu0 0.0
  %3093 = vmatmul.mubr.f32.gmra.mxu0 %v3019
  %v3094 = vpop.f32.mrf.mxu0
  %v3095 = vadd.f32 0.0, %v3094
  %v3096 = vpop.f32.mrf.mxu0
  %3097 = vdwg.mxu0
  %3100 = vrot.lane.b32.xlu0 %v3090, 8
  %v3101 = vpop.permute.xlu0 %3100
  %3102 = vrot.lane.b32.xlu0 %v3095, 8
  %v3103 = vpop.permute.xlu0 %3102
  %3106 = vst.msk [vmem:[#allocation2] sm:$0xff] %vm685, %v3101
  %3107 = vst.msk [vmem:[#allocation2 + $0x8] sm:$0x3] %vm687, %v3103
  %3108 = vrot.lane.b32.xlu0 %v2690, 112
  %v3109 = vpop.permute.xlu0 %3108
  %3110 = vrot.lane.b32.xlu0 %v2693, 112
  %v3111 = vpop.permute.xlu0 %3110
  %3112 = vrot.lane.b32.xlu0 %v2690, 80
  %v3113 = vpop.permute.xlu0 %3112
  %3114 = vrot.lane.b32.xlu0 %v2693, 80
  %v3115 = vpop.permute.xlu0 %3114
  %v3116 = vsel %vm276, %v3109, 0
  %v3118 = vsel %vm276, %v3111, 0
  %v3120 = vsel %vm276, %v3113, 0
  %v3122 = vsel %vm276, %v3115, 0
  %3124 = vmatprep.subr.mxu0 0.0
  %3125 = vmatpush1.xpose.msra.mxu0 0.0
  %3126 = vmatprep.subr.mxu0 0.0
  %3127 = vmatpush1.xpose.msra.mxu0 0.0
  %3128 = vmatprep.subr.mxu0 0.0
  %3129 = vmatpush1.xpose.msra.mxu0 0.0
  %3130 = vmatprep.subr.mxu0 0.0
  %3131 = vmatpush1.xpose.msra.mxu0 0.0
  %3132 = vmatprep.subr.mxu0 0.0
  %3133 = vmatpush1.xpose.msra.mxu0 0.0
  %3134 = vmatprep.subr.mxu0 0.0
  %3135 = vmatpush1.xpose.msra.mxu0 0.0
  %3136 = vmatprep.subr.mxu0 0.0
  %3137 = vmatpush1.xpose.msra.mxu0 0.0
  %3138 = vmatprep.subr.mxu0 0.0
  %3139 = vmatpush1.xpose.msra.mxu0 0.0
  %3140 = vmatprep.subr.mxu0 0.0
  %3141 = vmatpush1.xpose.msra.mxu0 0.0
  %3142 = vmatprep.subr.mxu0 0.0
  %3143 = vmatpush1.xpose.msra.mxu0 0.0
  %3144 = vmatprep.subr.mxu0 0.0
  %3145 = vmatpush1.xpose.msra.mxu0 0.0
  %3146 = vmatprep.subr.mxu0 0.0
  %3147 = vmatpush1.xpose.msra.mxu0 0.0
  %3148 = vmatprep.subr.mxu0 0.0
  %3149 = vmatpush1.xpose.msra.mxu0 0.0
  %3150 = vmatprep.subr.mxu0 0.0
  %3151 = vmatpush1.xpose.msra.mxu0 0.0
  %3152 = vmatprep.subr.mxu0 0.0
  %3153 = vmatpush1.xpose.msra.mxu0 %v3122
  %3154 = vmatprep.subr.mxu0 0.0
  %3155 = vmatpush1.xpose.msra.mxu0 %v3120
  %3156 = vmatprep.subr.mxu0 0.0
  %3157 = vmatpush2.xpose.msra.mxu0 0.0
  %3158 = vmatprep.subr.mxu0 0.0
  %3159 = vmatpush2.xpose.msra.mxu0 0.0
  %3160 = vmatprep.subr.mxu0 0.0
  %3161 = vmatpush2.xpose.msra.mxu0 0.0
  %3162 = vmatprep.subr.mxu0 0.0
  %3163 = vmatpush2.xpose.msra.mxu0 0.0
  %3164 = vmatprep.subr.mxu0 0.0
  %3165 = vmatpush2.xpose.msra.mxu0 0.0
  %3166 = vmatprep.subr.mxu0 0.0
  %3167 = vmatpush2.xpose.msra.mxu0 0.0
  %3168 = vmatprep.subr.mxu0 0.0
  %3169 = vmatpush2.xpose.msra.mxu0 0.0
  %3170 = vmatprep.subr.mxu0 0.0
  %3171 = vmatpush2.xpose.msra.mxu0 0.0
  %3172 = vmatprep.subr.mxu0 0.0
  %3173 = vmatpush2.xpose.msra.mxu0 0.0
  %3174 = vmatprep.subr.mxu0 0.0
  %3175 = vmatpush2.xpose.msra.mxu0 0.0
  %3176 = vmatprep.subr.mxu0 0.0
  %3177 = vmatpush2.xpose.msra.mxu0 0.0
  %3178 = vmatprep.subr.mxu0 0.0
  %3179 = vmatpush2.xpose.msra.mxu0 0.0
  %3180 = vmatprep.subr.mxu0 0.0
  %3181 = vmatpush2.xpose.msra.mxu0 0.0
  %3182 = vmatprep.subr.mxu0 0.0
  %3183 = vmatpush2.xpose.msra.mxu0 0.0
  %3184 = vmatprep.subr.mxu0 0.0
  %3185 = vmatpush2.xpose.msra.mxu0 0.0
  %3186 = vmatprep.subr.mxu0 0.0
  %3187 = vmatpush2.xpose.msra.mxu0 0.0
  %3188 = vmatprep.mubr.f32.mxu0 0.0
  %3189 = vmatmul.mubr.f32.gmra.mxu0 %v3116
  %v3190 = vpop.f32.mrf.mxu0
  %v3191 = vadd.f32 %v105, %v3190
  %v3192 = vpop.f32.mrf.mxu0
  %3193 = vmatprep.mubr.f32.mxu0 0.0
  %3194 = vmatmul.mubr.f32.gmra.mxu0 %v3118
  %v3195 = vpop.f32.mrf.mxu0
  %v3196 = vadd.f32 %v106, %v3195
  %v3197 = vpop.f32.mrf.mxu0
  %3198 = vdwg.mxu0
  %v3199 = vsel %vm360, %v3191, -inf
  %3200 = vmax.xlane.f32.xlu0 %v3199
  %v3201 = vpop.xlane.xlu0 %3200
  %v3202 = vsel %vm364, %v3196, -inf
  %3203 = vmax.xlane.f32.xlu0 %v3202
  %v3204 = vpop.xlane.xlu0 %3203
  %v3205 = vsub.f32 %v3191, %v3201
  %v3206 = vsub.f32 %v3196, %v3204
  %v3207 = vmul.f32 %v3205, 1.442695
  %v3208 = vpow.pop %v3207
  %v3209 = vmul.f32 %v3206, 1.442695
  %v3210 = vpow.pop %v3209
  %v3211 = vsel %vm360, %v3208, 0.0
  %3212 = vadd.xlane.f32.xlu0 %v3211
  %v3213 = vpop.xlane.xlu0 %3212
  %v3214 = vsel %vm364, %v3210, 0.0
  %3215 = vadd.xlane.f32.xlu0 %v3214
  %v3216 = vpop.xlane.xlu0 %3215
  %v3217 = vrcp.pop %v3213
  %v3218 = vrcp.pop %v3216
  %v3219 = vmul.f32 %v3208, %v3217
  %v3220 = vmul.f32 %v3210, %v3218
  %3221 = vrot.lane.b32.xlu0 %v2690, 48
  %v3222 = vpop.permute.xlu0 %3221
  %3223 = vrot.lane.b32.xlu0 %v2693, 48
  %v3224 = vpop.permute.xlu0 %3223
  %v3227 = vsel %vm360, %v3219, 0
  %v3230 = vsel %vm360, %v3220, 0
  %v3232 = vsel %vm395, %v3224, 0
  %3234 = vmatprep.subr.mxu0 0.0
  %3235 = vmatpush1.msra.mxu0 0.0
  %3236 = vmatprep.subr.mxu0 0.0
  %3237 = vmatpush1.msra.mxu0 0.0
  %3238 = vmatprep.subr.mxu0 0.0
  %3239 = vmatpush1.msra.mxu0 0.0
  %3240 = vmatprep.subr.mxu0 0.0
  %3241 = vmatpush1.msra.mxu0 0.0
  %3242 = vmatprep.subr.mxu0 0.0
  %3243 = vmatpush1.msra.mxu0 0.0
  %3244 = vmatprep.subr.mxu0 0.0
  %3245 = vmatpush1.msra.mxu0 0.0
  %3246 = vmatprep.subr.mxu0 0.0
  %3247 = vmatpush1.msra.mxu0 0.0
  %3248 = vmatprep.subr.mxu0 0.0
  %3249 = vmatpush1.msra.mxu0 0.0
  %3250 = vmatprep.subr.mxu0 0.0
  %3251 = vmatpush1.msra.mxu0 0.0
  %3252 = vmatprep.subr.mxu0 0.0
  %3253 = vmatpush1.msra.mxu0 0.0
  %3254 = vmatprep.subr.mxu0 0.0
  %3255 = vmatpush1.msra.mxu0 0.0
  %3256 = vmatprep.subr.mxu0 0.0
  %3257 = vmatpush1.msra.mxu0 0.0
  %3258 = vmatprep.subr.mxu0 0.0
  %3259 = vmatpush1.msra.mxu0 0.0
  %3260 = vmatprep.subr.mxu0 0.0
  %3261 = vmatpush1.msra.mxu0 0.0
  %3262 = vmatprep.subr.mxu0 0.0
  %3263 = vmatpush1.msra.mxu0 %v3232
  %3264 = vmatprep.subr.mxu0 0.0
  %3265 = vmatpush1.msra.mxu0 %v3222
  %3266 = vmatprep.subr.mxu0 0.0
  %3267 = vmatpush2.msra.mxu0 0.0
  %3268 = vmatprep.subr.mxu0 0.0
  %3269 = vmatpush2.msra.mxu0 0.0
  %3270 = vmatprep.subr.mxu0 0.0
  %3271 = vmatpush2.msra.mxu0 0.0
  %3272 = vmatprep.subr.mxu0 0.0
  %3273 = vmatpush2.msra.mxu0 0.0
  %3274 = vmatprep.subr.mxu0 0.0
  %3275 = vmatpush2.msra.mxu0 0.0
  %3276 = vmatprep.subr.mxu0 0.0
  %3277 = vmatpush2.msra.mxu0 0.0
  %3278 = vmatprep.subr.mxu0 0.0
  %3279 = vmatpush2.msra.mxu0 0.0
  %3280 = vmatprep.subr.mxu0 0.0
  %3281 = vmatpush2.msra.mxu0 0.0
  %3282 = vmatprep.subr.mxu0 0.0
  %3283 = vmatpush2.msra.mxu0 0.0
  %3284 = vmatprep.subr.mxu0 0.0
  %3285 = vmatpush2.msra.mxu0 0.0
  %3286 = vmatprep.subr.mxu0 0.0
  %3287 = vmatpush2.msra.mxu0 0.0
  %3288 = vmatprep.subr.mxu0 0.0
  %3289 = vmatpush2.msra.mxu0 0.0
  %3290 = vmatprep.subr.mxu0 0.0
  %3291 = vmatpush2.msra.mxu0 0.0
  %3292 = vmatprep.subr.mxu0 0.0
  %3293 = vmatpush2.msra.mxu0 0.0
  %3294 = vmatprep.subr.mxu0 0.0
  %3295 = vmatpush2.msra.mxu0 0.0
  %3296 = vmatprep.subr.mxu0 0.0
  %3297 = vmatpush2.msra.mxu0 0.0
  %3298 = vmatprep.mubr.f32.mxu0 0.0
  %3299 = vmatmul.mubr.f32.gmra.mxu0 %v3227
  %v3300 = vpop.f32.mrf.mxu0
  %v3301 = vadd.f32 0.0, %v3300
  %v3302 = vpop.f32.mrf.mxu0
  %3303 = vmatprep.mubr.f32.mxu0 0.0
  %3304 = vmatmul.mubr.f32.gmra.mxu0 %v3230
  %v3305 = vpop.f32.mrf.mxu0
  %v3306 = vadd.f32 0.0, %v3305
  %v3307 = vpop.f32.mrf.mxu0
  %3308 = vdwg.mxu0
  %3311 = vrot.lane.b32.xlu0 %v3301, 16
  %v3312 = vpop.permute.xlu0 %3311
  %3313 = vrot.lane.b32.xlu0 %v3306, 16
  %v3314 = vpop.permute.xlu0 %3313
  %3317 = vst.msk [vmem:[#allocation2] sm:$0xff] %vm898, %v3312
  %3318 = vst.msk [vmem:[#allocation2 + $0x8] sm:$0x3] %vm900, %v3314
  %3319 = vrot.lane.b32.xlu0 %v2690, 104
  %v3320 = vpop.permute.xlu0 %3319
  %3321 = vrot.lane.b32.xlu0 %v2693, 104
  %v3322 = vpop.permute.xlu0 %3321
  %3323 = vrot.lane.b32.xlu0 %v2690, 72
  %v3324 = vpop.permute.xlu0 %3323
  %3325 = vrot.lane.b32.xlu0 %v2693, 72
  %v3326 = vpop.permute.xlu0 %3325
  %v3327 = vsel %vm276, %v3320, 0
  %v3329 = vsel %vm276, %v3322, 0
  %v3331 = vsel %vm276, %v3324, 0
  %v3333 = vsel %vm276, %v3326, 0
  %3335 = vmatprep.subr.mxu0 0.0
  %3336 = vmatpush1.xpose.msra.mxu0 0.0
  %3337 = vmatprep.subr.mxu0 0.0
  %3338 = vmatpush1.xpose.msra.mxu0 0.0
  %3339 = vmatprep.subr.mxu0 0.0
  %3340 = vmatpush1.xpose.msra.mxu0 0.0
  %3341 = vmatprep.subr.mxu0 0.0
  %3342 = vmatpush1.xpose.msra.mxu0 0.0
  %3343 = vmatprep.subr.mxu0 0.0
  %3344 = vmatpush1.xpose.msra.mxu0 0.0
  %3345 = vmatprep.subr.mxu0 0.0
  %3346 = vmatpush1.xpose.msra.mxu0 0.0
  %3347 = vmatprep.subr.mxu0 0.0
  %3348 = vmatpush1.xpose.msra.mxu0 0.0
  %3349 = vmatprep.subr.mxu0 0.0
  %3350 = vmatpush1.xpose.msra.mxu0 0.0
  %3351 = vmatprep.subr.mxu0 0.0
  %3352 = vmatpush1.xpose.msra.mxu0 0.0
  %3353 = vmatprep.subr.mxu0 0.0
  %3354 = vmatpush1.xpose.msra.mxu0 0.0
  %3355 = vmatprep.subr.mxu0 0.0
  %3356 = vmatpush1.xpose.msra.mxu0 0.0
  %3357 = vmatprep.subr.mxu0 0.0
  %3358 = vmatpush1.xpose.msra.mxu0 0.0
  %3359 = vmatprep.subr.mxu0 0.0
  %3360 = vmatpush1.xpose.msra.mxu0 0.0
  %3361 = vmatprep.subr.mxu0 0.0
  %3362 = vmatpush1.xpose.msra.mxu0 0.0
  %3363 = vmatprep.subr.mxu0 0.0
  %3364 = vmatpush1.xpose.msra.mxu0 %v3333
  %3365 = vmatprep.subr.mxu0 0.0
  %3366 = vmatpush1.xpose.msra.mxu0 %v3331
  %3367 = vmatprep.subr.mxu0 0.0
  %3368 = vmatpush2.xpose.msra.mxu0 0.0
  %3369 = vmatprep.subr.mxu0 0.0
  %3370 = vmatpush2.xpose.msra.mxu0 0.0
  %3371 = vmatprep.subr.mxu0 0.0
  %3372 = vmatpush2.xpose.msra.mxu0 0.0
  %3373 = vmatprep.subr.mxu0 0.0
  %3374 = vmatpush2.xpose.msra.mxu0 0.0
  %3375 = vmatprep.subr.mxu0 0.0
  %3376 = vmatpush2.xpose.msra.mxu0 0.0
  %3377 = vmatprep.subr.mxu0 0.0
  %3378 = vmatpush2.xpose.msra.mxu0 0.0
  %3379 = vmatprep.subr.mxu0 0.0
  %3380 = vmatpush2.xpose.msra.mxu0 0.0
  %3381 = vmatprep.subr.mxu0 0.0
  %3382 = vmatpush2.xpose.msra.mxu0 0.0
  %3383 = vmatprep.subr.mxu0 0.0
  %3384 = vmatpush2.xpose.msra.mxu0 0.0
  %3385 = vmatprep.subr.mxu0 0.0
  %3386 = vmatpush2.xpose.msra.mxu0 0.0
  %3387 = vmatprep.subr.mxu0 0.0
  %3388 = vmatpush2.xpose.msra.mxu0 0.0
  %3389 = vmatprep.subr.mxu0 0.0
  %3390 = vmatpush2.xpose.msra.mxu0 0.0
  %3391 = vmatprep.subr.mxu0 0.0
  %3392 = vmatpush2.xpose.msra.mxu0 0.0
  %3393 = vmatprep.subr.mxu0 0.0
  %3394 = vmatpush2.xpose.msra.mxu0 0.0
  %3395 = vmatprep.subr.mxu0 0.0
  %3396 = vmatpush2.xpose.msra.mxu0 0.0
  %3397 = vmatprep.subr.mxu0 0.0
  %3398 = vmatpush2.xpose.msra.mxu0 0.0
  %3399 = vmatprep.mubr.f32.mxu0 0.0
  %3400 = vmatmul.mubr.f32.gmra.mxu0 %v3327
  %v3401 = vpop.f32.mrf.mxu0
  %v3402 = vadd.f32 %v105, %v3401
  %v3403 = vpop.f32.mrf.mxu0
  %3404 = vmatprep.mubr.f32.mxu0 0.0
  %3405 = vmatmul.mubr.f32.gmra.mxu0 %v3329
  %v3406 = vpop.f32.mrf.mxu0
  %v3407 = vadd.f32 %v106, %v3406
  %v3408 = vpop.f32.mrf.mxu0
  %3409 = vdwg.mxu0
  %v3410 = vsel %vm360, %v3402, -inf
  %3411 = vmax.xlane.f32.xlu0 %v3410
  %v3412 = vpop.xlane.xlu0 %3411
  %v3413 = vsel %vm364, %v3407, -inf
  %3414 = vmax.xlane.f32.xlu0 %v3413
  %v3415 = vpop.xlane.xlu0 %3414
  %v3416 = vsub.f32 %v3402, %v3412
  %v3417 = vsub.f32 %v3407, %v3415
  %v3418 = vmul.f32 %v3416, 1.442695
  %v3419 = vpow.pop %v3418
  %v3420 = vmul.f32 %v3417, 1.442695
  %v3421 = vpow.pop %v3420
  %v3422 = vsel %vm360, %v3419, 0.0
  %3423 = vadd.xlane.f32.xlu0 %v3422
  %v3424 = vpop.xlane.xlu0 %3423
  %v3425 = vsel %vm364, %v3421, 0.0
  %3426 = vadd.xlane.f32.xlu0 %v3425
  %v3427 = vpop.xlane.xlu0 %3426
  %v3428 = vrcp.pop %v3424
  %v3429 = vrcp.pop %v3427
  %v3430 = vmul.f32 %v3419, %v3428
  %v3431 = vmul.f32 %v3421, %v3429
  %3432 = vrot.lane.b32.xlu0 %v2690, 40
  %v3433 = vpop.permute.xlu0 %3432
  %3434 = vrot.lane.b32.xlu0 %v2693, 40
  %v3435 = vpop.permute.xlu0 %3434
  %v3438 = vsel %vm360, %v3430, 0
  %v3441 = vsel %vm360, %v3431, 0
  %v3443 = vsel %vm395, %v3435, 0
  %3445 = vmatprep.subr.mxu0 0.0
  %3446 = vmatpush1.msra.mxu0 0.0
  %3447 = vmatprep.subr.mxu0 0.0
  %3448 = vmatpush1.msra.mxu0 0.0
  %3449 = vmatprep.subr.mxu0 0.0
  %3450 = vmatpush1.msra.mxu0 0.0
  %3451 = vmatprep.subr.mxu0 0.0
  %3452 = vmatpush1.msra.mxu0 0.0
  %3453 = vmatprep.subr.mxu0 0.0
  %3454 = vmatpush1.msra.mxu0 0.0
  %3455 = vmatprep.subr.mxu0 0.0
  %3456 = vmatpush1.msra.mxu0 0.0
  %3457 = vmatprep.subr.mxu0 0.0
  %3458 = vmatpush1.msra.mxu0 0.0
  %3459 = vmatprep.subr.mxu0 0.0
  %3460 = vmatpush1.msra.mxu0 0.0
  %3461 = vmatprep.subr.mxu0 0.0
  %3462 = vmatpush1.msra.mxu0 0.0
  %3463 = vmatprep.subr.mxu0 0.0
  %3464 = vmatpush1.msra.mxu0 0.0
  %3465 = vmatprep.subr.mxu0 0.0
  %3466 = vmatpush1.msra.mxu0 0.0
  %3467 = vmatprep.subr.mxu0 0.0
  %3468 = vmatpush1.msra.mxu0 0.0
  %3469 = vmatprep.subr.mxu0 0.0
  %3470 = vmatpush1.msra.mxu0 0.0
  %3471 = vmatprep.subr.mxu0 0.0
  %3472 = vmatpush1.msra.mxu0 0.0
  %3473 = vmatprep.subr.mxu0 0.0
  %3474 = vmatpush1.msra.mxu0 %v3443
  %3475 = vmatprep.subr.mxu0 0.0
  %3476 = vmatpush1.msra.mxu0 %v3433
  %3477 = vmatprep.subr.mxu0 0.0
  %3478 = vmatpush2.msra.mxu0 0.0
  %3479 = vmatprep.subr.mxu0 0.0
  %3480 = vmatpush2.msra.mxu0 0.0
  %3481 = vmatprep.subr.mxu0 0.0
  %3482 = vmatpush2.msra.mxu0 0.0
  %3483 = vmatprep.subr.mxu0 0.0
  %3484 = vmatpush2.msra.mxu0 0.0
  %3485 = vmatprep.subr.mxu0 0.0
  %3486 = vmatpush2.msra.mxu0 0.0
  %3487 = vmatprep.subr.mxu0 0.0
  %3488 = vmatpush2.msra.mxu0 0.0
  %3489 = vmatprep.subr.mxu0 0.0
  %3490 = vmatpush2.msra.mxu0 0.0
  %3491 = vmatprep.subr.mxu0 0.0
  %3492 = vmatpush2.msra.mxu0 0.0
  %3493 = vmatprep.subr.mxu0 0.0
  %3494 = vmatpush2.msra.mxu0 0.0
  %3495 = vmatprep.subr.mxu0 0.0
  %3496 = vmatpush2.msra.mxu0 0.0
  %3497 = vmatprep.subr.mxu0 0.0
  %3498 = vmatpush2.msra.mxu0 0.0
  %3499 = vmatprep.subr.mxu0 0.0
  %3500 = vmatpush2.msra.mxu0 0.0
  %3501 = vmatprep.subr.mxu0 0.0
  %3502 = vmatpush2.msra.mxu0 0.0
  %3503 = vmatprep.subr.mxu0 0.0
  %3504 = vmatpush2.msra.mxu0 0.0
  %3505 = vmatprep.subr.mxu0 0.0
  %3506 = vmatpush2.msra.mxu0 0.0
  %3507 = vmatprep.subr.mxu0 0.0
  %3508 = vmatpush2.msra.mxu0 0.0
  %3509 = vmatprep.mubr.f32.mxu0 0.0
  %3510 = vmatmul.mubr.f32.gmra.mxu0 %v3438
  %v3511 = vpop.f32.mrf.mxu0
  %v3512 = vadd.f32 0.0, %v3511
  %v3513 = vpop.f32.mrf.mxu0
  %3514 = vmatprep.mubr.f32.mxu0 0.0
  %3515 = vmatmul.mubr.f32.gmra.mxu0 %v3441
  %v3516 = vpop.f32.mrf.mxu0
  %v3517 = vadd.f32 0.0, %v3516
  %v3518 = vpop.f32.mrf.mxu0
  %3519 = vdwg.mxu0
  %3522 = vrot.lane.b32.xlu0 %v3512, 24
  %v3523 = vpop.permute.xlu0 %3522
  %3524 = vrot.lane.b32.xlu0 %v3517, 24
  %v3525 = vpop.permute.xlu0 %3524
  %3528 = vst.msk [vmem:[#allocation2] sm:$0xff] %vm1111, %v3523
  %3529 = vst.msk [vmem:[#allocation2 + $0x8] sm:$0x3] %vm1113, %v3525
  %v3530 = vld [vmem:[#allocation2] sm:$0xff]
  %v3531 = vld [vmem:[#allocation2 + $0x8] sm:$0x3]
  %v3532 = vpack.c.bf16 %v3531, %v3530
  %s3533 = scalar_lea.vmem %s3, 16
  %v3534 = vld [vmem:[%s3533] sm:$0xf]
  %v3535 = vld [vmem:[%s3533 + $0x4] sm:$0xf]
  %v3536 = vld [vmem:[%s3533 + $0x8] sm:$0xf]
  %v3537 = vld [vmem:[%s3533 + $0xc] sm:$0xf]
  %v3538 = vlaneseq
  %v3539 = vshrl.u32 %v3538, 7
  %v3540 = vsub.s32 2, %v3539
  %v3541 = vrot.slane %v81, %v3540
  %v3546 = vunpack.c.l.b16 %v3534
  %v3547 = vunpack.c.l.b16 %v3535
  %v3548 = vunpack.c.l.b16 %v3536
  %v3549 = vunpack.c.l.b16 %v3537
  %v3550 = vpack.c.b16 %v3547, %v3546
  %v3551 = vpack.c.b16 %v3549, %v3548
  %v3555 = vsel %vm225, %v3532, 0
  %3557 = vmatprep.subr.bf16.mxu0 0
  %3558 = vmatpush1.bf16.msra.mxu0 0
  %3559 = vmatprep.subr.bf16.mxu0 0
  %3560 = vmatpush1.bf16.msra.mxu0 0
  %3561 = vmatprep.subr.bf16.mxu0 0
  %3562 = vmatpush1.bf16.msra.mxu0 0
  %3563 = vmatprep.subr.bf16.mxu0 0
  %3564 = vmatpush1.bf16.msra.mxu0 0
  %3565 = vmatprep.subr.bf16.mxu0 0
  %3566 = vmatpush1.bf16.msra.mxu0 0
  %3567 = vmatprep.subr.bf16.mxu0 0
  %3568 = vmatpush1.bf16.msra.mxu0 0
  %3569 = vmatprep.subr.bf16.mxu0 0
  %3570 = vmatpush1.bf16.msra.mxu0 %v3551
  %3571 = vmatprep.subr.bf16.mxu0 0
  %3572 = vmatpush1.bf16.msra.mxu0 %v3550
  %3573 = vmatprep.subr.bf16.mxu0 0
  %3574 = vmatpush2.bf16.msra.mxu0 0
  %3575 = vmatprep.subr.bf16.mxu0 0
  %3576 = vmatpush2.bf16.msra.mxu0 0
  %3577 = vmatprep.subr.bf16.mxu0 0
  %3578 = vmatpush2.bf16.msra.mxu0 0
  %3579 = vmatprep.subr.bf16.mxu0 0
  %3580 = vmatpush2.bf16.msra.mxu0 0
  %3581 = vmatprep.subr.bf16.mxu0 0
  %3582 = vmatpush2.bf16.msra.mxu0 0
  %3583 = vmatprep.subr.bf16.mxu0 0
  %3584 = vmatpush2.bf16.msra.mxu0 0
  %3585 = vmatprep.subr.bf16.mxu0 0
  %3586 = vmatpush2.bf16.msra.mxu0 0
  %3587 = vmatprep.subr.bf16.mxu0 0
  %3588 = vmatpush2.bf16.msra.mxu0 0
  %3589 = vmatprep.mubr.bf16.mxu0 0
  %3590 = vmatmul.mubr.bf16.gmra.mxu0 %v3555
  %v3591 = vpop.f32.mrf.mxu0
  %v3592 = vadd.f32 %v3541, %v3591
  %v3593 = vpop.f32.mrf.mxu0
  %v3594 = vpop.f32.mrf.mxu0
  %v3595 = vadd.f32 %v3541, %v3594
  %v3596 = vpop.f32.mrf.mxu0
  %3597 = vdwg.mxu0
  %v3598 = vadd.f32 %v2628, %v3592
  %v3599 = vadd.f32 %v2629, %v3595
  %v3600 = vsel %vm225, %v3598, 0.0
  %3601 = vadd.xlane.f32.xlu0 %v3600
  %v3602 = vpop.xlane.xlu0 %3601
  %v3603 = vsel %vm1187, %v3599, 0.0
  %3604 = vadd.xlane.f32.xlu0 %v3603
  %v3605 = vpop.xlane.xlu0 %3604
  %v3606 = vmul.f32 %v3602, %v1191
  %v3607 = vmul.f32 %v3605, %v1191
  %v3608 = vsub.f32 %v3598, %v3606
  %v3609 = vsub.f32 %v3599, %v3607
  %v3610 = vmul.f32 %v3608, %v3608
  %v3611 = vmul.f32 %v3609, %v3609
  %v3612 = vsel %vm225, %v3610, 0.0
  %3613 = vadd.xlane.f32.xlu0 %v3612
  %v3614 = vpop.xlane.xlu0 %3613
  %v3615 = vsel %vm1187, %v3611, 0.0
  %3616 = vadd.xlane.f32.xlu0 %v3615
  %v3617 = vpop.xlane.xlu0 %3616
  %v3618 = vmul.f32 %v3614, %v1191
  %v3619 = vmul.f32 %v3617, %v1191
  %v3620 = vadd.f32 %v3618, 1e-05
  %v3621 = vadd.f32 %v3619, 1e-05
  %v3622 = vrsqrt.pop %v3620
  %v3623 = vrsqrt.pop %v3621
  %v3624 = vmul.f32 %v3608, %v3622
  %v3625 = vmul.f32 %v3609, %v3623
  %v3626 = vlaneseq
  %v3627 = vshrl.u32 %v3626, 7
  %v3628 = vsub.s32 3, %v3627
  %v3629 = vrot.slane %v81, %v3628
  %v3630 = vmul.f32 %v3624, %v3629
  %v3631 = vmul.f32 %v3625, %v3629
  %v3632 = vlaneseq
  %v3633 = vshrl.u32 %v3632, 7
  %v3634 = vsub.s32 4, %v3633
  %v3635 = vrot.slane %v81, %v3634
  %v3636 = vadd.f32 %v3630, %v3635
  %v3637 = vadd.f32 %v3631, %v3635
  %s3638 = sshll.u32 %s1225, 4
  %3639 = dma.done %s54, %s3638
  %s3640 = sshll.u32 %s1229, 4
  %3641 = dma.done %s68, %s3640
  %v3642 = vpack.c.bf16 %v3637, %v3636
  %v3643 = vld [vmem:[%s53] sm:$0xff]
  %v3644 = vld [vmem:[%s53 + $0x8] sm:$0xff]
  %v3645 = vld [vmem:[%s53 + $0x10] sm:$0xff]
  %v3646 = vld [vmem:[%s53 + $0x18] sm:$0xff]
  %v3647 = vld [vmem:[%s53 + $0x20] sm:$0xff]
  %v3648 = vld [vmem:[%s53 + $0x28] sm:$0xff]
  %v3649 = vld [vmem:[%s53 + $0x30] sm:$0xff]
  %v3650 = vld [vmem:[%s53 + $0x38] sm:$0xff]
  %v3651 = vld [vmem:[%s53 + $0x40] sm:$0xff]
  %v3652 = vld [vmem:[%s53 + $0x48] sm:$0xff]
  %v3653 = vld [vmem:[%s53 + $0x50] sm:$0xff]
  %v3654 = vld [vmem:[%s53 + $0x58] sm:$0xff]
  %v3655 = vld [vmem:[%s53 + $0x60] sm:$0xff]
  %v3656 = vld [vmem:[%s53 + $0x68] sm:$0xff]
  %v3657 = vld [vmem:[%s53 + $0x70] sm:$0xff]
  %v3658 = vld [vmem:[%s53 + $0x78] sm:$0xff]
  %v3659 = vld [vmem:[%s53 + $0x80] sm:$0xff]
  %v3660 = vld [vmem:[%s53 + $0x88] sm:$0xff]
  %v3661 = vld [vmem:[%s53 + $0x90] sm:$0xff]
  %v3662 = vld [vmem:[%s53 + $0x98] sm:$0xff]
  %v3663 = vld [vmem:[%s53 + $0xa0] sm:$0xff]
  %v3664 = vld [vmem:[%s53 + $0xa8] sm:$0xff]
  %v3665 = vld [vmem:[%s53 + $0xb0] sm:$0xff]
  %v3666 = vld [vmem:[%s53 + $0xb8] sm:$0xff]
  %v3667 = vld [vmem:[%s53 + $0xc0] sm:$0xff]
  %v3668 = vld [vmem:[%s53 + $0xc8] sm:$0xff]
  %v3669 = vld [vmem:[%s53 + $0xd0] sm:$0xff]
  %v3670 = vld [vmem:[%s53 + $0xd8] sm:$0xff]
  %v3671 = vld [vmem:[%s53 + $0xe0] sm:$0xff]
  %v3672 = vld [vmem:[%s53 + $0xe8] sm:$0xff]
  %v3673 = vld [vmem:[%s53 + $0xf0] sm:$0xff]
  %v3674 = vld [vmem:[%s53 + $0xf8] sm:$0xff]
  %v3675 = vlaneseq
  %v3676 = vshrl.u32 %v3675, 7
  %v3677 = vsub.s32 1, %v3676
  %v3678 = vrot.slane %v82, %v3677
  %v3679 = vlaneseq
  %v3680 = vshrl.u32 %v3679, 7
  %v3681 = vsub.s32 3, %v3680
  %v3682 = vrot.slane %v82, %v3681
  %v3683 = vlaneseq
  %v3684 = vshrl.u32 %v3683, 7
  %v3685 = vsub.s32 5, %v3684
  %v3686 = vrot.slane %v82, %v3685
  %v3687 = vlaneseq
  %v3688 = vshrl.u32 %v3687, 7
  %v3689 = vsub.s32 7, %v3688
  %v3690 = vrot.slane %v82, %v3689
  %v3691 = vlaneseq
  %v3692 = vshrl.u32 %v3691, 7
  %v3693 = vsub.s32 1, %v3692
  %v3694 = vrot.slane %v83, %v3693
  %v3695 = vlaneseq
  %v3696 = vshrl.u32 %v3695, 7
  %v3697 = vsub.s32 3, %v3696
  %v3698 = vrot.slane %v83, %v3697
  %v3699 = vlaneseq
  %v3700 = vshrl.u32 %v3699, 7
  %v3701 = vsub.s32 5, %v3700
  %v3702 = vrot.slane %v83, %v3701
  %v3703 = vlaneseq
  %v3704 = vshrl.u32 %v3703, 7
  %v3705 = vsub.s32 7, %v3704
  %v3706 = vrot.slane %v83, %v3705
  %v3707 = vlaneseq
  %v3708 = vshrl.u32 %v3707, 7
  %v3709 = vsub.s32 1, %v3708
  %v3710 = vrot.slane %v84, %v3709
  %v3711 = vlaneseq
  %v3712 = vshrl.u32 %v3711, 7
  %v3713 = vsub.s32 3, %v3712
  %v3714 = vrot.slane %v84, %v3713
  %v3715 = vlaneseq
  %v3716 = vshrl.u32 %v3715, 7
  %v3717 = vsub.s32 5, %v3716
  %v3718 = vrot.slane %v84, %v3717
  %v3719 = vlaneseq
  %v3720 = vshrl.u32 %v3719, 7
  %v3721 = vsub.s32 7, %v3720
  %v3722 = vrot.slane %v84, %v3721
  %v3723 = vlaneseq
  %v3724 = vshrl.u32 %v3723, 7
  %v3725 = vsub.s32 1, %v3724
  %v3726 = vrot.slane %v85, %v3725
  %v3727 = vlaneseq
  %v3728 = vshrl.u32 %v3727, 7
  %v3729 = vsub.s32 3, %v3728
  %v3730 = vrot.slane %v85, %v3729
  %v3731 = vlaneseq
  %v3732 = vshrl.u32 %v3731, 7
  %v3733 = vsub.s32 5, %v3732
  %v3734 = vrot.slane %v85, %v3733
  %v3735 = vlaneseq
  %v3736 = vshrl.u32 %v3735, 7
  %v3737 = vsub.s32 7, %v3736
  %v3738 = vrot.slane %v85, %v3737
  %v3755 = vlaneseq
  %v3756 = vshrl.u32 %v3755, 7
  %v3757 = vsub.s32 1, %v3756
  %v3758 = vrot.slane %v3678, %v3757
  %v3759 = vlaneseq
  %v3760 = vshrl.u32 %v3759, 7
  %v3761 = vsub.s32 1, %v3760
  %v3762 = vrot.slane %v3682, %v3761
  %v3763 = vlaneseq
  %v3764 = vshrl.u32 %v3763, 7
  %v3765 = vsub.s32 1, %v3764
  %v3766 = vrot.slane %v3686, %v3765
  %v3767 = vlaneseq
  %v3768 = vshrl.u32 %v3767, 7
  %v3769 = vsub.s32 1, %v3768
  %v3770 = vrot.slane %v3690, %v3769
  %v3771 = vlaneseq
  %v3772 = vshrl.u32 %v3771, 7
  %v3773 = vsub.s32 1, %v3772
  %v3774 = vrot.slane %v3694, %v3773
  %v3775 = vlaneseq
  %v3776 = vshrl.u32 %v3775, 7
  %v3777 = vsub.s32 1, %v3776
  %v3778 = vrot.slane %v3698, %v3777
  %v3779 = vlaneseq
  %v3780 = vshrl.u32 %v3779, 7
  %v3781 = vsub.s32 1, %v3780
  %v3782 = vrot.slane %v3702, %v3781
  %v3783 = vlaneseq
  %v3784 = vshrl.u32 %v3783, 7
  %v3785 = vsub.s32 1, %v3784
  %v3786 = vrot.slane %v3706, %v3785
  %v3787 = vlaneseq
  %v3788 = vshrl.u32 %v3787, 7
  %v3789 = vsub.s32 1, %v3788
  %v3790 = vrot.slane %v3710, %v3789
  %v3791 = vlaneseq
  %v3792 = vshrl.u32 %v3791, 7
  %v3793 = vsub.s32 1, %v3792
  %v3794 = vrot.slane %v3714, %v3793
  %v3795 = vlaneseq
  %v3796 = vshrl.u32 %v3795, 7
  %v3797 = vsub.s32 1, %v3796
  %v3798 = vrot.slane %v3718, %v3797
  %v3799 = vlaneseq
  %v3800 = vshrl.u32 %v3799, 7
  %v3801 = vsub.s32 1, %v3800
  %v3802 = vrot.slane %v3722, %v3801
  %v3803 = vlaneseq
  %v3804 = vshrl.u32 %v3803, 7
  %v3805 = vsub.s32 1, %v3804
  %v3806 = vrot.slane %v3726, %v3805
  %v3807 = vlaneseq
  %v3808 = vshrl.u32 %v3807, 7
  %v3809 = vsub.s32 1, %v3808
  %v3810 = vrot.slane %v3730, %v3809
  %v3811 = vlaneseq
  %v3812 = vshrl.u32 %v3811, 7
  %v3813 = vsub.s32 1, %v3812
  %v3814 = vrot.slane %v3734, %v3813
  %v3815 = vlaneseq
  %v3816 = vshrl.u32 %v3815, 7
  %v3817 = vsub.s32 1, %v3816
  %v3818 = vrot.slane %v3738, %v3817
  %v3851 = vunpack.c.l.b16 %v3643
  %v3852 = vunpack.c.h.b16 %v3643
  %v3853 = vunpack.c.l.b16 %v3644
  %v3854 = vunpack.c.h.b16 %v3644
  %v3855 = vunpack.c.l.b16 %v3645
  %v3856 = vunpack.c.h.b16 %v3645
  %v3857 = vunpack.c.l.b16 %v3646
  %v3858 = vunpack.c.h.b16 %v3646
  %v3859 = vunpack.c.l.b16 %v3647
  %v3860 = vunpack.c.h.b16 %v3647
  %v3861 = vunpack.c.l.b16 %v3648
  %v3862 = vunpack.c.h.b16 %v3648
  %v3863 = vunpack.c.l.b16 %v3649
  %v3864 = vunpack.c.h.b16 %v3649
  %v3865 = vunpack.c.l.b16 %v3650
  %v3866 = vunpack.c.h.b16 %v3650
  %v3867 = vunpack.c.l.b16 %v3651
  %v3868 = vunpack.c.h.b16 %v3651
  %v3869 = vunpack.c.l.b16 %v3652
  %v3870 = vunpack.c.h.b16 %v3652
  %v3871 = vunpack.c.l.b16 %v3653
  %v3872 = vunpack.c.h.b16 %v3653
  %v3873 = vunpack.c.l.b16 %v3654
  %v3874 = vunpack.c.h.b16 %v3654
  %v3875 = vunpack.c.l.b16 %v3655
  %v3876 = vunpack.c.h.b16 %v3655
  %v3877 = vunpack.c.l.b16 %v3656
  %v3878 = vunpack.c.h.b16 %v3656
  %v3879 = vunpack.c.l.b16 %v3657
  %v3880 = vunpack.c.h.b16 %v3657
  %v3881 = vunpack.c.l.b16 %v3658
  %v3882 = vunpack.c.h.b16 %v3658
  %v3883 = vunpack.c.l.b16 %v3659
  %v3884 = vunpack.c.h.b16 %v3659
  %v3885 = vunpack.c.l.b16 %v3660
  %v3886 = vunpack.c.h.b16 %v3660
  %v3887 = vunpack.c.l.b16 %v3661
  %v3888 = vunpack.c.h.b16 %v3661
  %v3889 = vunpack.c.l.b16 %v3662
  %v3890 = vunpack.c.h.b16 %v3662
  %v3891 = vunpack.c.l.b16 %v3663
  %v3892 = vunpack.c.h.b16 %v3663
  %v3893 = vunpack.c.l.b16 %v3664
  %v3894 = vunpack.c.h.b16 %v3664
  %v3895 = vunpack.c.l.b16 %v3665
  %v3896 = vunpack.c.h.b16 %v3665
  %v3897 = vunpack.c.l.b16 %v3666
  %v3898 = vunpack.c.h.b16 %v3666
  %v3899 = vunpack.c.l.b16 %v3667
  %v3900 = vunpack.c.h.b16 %v3667
  %v3901 = vunpack.c.l.b16 %v3668
  %v3902 = vunpack.c.h.b16 %v3668
  %v3903 = vunpack.c.l.b16 %v3669
  %v3904 = vunpack.c.h.b16 %v3669
  %v3905 = vunpack.c.l.b16 %v3670
  %v3906 = vunpack.c.h.b16 %v3670
  %v3907 = vunpack.c.l.b16 %v3671
  %v3908 = vunpack.c.h.b16 %v3671
  %v3909 = vunpack.c.l.b16 %v3672
  %v3910 = vunpack.c.h.b16 %v3672
  %v3911 = vunpack.c.l.b16 %v3673
  %v3912 = vunpack.c.h.b16 %v3673
  %v3913 = vunpack.c.l.b16 %v3674
  %v3914 = vunpack.c.h.b16 %v3674
  %v3915 = vpack.c.b16 %v3867, %v3851
  %v3916 = vpack.c.b16 %v3868, %v3852
  %v3917 = vpack.c.b16 %v3869, %v3853
  %v3918 = vpack.c.b16 %v3870, %v3854
  %v3919 = vpack.c.b16 %v3871, %v3855
  %v3920 = vpack.c.b16 %v3872, %v3856
  %v3921 = vpack.c.b16 %v3873, %v3857
  %v3922 = vpack.c.b16 %v3874, %v3858
  %v3923 = vpack.c.b16 %v3875, %v3859
  %v3924 = vpack.c.b16 %v3876, %v3860
  %v3925 = vpack.c.b16 %v3877, %v3861
  %v3926 = vpack.c.b16 %v3878, %v3862
  %v3927 = vpack.c.b16 %v3879, %v3863
  %v3928 = vpack.c.b16 %v3880, %v3864
  %v3929 = vpack.c.b16 %v3881, %v3865
  %v3930 = vpack.c.b16 %v3882, %v3866
  %v3931 = vpack.c.b16 %v3899, %v3883
  %v3932 = vpack.c.b16 %v3900, %v3884
  %v3933 = vpack.c.b16 %v3901, %v3885
  %v3934 = vpack.c.b16 %v3902, %v3886
  %v3935 = vpack.c.b16 %v3903, %v3887
  %v3936 = vpack.c.b16 %v3904, %v3888
  %v3937 = vpack.c.b16 %v3905, %v3889
  %v3938 = vpack.c.b16 %v3906, %v3890
  %v3939 = vpack.c.b16 %v3907, %v3891
  %v3940 = vpack.c.b16 %v3908, %v3892
  %v3941 = vpack.c.b16 %v3909, %v3893
  %v3942 = vpack.c.b16 %v3910, %v3894
  %v3943 = vpack.c.b16 %v3911, %v3895
  %v3944 = vpack.c.b16 %v3912, %v3896
  %v3945 = vpack.c.b16 %v3913, %v3897
  %v3946 = vpack.c.b16 %v3914, %v3898
  %v3980 = vsel %vm225, %v3642, 0
  %3982 = vmatprep.subr.bf16.mxu0 0
  %3983 = vmatpush1.bf16.msra.mxu0 0
  %3984 = vmatprep.subr.bf16.mxu0 0
  %3985 = vmatpush1.bf16.msra.mxu0 0
  %3986 = vmatprep.subr.bf16.mxu0 0
  %3987 = vmatpush1.bf16.msra.mxu0 0
  %3988 = vmatprep.subr.bf16.mxu0 0
  %3989 = vmatpush1.bf16.msra.mxu0 0
  %3990 = vmatprep.subr.bf16.mxu0 0
  %3991 = vmatpush1.bf16.msra.mxu0 0
  %3992 = vmatprep.subr.bf16.mxu0 0
  %3993 = vmatpush1.bf16.msra.mxu0 0
  %3994 = vmatprep.subr.bf16.mxu0 %v3932
  %3995 = vmatpush1.bf16.msra.mxu0 %v3931
  %3996 = vmatprep.subr.bf16.mxu0 %v3916
  %3997 = vmatpush1.bf16.msra.mxu0 %v3915
  %3998 = vmatprep.subr.bf16.mxu0 0
  %3999 = vmatpush2.bf16.msra.mxu0 0
  %4000 = vmatprep.subr.bf16.mxu0 0
  %4001 = vmatpush2.bf16.msra.mxu0 0
  %4002 = vmatprep.subr.bf16.mxu0 0
  %4003 = vmatpush2.bf16.msra.mxu0 0
  %4004 = vmatprep.subr.bf16.mxu0 0
  %4005 = vmatpush2.bf16.msra.mxu0 0
  %4006 = vmatprep.subr.bf16.mxu0 0
  %4007 = vmatpush2.bf16.msra.mxu0 0
  %4008 = vmatprep.subr.bf16.mxu0 0
  %4009 = vmatpush2.bf16.msra.mxu0 0
  %4010 = vmatprep.subr.bf16.mxu0 0
  %4011 = vmatpush2.bf16.msra.mxu0 0
  %4012 = vmatprep.subr.bf16.mxu0 0
  %4013 = vmatpush2.bf16.msra.mxu0 0
  %4014 = vmatprep.mubr.bf16.mxu0 0
  %4015 = vmatmul.mubr.bf16.gmra.mxu0 %v3980
  %v4016 = vpop.f32.mrf.mxu0
  %v4017 = vadd.f32 %v3758, %v4016
  %v4018 = vpop.f32.mrf.mxu0
  %v4019 = vadd.f32 %v3762, %v4018
  %v4020 = vpop.f32.mrf.mxu0
  %v4021 = vadd.f32 %v3758, %v4020
  %v4022 = vpop.f32.mrf.mxu0
  %v4023 = vadd.f32 %v3762, %v4022
  %4024 = vdwg.mxu0
  %4025 = vmatprep.subr.bf16.mxu0 0
  %4026 = vmatpush1.bf16.msra.mxu0 0
  %4027 = vmatprep.subr.bf16.mxu0 0
  %4028 = vmatpush1.bf16.msra.mxu0 0
  %4029 = vmatprep.subr.bf16.mxu0 0
  %4030 = vmatpush1.bf16.msra.mxu0 0
  %4031 = vmatprep.subr.bf16.mxu0 0
  %4032 = vmatpush1.bf16.msra.mxu0 0
  %4033 = vmatprep.subr.bf16.mxu0 0
  %4034 = vmatpush1.bf16.msra.mxu0 0
  %4035 = vmatprep.subr.bf16.mxu0 0
  %4036 = vmatpush1.bf16.msra.mxu0 0
  %4037 = vmatprep.subr.bf16.mxu0 %v3934
  %4038 = vmatpush1.bf16.msra.mxu0 %v3933
  %4039 = vmatprep.subr.bf16.mxu0 %v3918
  %4040 = vmatpush1.bf16.msra.mxu0 %v3917
  %4041 = vmatprep.subr.bf16.mxu0 0
  %4042 = vmatpush2.bf16.msra.mxu0 0
  %4043 = vmatprep.subr.bf16.mxu0 0
  %4044 = vmatpush2.bf16.msra.mxu0 0
  %4045 = vmatprep.subr.bf16.mxu0 0
  %4046 = vmatpush2.bf16.msra.mxu0 0
  %4047 = vmatprep.subr.bf16.mxu0 0
  %4048 = vmatpush2.bf16.msra.mxu0 0
  %4049 = vmatprep.subr.bf16.mxu0 0
  %4050 = vmatpush2.bf16.msra.mxu0 0
  %4051 = vmatprep.subr.bf16.mxu0 0
  %4052 = vmatpush2.bf16.msra.mxu0 0
  %4053 = vmatprep.subr.bf16.mxu0 0
  %4054 = vmatpush2.bf16.msra.mxu0 0
  %4055 = vmatprep.subr.bf16.mxu0 0
  %4056 = vmatpush2.bf16.msra.mxu0 0
  %4057 = vmatprep.mubr.bf16.mxu0 0
  %4058 = vmatmul.mubr.bf16.gmra.mxu0 %v3980
  %v4059 = vpop.f32.mrf.mxu0
  %v4060 = vadd.f32 %v3766, %v4059
  %v4061 = vpop.f32.mrf.mxu0
  %v4062 = vadd.f32 %v3770, %v4061
  %v4063 = vpop.f32.mrf.mxu0
  %v4064 = vadd.f32 %v3766, %v4063
  %v4065 = vpop.f32.mrf.mxu0
  %v4066 = vadd.f32 %v3770, %v4065
  %4067 = vdwg.mxu0
  %4068 = vmatprep.subr.bf16.mxu0 0
  %4069 = vmatpush1.bf16.msra.mxu0 0
  %4070 = vmatprep.subr.bf16.mxu0 0
  %4071 = vmatpush1.bf16.msra.mxu0 0
  %4072 = vmatprep.subr.bf16.mxu0 0
  %4073 = vmatpush1.bf16.msra.mxu0 0
  %4074 = vmatprep.subr.bf16.mxu0 0
  %4075 = vmatpush1.bf16.msra.mxu0 0
  %4076 = vmatprep.subr.bf16.mxu0 0
  %4077 = vmatpush1.bf16.msra.mxu0 0
  %4078 = vmatprep.subr.bf16.mxu0 0
  %4079 = vmatpush1.bf16.msra.mxu0 0
  %4080 = vmatprep.subr.bf16.mxu0 %v3936
  %4081 = vmatpush1.bf16.msra.mxu0 %v3935
  %4082 = vmatprep.subr.bf16.mxu0 %v3920
  %4083 = vmatpush1.bf16.msra.mxu0 %v3919
  %4084 = vmatprep.subr.bf16.mxu0 0
  %4085 = vmatpush2.bf16.msra.mxu0 0
  %4086 = vmatprep.subr.bf16.mxu0 0
  %4087 = vmatpush2.bf16.msra.mxu0 0
  %4088 = vmatprep.subr.bf16.mxu0 0
  %4089 = vmatpush2.bf16.msra.mxu0 0
  %4090 = vmatprep.subr.bf16.mxu0 0
  %4091 = vmatpush2.bf16.msra.mxu0 0
  %4092 = vmatprep.subr.bf16.mxu0 0
  %4093 = vmatpush2.bf16.msra.mxu0 0
  %4094 = vmatprep.subr.bf16.mxu0 0
  %4095 = vmatpush2.bf16.msra.mxu0 0
  %4096 = vmatprep.subr.bf16.mxu0 0
  %4097 = vmatpush2.bf16.msra.mxu0 0
  %4098 = vmatprep.subr.bf16.mxu0 0
  %4099 = vmatpush2.bf16.msra.mxu0 0
  %4100 = vmatprep.mubr.bf16.mxu0 0
  %4101 = vmatmul.mubr.bf16.gmra.mxu0 %v3980
  %v4102 = vpop.f32.mrf.mxu0
  %v4103 = vadd.f32 %v3774, %v4102
  %v4104 = vpop.f32.mrf.mxu0
  %v4105 = vadd.f32 %v3778, %v4104
  %v4106 = vpop.f32.mrf.mxu0
  %v4107 = vadd.f32 %v3774, %v4106
  %v4108 = vpop.f32.mrf.mxu0
  %v4109 = vadd.f32 %v3778, %v4108
  %4110 = vdwg.mxu0
  %4111 = vmatprep.subr.bf16.mxu0 0
  %4112 = vmatpush1.bf16.msra.mxu0 0
  %4113 = vmatprep.subr.bf16.mxu0 0
  %4114 = vmatpush1.bf16.msra.mxu0 0
  %4115 = vmatprep.subr.bf16.mxu0 0
  %4116 = vmatpush1.bf16.msra.mxu0 0
  %4117 = vmatprep.subr.bf16.mxu0 0
  %4118 = vmatpush1.bf16.msra.mxu0 0
  %4119 = vmatprep.subr.bf16.mxu0 0
  %4120 = vmatpush1.bf16.msra.mxu0 0
  %4121 = vmatprep.subr.bf16.mxu0 0
  %4122 = vmatpush1.bf16.msra.mxu0 0
  %4123 = vmatprep.subr.bf16.mxu0 %v3938
  %4124 = vmatpush1.bf16.msra.mxu0 %v3937
  %4125 = vmatprep.subr.bf16.mxu0 %v3922
  %4126 = vmatpush1.bf16.msra.mxu0 %v3921
  %4127 = vmatprep.subr.bf16.mxu0 0
  %4128 = vmatpush2.bf16.msra.mxu0 0
  %4129 = vmatprep.subr.bf16.mxu0 0
  %4130 = vmatpush2.bf16.msra.mxu0 0
  %4131 = vmatprep.subr.bf16.mxu0 0
  %4132 = vmatpush2.bf16.msra.mxu0 0
  %4133 = vmatprep.subr.bf16.mxu0 0
  %4134 = vmatpush2.bf16.msra.mxu0 0
  %4135 = vmatprep.subr.bf16.mxu0 0
  %4136 = vmatpush2.bf16.msra.mxu0 0
  %4137 = vmatprep.subr.bf16.mxu0 0
  %4138 = vmatpush2.bf16.msra.mxu0 0
  %4139 = vmatprep.subr.bf16.mxu0 0
  %4140 = vmatpush2.bf16.msra.mxu0 0
  %4141 = vmatprep.subr.bf16.mxu0 0
  %4142 = vmatpush2.bf16.msra.mxu0 0
  %4143 = vmatprep.mubr.bf16.mxu0 0
  %4144 = vmatmul.mubr.bf16.gmra.mxu0 %v3980
  %v4145 = vpop.f32.mrf.mxu0
  %v4146 = vadd.f32 %v3782, %v4145
  %v4147 = vpop.f32.mrf.mxu0
  %v4148 = vadd.f32 %v3786, %v4147
  %v4149 = vpop.f32.mrf.mxu0
  %v4150 = vadd.f32 %v3782, %v4149
  %v4151 = vpop.f32.mrf.mxu0
  %v4152 = vadd.f32 %v3786, %v4151
  %4153 = vdwg.mxu0
  %4154 = vmatprep.subr.bf16.mxu0 0
  %4155 = vmatpush1.bf16.msra.mxu0 0
  %4156 = vmatprep.subr.bf16.mxu0 0
  %4157 = vmatpush1.bf16.msra.mxu0 0
  %4158 = vmatprep.subr.bf16.mxu0 0
  %4159 = vmatpush1.bf16.msra.mxu0 0
  %4160 = vmatprep.subr.bf16.mxu0 0
  %4161 = vmatpush1.bf16.msra.mxu0 0
  %4162 = vmatprep.subr.bf16.mxu0 0
  %4163 = vmatpush1.bf16.msra.mxu0 0
  %4164 = vmatprep.subr.bf16.mxu0 0
  %4165 = vmatpush1.bf16.msra.mxu0 0
  %4166 = vmatprep.subr.bf16.mxu0 %v3940
  %4167 = vmatpush1.bf16.msra.mxu0 %v3939
  %4168 = vmatprep.subr.bf16.mxu0 %v3924
  %4169 = vmatpush1.bf16.msra.mxu0 %v3923
  %4170 = vmatprep.subr.bf16.mxu0 0
  %4171 = vmatpush2.bf16.msra.mxu0 0
  %4172 = vmatprep.subr.bf16.mxu0 0
  %4173 = vmatpush2.bf16.msra.mxu0 0
  %4174 = vmatprep.subr.bf16.mxu0 0
  %4175 = vmatpush2.bf16.msra.mxu0 0
  %4176 = vmatprep.subr.bf16.mxu0 0
  %4177 = vmatpush2.bf16.msra.mxu0 0
  %4178 = vmatprep.subr.bf16.mxu0 0
  %4179 = vmatpush2.bf16.msra.mxu0 0
  %4180 = vmatprep.subr.bf16.mxu0 0
  %4181 = vmatpush2.bf16.msra.mxu0 0
  %4182 = vmatprep.subr.bf16.mxu0 0
  %4183 = vmatpush2.bf16.msra.mxu0 0
  %4184 = vmatprep.subr.bf16.mxu0 0
  %4185 = vmatpush2.bf16.msra.mxu0 0
  %4186 = vmatprep.mubr.bf16.mxu0 0
  %4187 = vmatmul.mubr.bf16.gmra.mxu0 %v3980
  %v4188 = vpop.f32.mrf.mxu0
  %v4189 = vadd.f32 %v3790, %v4188
  %v4190 = vpop.f32.mrf.mxu0
  %v4191 = vadd.f32 %v3794, %v4190
  %v4192 = vpop.f32.mrf.mxu0
  %v4193 = vadd.f32 %v3790, %v4192
  %v4194 = vpop.f32.mrf.mxu0
  %v4195 = vadd.f32 %v3794, %v4194
  %4196 = vdwg.mxu0
  %4197 = vmatprep.subr.bf16.mxu0 0
  %4198 = vmatpush1.bf16.msra.mxu0 0
  %4199 = vmatprep.subr.bf16.mxu0 0
  %4200 = vmatpush1.bf16.msra.mxu0 0
  %4201 = vmatprep.subr.bf16.mxu0 0
  %4202 = vmatpush1.bf16.msra.mxu0 0
  %4203 = vmatprep.subr.bf16.mxu0 0
  %4204 = vmatpush1.bf16.msra.mxu0 0
  %4205 = vmatprep.subr.bf16.mxu0 0
  %4206 = vmatpush1.bf16.msra.mxu0 0
  %4207 = vmatprep.subr.bf16.mxu0 0
  %4208 = vmatpush1.bf16.msra.mxu0 0
  %4209 = vmatprep.subr.bf16.mxu0 %v3942
  %4210 = vmatpush1.bf16.msra.mxu0 %v3941
  %4211 = vmatprep.subr.bf16.mxu0 %v3926
  %4212 = vmatpush1.bf16.msra.mxu0 %v3925
  %4213 = vmatprep.subr.bf16.mxu0 0
  %4214 = vmatpush2.bf16.msra.mxu0 0
  %4215 = vmatprep.subr.bf16.mxu0 0
  %4216 = vmatpush2.bf16.msra.mxu0 0
  %4217 = vmatprep.subr.bf16.mxu0 0
  %4218 = vmatpush2.bf16.msra.mxu0 0
  %4219 = vmatprep.subr.bf16.mxu0 0
  %4220 = vmatpush2.bf16.msra.mxu0 0
  %4221 = vmatprep.subr.bf16.mxu0 0
  %4222 = vmatpush2.bf16.msra.mxu0 0
  %4223 = vmatprep.subr.bf16.mxu0 0
  %4224 = vmatpush2.bf16.msra.mxu0 0
  %4225 = vmatprep.subr.bf16.mxu0 0
  %4226 = vmatpush2.bf16.msra.mxu0 0
  %4227 = vmatprep.subr.bf16.mxu0 0
  %4228 = vmatpush2.bf16.msra.mxu0 0
  %4229 = vmatprep.mubr.bf16.mxu0 0
  %4230 = vmatmul.mubr.bf16.gmra.mxu0 %v3980
  %v4231 = vpop.f32.mrf.mxu0
  %v4232 = vadd.f32 %v3798, %v4231
  %v4233 = vpop.f32.mrf.mxu0
  %v4234 = vadd.f32 %v3802, %v4233
  %v4235 = vpop.f32.mrf.mxu0
  %v4236 = vadd.f32 %v3798, %v4235
  %v4237 = vpop.f32.mrf.mxu0
  %v4238 = vadd.f32 %v3802, %v4237
  %4239 = vdwg.mxu0
  %4240 = vmatprep.subr.bf16.mxu0 0
  %4241 = vmatpush1.bf16.msra.mxu0 0
  %4242 = vmatprep.subr.bf16.mxu0 0
  %4243 = vmatpush1.bf16.msra.mxu0 0
  %4244 = vmatprep.subr.bf16.mxu0 0
  %4245 = vmatpush1.bf16.msra.mxu0 0
  %4246 = vmatprep.subr.bf16.mxu0 0
  %4247 = vmatpush1.bf16.msra.mxu0 0
  %4248 = vmatprep.subr.bf16.mxu0 0
  %4249 = vmatpush1.bf16.msra.mxu0 0
  %4250 = vmatprep.subr.bf16.mxu0 0
  %4251 = vmatpush1.bf16.msra.mxu0 0
  %4252 = vmatprep.subr.bf16.mxu0 %v3944
  %4253 = vmatpush1.bf16.msra.mxu0 %v3943
  %4254 = vmatprep.subr.bf16.mxu0 %v3928
  %4255 = vmatpush1.bf16.msra.mxu0 %v3927
  %4256 = vmatprep.subr.bf16.mxu0 0
  %4257 = vmatpush2.bf16.msra.mxu0 0
  %4258 = vmatprep.subr.bf16.mxu0 0
  %4259 = vmatpush2.bf16.msra.mxu0 0
  %4260 = vmatprep.subr.bf16.mxu0 0
  %4261 = vmatpush2.bf16.msra.mxu0 0
  %4262 = vmatprep.subr.bf16.mxu0 0
  %4263 = vmatpush2.bf16.msra.mxu0 0
  %4264 = vmatprep.subr.bf16.mxu0 0
  %4265 = vmatpush2.bf16.msra.mxu0 0
  %4266 = vmatprep.subr.bf16.mxu0 0
  %4267 = vmatpush2.bf16.msra.mxu0 0
  %4268 = vmatprep.subr.bf16.mxu0 0
  %4269 = vmatpush2.bf16.msra.mxu0 0
  %4270 = vmatprep.subr.bf16.mxu0 0
  %4271 = vmatpush2.bf16.msra.mxu0 0
  %4272 = vmatprep.mubr.bf16.mxu0 0
  %4273 = vmatmul.mubr.bf16.gmra.mxu0 %v3980
  %v4274 = vpop.f32.mrf.mxu0
  %v4275 = vadd.f32 %v3806, %v4274
  %v4276 = vpop.f32.mrf.mxu0
  %v4277 = vadd.f32 %v3810, %v4276
  %v4278 = vpop.f32.mrf.mxu0
  %v4279 = vadd.f32 %v3806, %v4278
  %v4280 = vpop.f32.mrf.mxu0
  %v4281 = vadd.f32 %v3810, %v4280
  %4282 = vdwg.mxu0
  %4283 = vmatprep.subr.bf16.mxu0 0
  %4284 = vmatpush1.bf16.msra.mxu0 0
  %4285 = vmatprep.subr.bf16.mxu0 0
  %4286 = vmatpush1.bf16.msra.mxu0 0
  %4287 = vmatprep.subr.bf16.mxu0 0
  %4288 = vmatpush1.bf16.msra.mxu0 0
  %4289 = vmatprep.subr.bf16.mxu0 0
  %4290 = vmatpush1.bf16.msra.mxu0 0
  %4291 = vmatprep.subr.bf16.mxu0 0
  %4292 = vmatpush1.bf16.msra.mxu0 0
  %4293 = vmatprep.subr.bf16.mxu0 0
  %4294 = vmatpush1.bf16.msra.mxu0 0
  %4295 = vmatprep.subr.bf16.mxu0 %v3946
  %4296 = vmatpush1.bf16.msra.mxu0 %v3945
  %4297 = vmatprep.subr.bf16.mxu0 %v3930
  %4298 = vmatpush1.bf16.msra.mxu0 %v3929
  %4299 = vmatprep.subr.bf16.mxu0 0
  %4300 = vmatpush2.bf16.msra.mxu0 0
  %4301 = vmatprep.subr.bf16.mxu0 0
  %4302 = vmatpush2.bf16.msra.mxu0 0
  %4303 = vmatprep.subr.bf16.mxu0 0
  %4304 = vmatpush2.bf16.msra.mxu0 0
  %4305 = vmatprep.subr.bf16.mxu0 0
  %4306 = vmatpush2.bf16.msra.mxu0 0
  %4307 = vmatprep.subr.bf16.mxu0 0
  %4308 = vmatpush2.bf16.msra.mxu0 0
  %4309 = vmatprep.subr.bf16.mxu0 0
  %4310 = vmatpush2.bf16.msra.mxu0 0
  %4311 = vmatprep.subr.bf16.mxu0 0
  %4312 = vmatpush2.bf16.msra.mxu0 0
  %4313 = vmatprep.subr.bf16.mxu0 0
  %4314 = vmatpush2.bf16.msra.mxu0 0
  %4315 = vmatprep.mubr.bf16.mxu0 0
  %4316 = vmatmul.mubr.bf16.gmra.mxu0 %v3980
  %v4317 = vpop.f32.mrf.mxu0
  %v4318 = vadd.f32 %v3814, %v4317
  %v4319 = vpop.f32.mrf.mxu0
  %v4320 = vadd.f32 %v3818, %v4319
  %v4321 = vpop.f32.mrf.mxu0
  %v4322 = vadd.f32 %v3814, %v4321
  %v4323 = vpop.f32.mrf.mxu0
  %v4324 = vadd.f32 %v3818, %v4323
  %4325 = vdwg.mxu0
  %v4326 = vmax.f32 %v4017, 0.0
  %v4327 = vmax.f32 %v4019, 0.0
  %v4328 = vmax.f32 %v4060, 0.0
  %v4329 = vmax.f32 %v4062, 0.0
  %v4330 = vmax.f32 %v4103, 0.0
  %v4331 = vmax.f32 %v4105, 0.0
  %v4332 = vmax.f32 %v4146, 0.0
  %v4333 = vmax.f32 %v4148, 0.0
  %v4334 = vmax.f32 %v4189, 0.0
  %v4335 = vmax.f32 %v4191, 0.0
  %v4336 = vmax.f32 %v4232, 0.0
  %v4337 = vmax.f32 %v4234, 0.0
  %v4338 = vmax.f32 %v4275, 0.0
  %v4339 = vmax.f32 %v4277, 0.0
  %v4340 = vmax.f32 %v4318, 0.0
  %v4341 = vmax.f32 %v4320, 0.0
  %v4342 = vmax.f32 %v4021, 0.0
  %v4343 = vmax.f32 %v4023, 0.0
  %v4344 = vmax.f32 %v4064, 0.0
  %v4345 = vmax.f32 %v4066, 0.0
  %v4346 = vmax.f32 %v4107, 0.0
  %v4347 = vmax.f32 %v4109, 0.0
  %v4348 = vmax.f32 %v4150, 0.0
  %v4349 = vmax.f32 %v4152, 0.0
  %v4350 = vmax.f32 %v4193, 0.0
  %v4351 = vmax.f32 %v4195, 0.0
  %v4352 = vmax.f32 %v4236, 0.0
  %v4353 = vmax.f32 %v4238, 0.0
  %v4354 = vmax.f32 %v4279, 0.0
  %v4355 = vmax.f32 %v4281, 0.0
  %v4356 = vmax.f32 %v4322, 0.0
  %v4357 = vmax.f32 %v4324, 0.0
  %v4358 = vpack.c.bf16 %v4342, %v4326
  %v4359 = vpack.c.bf16 %v4343, %v4327
  %v4360 = vpack.c.bf16 %v4344, %v4328
  %v4361 = vpack.c.bf16 %v4345, %v4329
  %v4362 = vpack.c.bf16 %v4346, %v4330
  %v4363 = vpack.c.bf16 %v4347, %v4331
  %v4364 = vpack.c.bf16 %v4348, %v4332
  %v4365 = vpack.c.bf16 %v4349, %v4333
  %v4366 = vpack.c.bf16 %v4350, %v4334
  %v4367 = vpack.c.bf16 %v4351, %v4335
  %v4368 = vpack.c.bf16 %v4352, %v4336
  %v4369 = vpack.c.bf16 %v4353, %v4337
  %v4370 = vpack.c.bf16 %v4354, %v4338
  %v4371 = vpack.c.bf16 %v4355, %v4339
  %v4372 = vpack.c.bf16 %v4356, %v4340
  %v4373 = vpack.c.bf16 %v4357, %v4341
  %v4374 = vld [vmem:[%s67] sm:$0xf]
  %v4375 = vld [vmem:[%s67 + $0x4] sm:$0xf]
  %v4376 = vld [vmem:[%s67 + $0x8] sm:$0xf]
  %v4377 = vld [vmem:[%s67 + $0xc] sm:$0xf]
  %v4378 = vld [vmem:[%s67 + $0x10] sm:$0xf]
  %v4379 = vld [vmem:[%s67 + $0x14] sm:$0xf]
  %v4380 = vld [vmem:[%s67 + $0x18] sm:$0xf]
  %v4381 = vld [vmem:[%s67 + $0x1c] sm:$0xf]
  %v4382 = vld [vmem:[%s67 + $0x20] sm:$0xf]
  %v4383 = vld [vmem:[%s67 + $0x24] sm:$0xf]
  %v4384 = vld [vmem:[%s67 + $0x28] sm:$0xf]
  %v4385 = vld [vmem:[%s67 + $0x2c] sm:$0xf]
  %v4386 = vld [vmem:[%s67 + $0x30] sm:$0xf]
  %v4387 = vld [vmem:[%s67 + $0x34] sm:$0xf]
  %v4388 = vld [vmem:[%s67 + $0x38] sm:$0xf]
  %v4389 = vld [vmem:[%s67 + $0x3c] sm:$0xf]
  %v4390 = vld [vmem:[%s67 + $0x40] sm:$0xf]
  %v4391 = vld [vmem:[%s67 + $0x44] sm:$0xf]
  %v4392 = vld [vmem:[%s67 + $0x48] sm:$0xf]
  %v4393 = vld [vmem:[%s67 + $0x4c] sm:$0xf]
  %v4394 = vld [vmem:[%s67 + $0x50] sm:$0xf]
  %v4395 = vld [vmem:[%s67 + $0x54] sm:$0xf]
  %v4396 = vld [vmem:[%s67 + $0x58] sm:$0xf]
  %v4397 = vld [vmem:[%s67 + $0x5c] sm:$0xf]
  %v4398 = vld [vmem:[%s67 + $0x60] sm:$0xf]
  %v4399 = vld [vmem:[%s67 + $0x64] sm:$0xf]
  %v4400 = vld [vmem:[%s67 + $0x68] sm:$0xf]
  %v4401 = vld [vmem:[%s67 + $0x6c] sm:$0xf]
  %v4402 = vld [vmem:[%s67 + $0x70] sm:$0xf]
  %v4403 = vld [vmem:[%s67 + $0x74] sm:$0xf]
  %v4404 = vld [vmem:[%s67 + $0x78] sm:$0xf]
  %v4405 = vld [vmem:[%s67 + $0x7c] sm:$0xf]
  %v4406 = vld [vmem:[%s67 + $0x80] sm:$0xf]
  %v4407 = vld [vmem:[%s67 + $0x84] sm:$0xf]
  %v4408 = vld [vmem:[%s67 + $0x88] sm:$0xf]
  %v4409 = vld [vmem:[%s67 + $0x8c] sm:$0xf]
  %v4410 = vld [vmem:[%s67 + $0x90] sm:$0xf]
  %v4411 = vld [vmem:[%s67 + $0x94] sm:$0xf]
  %v4412 = vld [vmem:[%s67 + $0x98] sm:$0xf]
  %v4413 = vld [vmem:[%s67 + $0x9c] sm:$0xf]
  %v4414 = vld [vmem:[%s67 + $0xa0] sm:$0xf]
  %v4415 = vld [vmem:[%s67 + $0xa4] sm:$0xf]
  %v4416 = vld [vmem:[%s67 + $0xa8] sm:$0xf]
  %v4417 = vld [vmem:[%s67 + $0xac] sm:$0xf]
  %v4418 = vld [vmem:[%s67 + $0xb0] sm:$0xf]
  %v4419 = vld [vmem:[%s67 + $0xb4] sm:$0xf]
  %v4420 = vld [vmem:[%s67 + $0xb8] sm:$0xf]
  %v4421 = vld [vmem:[%s67 + $0xbc] sm:$0xf]
  %v4422 = vld [vmem:[%s67 + $0xc0] sm:$0xf]
  %v4423 = vld [vmem:[%s67 + $0xc4] sm:$0xf]
  %v4424 = vld [vmem:[%s67 + $0xc8] sm:$0xf]
  %v4425 = vld [vmem:[%s67 + $0xcc] sm:$0xf]
  %v4426 = vld [vmem:[%s67 + $0xd0] sm:$0xf]
  %v4427 = vld [vmem:[%s67 + $0xd4] sm:$0xf]
  %v4428 = vld [vmem:[%s67 + $0xd8] sm:$0xf]
  %v4429 = vld [vmem:[%s67 + $0xdc] sm:$0xf]
  %v4430 = vld [vmem:[%s67 + $0xe0] sm:$0xf]
  %v4431 = vld [vmem:[%s67 + $0xe4] sm:$0xf]
  %v4432 = vld [vmem:[%s67 + $0xe8] sm:$0xf]
  %v4433 = vld [vmem:[%s67 + $0xec] sm:$0xf]
  %v4434 = vld [vmem:[%s67 + $0xf0] sm:$0xf]
  %v4435 = vld [vmem:[%s67 + $0xf4] sm:$0xf]
  %v4436 = vld [vmem:[%s67 + $0xf8] sm:$0xf]
  %v4437 = vld [vmem:[%s67 + $0xfc] sm:$0xf]
  %v4502 = vunpack.c.l.b16 %v4374
  %v4503 = vunpack.c.l.b16 %v4375
  %v4504 = vunpack.c.l.b16 %v4376
  %v4505 = vunpack.c.l.b16 %v4377
  %v4506 = vunpack.c.l.b16 %v4378
  %v4507 = vunpack.c.l.b16 %v4379
  %v4508 = vunpack.c.l.b16 %v4380
  %v4509 = vunpack.c.l.b16 %v4381
  %v4510 = vunpack.c.l.b16 %v4382
  %v4511 = vunpack.c.l.b16 %v4383
  %v4512 = vunpack.c.l.b16 %v4384
  %v4513 = vunpack.c.l.b16 %v4385
  %v4514 = vunpack.c.l.b16 %v4386
  %v4515 = vunpack.c.l.b16 %v4387
  %v4516 = vunpack.c.l.b16 %v4388
  %v4517 = vunpack.c.l.b16 %v4389
  %v4518 = vunpack.c.l.b16 %v4390
  %v4519 = vunpack.c.l.b16 %v4391
  %v4520 = vunpack.c.l.b16 %v4392
  %v4521 = vunpack.c.l.b16 %v4393
  %v4522 = vunpack.c.l.b16 %v4394
  %v4523 = vunpack.c.l.b16 %v4395
  %v4524 = vunpack.c.l.b16 %v4396
  %v4525 = vunpack.c.l.b16 %v4397
  %v4526 = vunpack.c.l.b16 %v4398
  %v4527 = vunpack.c.l.b16 %v4399
  %v4528 = vunpack.c.l.b16 %v4400
  %v4529 = vunpack.c.l.b16 %v4401
  %v4530 = vunpack.c.l.b16 %v4402
  %v4531 = vunpack.c.l.b16 %v4403
  %v4532 = vunpack.c.l.b16 %v4404
  %v4533 = vunpack.c.l.b16 %v4405
  %v4534 = vunpack.c.l.b16 %v4406
  %v4535 = vunpack.c.l.b16 %v4407
  %v4536 = vunpack.c.l.b16 %v4408
  %v4537 = vunpack.c.l.b16 %v4409
  %v4538 = vunpack.c.l.b16 %v4410
  %v4539 = vunpack.c.l.b16 %v4411
  %v4540 = vunpack.c.l.b16 %v4412
  %v4541 = vunpack.c.l.b16 %v4413
  %v4542 = vunpack.c.l.b16 %v4414
  %v4543 = vunpack.c.l.b16 %v4415
  %v4544 = vunpack.c.l.b16 %v4416
  %v4545 = vunpack.c.l.b16 %v4417
  %v4546 = vunpack.c.l.b16 %v4418
  %v4547 = vunpack.c.l.b16 %v4419
  %v4548 = vunpack.c.l.b16 %v4420
  %v4549 = vunpack.c.l.b16 %v4421
  %v4550 = vunpack.c.l.b16 %v4422
  %v4551 = vunpack.c.l.b16 %v4423
  %v4552 = vunpack.c.l.b16 %v4424
  %v4553 = vunpack.c.l.b16 %v4425
  %v4554 = vunpack.c.l.b16 %v4426
  %v4555 = vunpack.c.l.b16 %v4427
  %v4556 = vunpack.c.l.b16 %v4428
  %v4557 = vunpack.c.l.b16 %v4429
  %v4558 = vunpack.c.l.b16 %v4430
  %v4559 = vunpack.c.l.b16 %v4431
  %v4560 = vunpack.c.l.b16 %v4432
  %v4561 = vunpack.c.l.b16 %v4433
  %v4562 = vunpack.c.l.b16 %v4434
  %v4563 = vunpack.c.l.b16 %v4435
  %v4564 = vunpack.c.l.b16 %v4436
  %v4565 = vunpack.c.l.b16 %v4437
  %v4566 = vpack.c.b16 %v4503, %v4502
  %v4567 = vpack.c.b16 %v4505, %v4504
  %v4568 = vpack.c.b16 %v4507, %v4506
  %v4569 = vpack.c.b16 %v4509, %v4508
  %v4570 = vpack.c.b16 %v4511, %v4510
  %v4571 = vpack.c.b16 %v4513, %v4512
  %v4572 = vpack.c.b16 %v4515, %v4514
  %v4573 = vpack.c.b16 %v4517, %v4516
  %v4574 = vpack.c.b16 %v4519, %v4518
  %v4575 = vpack.c.b16 %v4521, %v4520
  %v4576 = vpack.c.b16 %v4523, %v4522
  %v4577 = vpack.c.b16 %v4525, %v4524
  %v4578 = vpack.c.b16 %v4527, %v4526
  %v4579 = vpack.c.b16 %v4529, %v4528
  %v4580 = vpack.c.b16 %v4531, %v4530
  %v4581 = vpack.c.b16 %v4533, %v4532
  %v4582 = vpack.c.b16 %v4535, %v4534
  %v4583 = vpack.c.b16 %v4537, %v4536
  %v4584 = vpack.c.b16 %v4539, %v4538
  %v4585 = vpack.c.b16 %v4541, %v4540
  %v4586 = vpack.c.b16 %v4543, %v4542
  %v4587 = vpack.c.b16 %v4545, %v4544
  %v4588 = vpack.c.b16 %v4547, %v4546
  %v4589 = vpack.c.b16 %v4549, %v4548
  %v4590 = vpack.c.b16 %v4551, %v4550
  %v4591 = vpack.c.b16 %v4553, %v4552
  %v4592 = vpack.c.b16 %v4555, %v4554
  %v4593 = vpack.c.b16 %v4557, %v4556
  %v4594 = vpack.c.b16 %v4559, %v4558
  %v4595 = vpack.c.b16 %v4561, %v4560
  %v4596 = vpack.c.b16 %v4563, %v4562
  %v4597 = vpack.c.b16 %v4565, %v4564
  %4630 = vmatprep.subr.bf16.mxu0 0
  %4631 = vmatpush1.bf16.msra.mxu0 %v4573
  %4632 = vmatprep.subr.bf16.mxu0 0
  %4633 = vmatpush1.bf16.msra.mxu0 %v4572
  %4634 = vmatprep.subr.bf16.mxu0 0
  %4635 = vmatpush1.bf16.msra.mxu0 %v4571
  %4636 = vmatprep.subr.bf16.mxu0 0
  %4637 = vmatpush1.bf16.msra.mxu0 %v4570
  %4638 = vmatprep.subr.bf16.mxu0 0
  %4639 = vmatpush1.bf16.msra.mxu0 %v4569
  %4640 = vmatprep.subr.bf16.mxu0 0
  %4641 = vmatpush1.bf16.msra.mxu0 %v4568
  %4642 = vmatprep.subr.bf16.mxu0 0
  %4643 = vmatpush1.bf16.msra.mxu0 %v4567
  %4644 = vmatprep.subr.bf16.mxu0 0
  %4645 = vmatpush1.bf16.msra.mxu0 %v4566
  %4646 = vmatprep.subr.bf16.mxu0 0
  %4647 = vmatpush2.bf16.msra.mxu0 %v4581
  %4648 = vmatprep.subr.bf16.mxu0 0
  %4649 = vmatpush2.bf16.msra.mxu0 %v4580
  %4650 = vmatprep.subr.bf16.mxu0 0
  %4651 = vmatpush2.bf16.msra.mxu0 %v4579
  %4652 = vmatprep.subr.bf16.mxu0 0
  %4653 = vmatpush2.bf16.msra.mxu0 %v4578
  %4654 = vmatprep.subr.bf16.mxu0 0
  %4655 = vmatpush2.bf16.msra.mxu0 %v4577
  %4656 = vmatprep.subr.bf16.mxu0 0
  %4657 = vmatpush2.bf16.msra.mxu0 %v4576
  %4658 = vmatprep.subr.bf16.mxu0 0
  %4659 = vmatpush2.bf16.msra.mxu0 %v4575
  %4660 = vmatprep.subr.bf16.mxu0 0
  %4661 = vmatpush2.bf16.msra.mxu0 %v4574
  %4662 = vmatprep.mubr.bf16.mxu0 %v4359
  %4663 = vmatmul.mubr.bf16.gmra.mxu0 %v4358
  %v4664 = vpop.f32.mrf.mxu0
  %v4665 = vadd.f32 0.0, %v4664
  %v4666 = vpop.f32.mrf.mxu0
  %v4667 = vpop.f32.mrf.mxu0
  %v4668 = vadd.f32 0.0, %v4667
  %v4669 = vpop.f32.mrf.mxu0
  %4670 = vdwg.mxu0
  %4671 = vmatprep.subr.bf16.mxu0 0
  %4672 = vmatpush1.bf16.msra.mxu0 %v4589
  %4673 = vmatprep.subr.bf16.mxu0 0
  %4674 = vmatpush1.bf16.msra.mxu0 %v4588
  %4675 = vmatprep.subr.bf16.mxu0 0
  %4676 = vmatpush1.bf16.msra.mxu0 %v4587
  %4677 = vmatprep.subr.bf16.mxu0 0
  %4678 = vmatpush1.bf16.msra.mxu0 %v4586
  %4679 = vmatprep.subr.bf16.mxu0 0
  %4680 = vmatpush1.bf16.msra.mxu0 %v4585
  %4681 = vmatprep.subr.bf16.mxu0 0
  %4682 = vmatpush1.bf16.msra.mxu0 %v4584
  %4683 = vmatprep.subr.bf16.mxu0 0
  %4684 = vmatpush1.bf16.msra.mxu0 %v4583
  %4685 = vmatprep.subr.bf16.mxu0 0
  %4686 = vmatpush1.bf16.msra.mxu0 %v4582
  %4687 = vmatprep.subr.bf16.mxu0 0
  %4688 = vmatpush2.bf16.msra.mxu0 %v4597
  %4689 = vmatprep.subr.bf16.mxu0 0
  %4690 = vmatpush2.bf16.msra.mxu0 %v4596
  %4691 = vmatprep.subr.bf16.mxu0 0
  %4692 = vmatpush2.bf16.msra.mxu0 %v4595
  %4693 = vmatprep.subr.bf16.mxu0 0
  %4694 = vmatpush2.bf16.msra.mxu0 %v4594
  %4695 = vmatprep.subr.bf16.mxu0 0
  %4696 = vmatpush2.bf16.msra.mxu0 %v4593
  %4697 = vmatprep.subr.bf16.mxu0 0
  %4698 = vmatpush2.bf16.msra.mxu0 %v4592
  %4699 = vmatprep.subr.bf16.mxu0 0
  %4700 = vmatpush2.bf16.msra.mxu0 %v4591
  %4701 = vmatprep.subr.bf16.mxu0 0
  %4702 = vmatpush2.bf16.msra.mxu0 %v4590
  %4703 = vmatprep.mubr.bf16.mxu0 %v4361
  %4704 = vmatmul.mubr.bf16.gmra.mxu0 %v4360
  %v4705 = vpop.f32.mrf.mxu0
  %v4706 = vadd.f32 %v4665, %v4705
  %v4707 = vpop.f32.mrf.mxu0
  %v4708 = vpop.f32.mrf.mxu0
  %v4709 = vadd.f32 %v4668, %v4708
  %v4710 = vpop.f32.mrf.mxu0
  %4711 = vdwg.mxu0
  %v4712 = vadd.f32 %v4706, 0.0
  %v4713 = vadd.f32 %v4709, 0.0
  %4714 = vmatprep.subr.bf16.mxu0 0
  %4715 = vmatpush1.bf16.msra.mxu0 %v4573
  %4716 = vmatprep.subr.bf16.mxu0 0
  %4717 = vmatpush1.bf16.msra.mxu0 %v4572
  %4718 = vmatprep.subr.bf16.mxu0 0
  %4719 = vmatpush1.bf16.msra.mxu0 %v4571
  %4720 = vmatprep.subr.bf16.mxu0 0
  %4721 = vmatpush1.bf16.msra.mxu0 %v4570
  %4722 = vmatprep.subr.bf16.mxu0 0
  %4723 = vmatpush1.bf16.msra.mxu0 %v4569
  %4724 = vmatprep.subr.bf16.mxu0 0
  %4725 = vmatpush1.bf16.msra.mxu0 %v4568
  %4726 = vmatprep.subr.bf16.mxu0 0
  %4727 = vmatpush1.bf16.msra.mxu0 %v4567
  %4728 = vmatprep.subr.bf16.mxu0 0
  %4729 = vmatpush1.bf16.msra.mxu0 %v4566
  %4730 = vmatprep.subr.bf16.mxu0 0
  %4731 = vmatpush2.bf16.msra.mxu0 %v4581
  %4732 = vmatprep.subr.bf16.mxu0 0
  %4733 = vmatpush2.bf16.msra.mxu0 %v4580
  %4734 = vmatprep.subr.bf16.mxu0 0
  %4735 = vmatpush2.bf16.msra.mxu0 %v4579
  %4736 = vmatprep.subr.bf16.mxu0 0
  %4737 = vmatpush2.bf16.msra.mxu0 %v4578
  %4738 = vmatprep.subr.bf16.mxu0 0
  %4739 = vmatpush2.bf16.msra.mxu0 %v4577
  %4740 = vmatprep.subr.bf16.mxu0 0
  %4741 = vmatpush2.bf16.msra.mxu0 %v4576
  %4742 = vmatprep.subr.bf16.mxu0 0
  %4743 = vmatpush2.bf16.msra.mxu0 %v4575
  %4744 = vmatprep.subr.bf16.mxu0 0
  %4745 = vmatpush2.bf16.msra.mxu0 %v4574
  %4746 = vmatprep.mubr.bf16.mxu0 %v4363
  %4747 = vmatmul.mubr.bf16.gmra.mxu0 %v4362
  %v4748 = vpop.f32.mrf.mxu0
  %v4749 = vadd.f32 0.0, %v4748
  %v4750 = vpop.f32.mrf.mxu0
  %v4751 = vpop.f32.mrf.mxu0
  %v4752 = vadd.f32 0.0, %v4751
  %v4753 = vpop.f32.mrf.mxu0
  %4754 = vdwg.mxu0
  %4755 = vmatprep.subr.bf16.mxu0 0
  %4756 = vmatpush1.bf16.msra.mxu0 %v4589
  %4757 = vmatprep.subr.bf16.mxu0 0
  %4758 = vmatpush1.bf16.msra.mxu0 %v4588
  %4759 = vmatprep.subr.bf16.mxu0 0
  %4760 = vmatpush1.bf16.msra.mxu0 %v4587
  %4761 = vmatprep.subr.bf16.mxu0 0
  %4762 = vmatpush1.bf16.msra.mxu0 %v4586
  %4763 = vmatprep.subr.bf16.mxu0 0
  %4764 = vmatpush1.bf16.msra.mxu0 %v4585
  %4765 = vmatprep.subr.bf16.mxu0 0
  %4766 = vmatpush1.bf16.msra.mxu0 %v4584
  %4767 = vmatprep.subr.bf16.mxu0 0
  %4768 = vmatpush1.bf16.msra.mxu0 %v4583
  %4769 = vmatprep.subr.bf16.mxu0 0
  %4770 = vmatpush1.bf16.msra.mxu0 %v4582
  %4771 = vmatprep.subr.bf16.mxu0 0
  %4772 = vmatpush2.bf16.msra.mxu0 %v4597
  %4773 = vmatprep.subr.bf16.mxu0 0
  %4774 = vmatpush2.bf16.msra.mxu0 %v4596
  %4775 = vmatprep.subr.bf16.mxu0 0
  %4776 = vmatpush2.bf16.msra.mxu0 %v4595
  %4777 = vmatprep.subr.bf16.mxu0 0
  %4778 = vmatpush2.bf16.msra.mxu0 %v4594
  %4779 = vmatprep.subr.bf16.mxu0 0
  %4780 = vmatpush2.bf16.msra.mxu0 %v4593
  %4781 = vmatprep.subr.bf16.mxu0 0
  %4782 = vmatpush2.bf16.msra.mxu0 %v4592
  %4783 = vmatprep.subr.bf16.mxu0 0
  %4784 = vmatpush2.bf16.msra.mxu0 %v4591
  %4785 = vmatprep.subr.bf16.mxu0 0
  %4786 = vmatpush2.bf16.msra.mxu0 %v4590
  %4787 = vmatprep.mubr.bf16.mxu0 %v4365
  %4788 = vmatmul.mubr.bf16.gmra.mxu0 %v4364
  %v4789 = vpop.f32.mrf.mxu0
  %v4790 = vadd.f32 %v4749, %v4789
  %v4791 = vpop.f32.mrf.mxu0
  %v4792 = vpop.f32.mrf.mxu0
  %v4793 = vadd.f32 %v4752, %v4792
  %v4794 = vpop.f32.mrf.mxu0
  %4795 = vdwg.mxu0
  %4798 = vrot.lane.b32.xlu0 %v4790, 96
  %v4799 = vpop.permute.xlu0 %4798
  %4800 = vrot.lane.b32.xlu0 %v4793, 96
  %v4801 = vpop.permute.xlu0 %4800
  %v4804 = vadd.f32 %v4712, %v4799
  %v4805 = vadd.f32 %v4713, %v4801
  %4806 = vmatprep.subr.bf16.mxu0 0
  %4807 = vmatpush1.bf16.msra.mxu0 %v4573
  %4808 = vmatprep.subr.bf16.mxu0 0
  %4809 = vmatpush1.bf16.msra.mxu0 %v4572
  %4810 = vmatprep.subr.bf16.mxu0 0
  %4811 = vmatpush1.bf16.msra.mxu0 %v4571
  %4812 = vmatprep.subr.bf16.mxu0 0
  %4813 = vmatpush1.bf16.msra.mxu0 %v4570
  %4814 = vmatprep.subr.bf16.mxu0 0
  %4815 = vmatpush1.bf16.msra.mxu0 %v4569
  %4816 = vmatprep.subr.bf16.mxu0 0
  %4817 = vmatpush1.bf16.msra.mxu0 %v4568
  %4818 = vmatprep.subr.bf16.mxu0 0
  %4819 = vmatpush1.bf16.msra.mxu0 %v4567
  %4820 = vmatprep.subr.bf16.mxu0 0
  %4821 = vmatpush1.bf16.msra.mxu0 %v4566
  %4822 = vmatprep.subr.bf16.mxu0 0
  %4823 = vmatpush2.bf16.msra.mxu0 %v4581
  %4824 = vmatprep.subr.bf16.mxu0 0
  %4825 = vmatpush2.bf16.msra.mxu0 %v4580
  %4826 = vmatprep.subr.bf16.mxu0 0
  %4827 = vmatpush2.bf16.msra.mxu0 %v4579
  %4828 = vmatprep.subr.bf16.mxu0 0
  %4829 = vmatpush2.bf16.msra.mxu0 %v4578
  %4830 = vmatprep.subr.bf16.mxu0 0
  %4831 = vmatpush2.bf16.msra.mxu0 %v4577
  %4832 = vmatprep.subr.bf16.mxu0 0
  %4833 = vmatpush2.bf16.msra.mxu0 %v4576
  %4834 = vmatprep.subr.bf16.mxu0 0
  %4835 = vmatpush2.bf16.msra.mxu0 %v4575
  %4836 = vmatprep.subr.bf16.mxu0 0
  %4837 = vmatpush2.bf16.msra.mxu0 %v4574
  %4838 = vmatprep.mubr.bf16.mxu0 %v4367
  %4839 = vmatmul.mubr.bf16.gmra.mxu0 %v4366
  %v4840 = vpop.f32.mrf.mxu0
  %v4841 = vadd.f32 0.0, %v4840
  %v4842 = vpop.f32.mrf.mxu0
  %v4843 = vpop.f32.mrf.mxu0
  %v4844 = vadd.f32 0.0, %v4843
  %v4845 = vpop.f32.mrf.mxu0
  %4846 = vdwg.mxu0
  %4847 = vmatprep.subr.bf16.mxu0 0
  %4848 = vmatpush1.bf16.msra.mxu0 %v4589
  %4849 = vmatprep.subr.bf16.mxu0 0
  %4850 = vmatpush1.bf16.msra.mxu0 %v4588
  %4851 = vmatprep.subr.bf16.mxu0 0
  %4852 = vmatpush1.bf16.msra.mxu0 %v4587
  %4853 = vmatprep.subr.bf16.mxu0 0
  %4854 = vmatpush1.bf16.msra.mxu0 %v4586
  %4855 = vmatprep.subr.bf16.mxu0 0
  %4856 = vmatpush1.bf16.msra.mxu0 %v4585
  %4857 = vmatprep.subr.bf16.mxu0 0
  %4858 = vmatpush1.bf16.msra.mxu0 %v4584
  %4859 = vmatprep.subr.bf16.mxu0 0
  %4860 = vmatpush1.bf16.msra.mxu0 %v4583
  %4861 = vmatprep.subr.bf16.mxu0 0
  %4862 = vmatpush1.bf16.msra.mxu0 %v4582
  %4863 = vmatprep.subr.bf16.mxu0 0
  %4864 = vmatpush2.bf16.msra.mxu0 %v4597
  %4865 = vmatprep.subr.bf16.mxu0 0
  %4866 = vmatpush2.bf16.msra.mxu0 %v4596
  %4867 = vmatprep.subr.bf16.mxu0 0
  %4868 = vmatpush2.bf16.msra.mxu0 %v4595
  %4869 = vmatprep.subr.bf16.mxu0 0
  %4870 = vmatpush2.bf16.msra.mxu0 %v4594
  %4871 = vmatprep.subr.bf16.mxu0 0
  %4872 = vmatpush2.bf16.msra.mxu0 %v4593
  %4873 = vmatprep.subr.bf16.mxu0 0
  %4874 = vmatpush2.bf16.msra.mxu0 %v4592
  %4875 = vmatprep.subr.bf16.mxu0 0
  %4876 = vmatpush2.bf16.msra.mxu0 %v4591
  %4877 = vmatprep.subr.bf16.mxu0 0
  %4878 = vmatpush2.bf16.msra.mxu0 %v4590
  %4879 = vmatprep.mubr.bf16.mxu0 %v4369
  %4880 = vmatmul.mubr.bf16.gmra.mxu0 %v4368
  %v4881 = vpop.f32.mrf.mxu0
  %v4882 = vadd.f32 %v4841, %v4881
  %v4883 = vpop.f32.mrf.mxu0
  %v4884 = vpop.f32.mrf.mxu0
  %v4885 = vadd.f32 %v4844, %v4884
  %v4886 = vpop.f32.mrf.mxu0
  %4887 = vdwg.mxu0
  %4890 = vrot.lane.b32.xlu0 %v4882, 64
  %v4891 = vpop.permute.xlu0 %4890
  %4892 = vrot.lane.b32.xlu0 %v4885, 64
  %v4893 = vpop.permute.xlu0 %4892
  %v4896 = vadd.f32 %v4804, %v4891
  %v4897 = vadd.f32 %v4805, %v4893
  %4898 = vmatprep.subr.bf16.mxu0 0
  %4899 = vmatpush1.bf16.msra.mxu0 %v4573
  %4900 = vmatprep.subr.bf16.mxu0 0
  %4901 = vmatpush1.bf16.msra.mxu0 %v4572
  %4902 = vmatprep.subr.bf16.mxu0 0
  %4903 = vmatpush1.bf16.msra.mxu0 %v4571
  %4904 = vmatprep.subr.bf16.mxu0 0
  %4905 = vmatpush1.bf16.msra.mxu0 %v4570
  %4906 = vmatprep.subr.bf16.mxu0 0
  %4907 = vmatpush1.bf16.msra.mxu0 %v4569
  %4908 = vmatprep.subr.bf16.mxu0 0
  %4909 = vmatpush1.bf16.msra.mxu0 %v4568
  %4910 = vmatprep.subr.bf16.mxu0 0
  %4911 = vmatpush1.bf16.msra.mxu0 %v4567
  %4912 = vmatprep.subr.bf16.mxu0 0
  %4913 = vmatpush1.bf16.msra.mxu0 %v4566
  %4914 = vmatprep.subr.bf16.mxu0 0
  %4915 = vmatpush2.bf16.msra.mxu0 %v4581
  %4916 = vmatprep.subr.bf16.mxu0 0
  %4917 = vmatpush2.bf16.msra.mxu0 %v4580
  %4918 = vmatprep.subr.bf16.mxu0 0
  %4919 = vmatpush2.bf16.msra.mxu0 %v4579
  %4920 = vmatprep.subr.bf16.mxu0 0
  %4921 = vmatpush2.bf16.msra.mxu0 %v4578
  %4922 = vmatprep.subr.bf16.mxu0 0
  %4923 = vmatpush2.bf16.msra.mxu0 %v4577
  %4924 = vmatprep.subr.bf16.mxu0 0
  %4925 = vmatpush2.bf16.msra.mxu0 %v4576
  %4926 = vmatprep.subr.bf16.mxu0 0
  %4927 = vmatpush2.bf16.msra.mxu0 %v4575
  %4928 = vmatprep.subr.bf16.mxu0 0
  %4929 = vmatpush2.bf16.msra.mxu0 %v4574
  %4930 = vmatprep.mubr.bf16.mxu0 %v4371
  %4931 = vmatmul.mubr.bf16.gmra.mxu0 %v4370
  %v4932 = vpop.f32.mrf.mxu0
  %v4933 = vadd.f32 0.0, %v4932
  %v4934 = vpop.f32.mrf.mxu0
  %v4935 = vpop.f32.mrf.mxu0
  %v4936 = vadd.f32 0.0, %v4935
  %v4937 = vpop.f32.mrf.mxu0
  %4938 = vdwg.mxu0
  %4939 = vmatprep.subr.bf16.mxu0 0
  %4940 = vmatpush1.bf16.msra.mxu0 %v4589
  %4941 = vmatprep.subr.bf16.mxu0 0
  %4942 = vmatpush1.bf16.msra.mxu0 %v4588
  %4943 = vmatprep.subr.bf16.mxu0 0
  %4944 = vmatpush1.bf16.msra.mxu0 %v4587
  %4945 = vmatprep.subr.bf16.mxu0 0
  %4946 = vmatpush1.bf16.msra.mxu0 %v4586
  %4947 = vmatprep.subr.bf16.mxu0 0
  %4948 = vmatpush1.bf16.msra.mxu0 %v4585
  %4949 = vmatprep.subr.bf16.mxu0 0
  %4950 = vmatpush1.bf16.msra.mxu0 %v4584
  %4951 = vmatprep.subr.bf16.mxu0 0
  %4952 = vmatpush1.bf16.msra.mxu0 %v4583
  %4953 = vmatprep.subr.bf16.mxu0 0
  %4954 = vmatpush1.bf16.msra.mxu0 %v4582
  %4955 = vmatprep.subr.bf16.mxu0 0
  %4956 = vmatpush2.bf16.msra.mxu0 %v4597
  %4957 = vmatprep.subr.bf16.mxu0 0
  %4958 = vmatpush2.bf16.msra.mxu0 %v4596
  %4959 = vmatprep.subr.bf16.mxu0 0
  %4960 = vmatpush2.bf16.msra.mxu0 %v4595
  %4961 = vmatprep.subr.bf16.mxu0 0
  %4962 = vmatpush2.bf16.msra.mxu0 %v4594
  %4963 = vmatprep.subr.bf16.mxu0 0
  %4964 = vmatpush2.bf16.msra.mxu0 %v4593
  %4965 = vmatprep.subr.bf16.mxu0 0
  %4966 = vmatpush2.bf16.msra.mxu0 %v4592
  %4967 = vmatprep.subr.bf16.mxu0 0
  %4968 = vmatpush2.bf16.msra.mxu0 %v4591
  %4969 = vmatprep.subr.bf16.mxu0 0
  %4970 = vmatpush2.bf16.msra.mxu0 %v4590
  %4971 = vmatprep.mubr.bf16.mxu0 %v4373
  %4972 = vmatmul.mubr.bf16.gmra.mxu0 %v4372
  %v4973 = vpop.f32.mrf.mxu0
  %v4974 = vadd.f32 %v4933, %v4973
  %v4975 = vpop.f32.mrf.mxu0
  %v4976 = vpop.f32.mrf.mxu0
  %v4977 = vadd.f32 %v4936, %v4976
  %v4978 = vpop.f32.mrf.mxu0
  %4979 = vdwg.mxu0
  %4982 = vrot.lane.b32.xlu0 %v4974, 32
  %v4983 = vpop.permute.xlu0 %4982
  %4984 = vrot.lane.b32.xlu0 %v4977, 32
  %v4985 = vpop.permute.xlu0 %4984
  %v4988 = vadd.f32 %v4896, %v4983
  %v4989 = vadd.f32 %v4897, %v4985
  %v4990 = vlaneseq
  %v4991 = vshrl.u32 %v4990, 7
  %v4992 = vsub.s32 5, %v4991
  %v4993 = vrot.slane %v81, %v4992
  %v4994 = vadd.f32 %v4988, %v4993
  %v4995 = vadd.f32 %v4989, %v4993
  %v4996 = vadd.f32 %v3636, %v4994
  %v4997 = vadd.f32 %v3637, %v4995
  %v4998 = vsel %vm225, %v4996, 0.0
  %4999 = vadd.xlane.f32.xlu0 %v4998
  %v5000 = vpop.xlane.xlu0 %4999
  %v5001 = vsel %vm1187, %v4997, 0.0
  %5002 = vadd.xlane.f32.xlu0 %v5001
  %v5003 = vpop.xlane.xlu0 %5002
  %v5004 = vmul.f32 %v5000, %v1191
  %v5005 = vmul.f32 %v5003, %v1191
  %v5006 = vsub.f32 %v4996, %v5004
  %v5007 = vsub.f32 %v4997, %v5005
  %v5008 = vmul.f32 %v5006, %v5006
  %v5009 = vmul.f32 %v5007, %v5007
  %v5010 = vsel %vm225, %v5008, 0.0
  %5011 = vadd.xlane.f32.xlu0 %v5010
  %v5012 = vpop.xlane.xlu0 %5011
  %v5013 = vsel %vm1187, %v5009, 0.0
  %5014 = vadd.xlane.f32.xlu0 %v5013
  %v5015 = vpop.xlane.xlu0 %5014
  %v5016 = vmul.f32 %v5012, %v1191
  %v5017 = vmul.f32 %v5015, %v1191
  %v5018 = vadd.f32 %v5016, 1e-05
  %v5019 = vadd.f32 %v5017, 1e-05
  %v5020 = vrsqrt.pop %v5018
  %v5021 = vrsqrt.pop %v5019
  %v5022 = vmul.f32 %v5006, %v5020
  %v5023 = vmul.f32 %v5007, %v5021
  %v5024 = vlaneseq
  %v5025 = vshrl.u32 %v5024, 7
  %v5026 = vsub.s32 6, %v5025
  %v5027 = vrot.slane %v81, %v5026
  %v5028 = vmul.f32 %v5022, %v5027
  %v5029 = vmul.f32 %v5023, %v5027
  %v5030 = vlaneseq
  %v5031 = vshrl.u32 %v5030, 7
  %v5032 = vsub.s32 7, %v5031
  %v5033 = vrot.slane %v81, %v5032
  %v5034 = vadd.f32 %v5028, %v5033
  %v5035 = vadd.f32 %v5029, %v5033
  %v5036 = vld [vmem:[%s4] sm:$0xff]
  %v5037 = vld [vmem:[%s4 + $0x8] sm:$0xff]
  %v5038 = vld [vmem:[%s4 + $0x10] sm:$0xff]
  %v5039 = vld [vmem:[%s4 + $0x18] sm:$0xff]
  %v5040 = vlaneseq
  %v5041 = vshrl.u32 %v5040, 7
  %v5042 = vsub.s32 1, %v5041
  %v5043 = vrot.slane %v80, %v5042
  %v5045 = vsel %vm225, %v5034, 0
  %v5048 = vsel %vm225, %v5035, 0
  %5050 = vmatprep.subr.mxu0 0.0
  %5051 = vmatpush1.msra.mxu0 0.0
  %5052 = vmatprep.subr.mxu0 0.0
  %5053 = vmatpush1.msra.mxu0 0.0
  %5054 = vmatprep.subr.mxu0 0.0
  %5055 = vmatpush1.msra.mxu0 0.0
  %5056 = vmatprep.subr.mxu0 0.0
  %5057 = vmatpush1.msra.mxu0 0.0
  %5058 = vmatprep.subr.mxu0 0.0
  %5059 = vmatpush1.msra.mxu0 0.0
  %5060 = vmatprep.subr.mxu0 0.0
  %5061 = vmatpush1.msra.mxu0 0.0
  %5062 = vmatprep.subr.mxu0 0.0
  %5063 = vmatpush1.msra.mxu0 0.0
  %5064 = vmatprep.subr.mxu0 0.0
  %5065 = vmatpush1.msra.mxu0 0.0
  %5066 = vmatprep.subr.mxu0 0.0
  %5067 = vmatpush1.msra.mxu0 0.0
  %5068 = vmatprep.subr.mxu0 0.0
  %5069 = vmatpush1.msra.mxu0 0.0
  %5070 = vmatprep.subr.mxu0 0.0
  %5071 = vmatpush1.msra.mxu0 0.0
  %5072 = vmatprep.subr.mxu0 0.0
  %5073 = vmatpush1.msra.mxu0 0.0
  %5074 = vmatprep.subr.mxu0 0.0
  %5075 = vmatpush1.msra.mxu0 %v5039
  %5076 = vmatprep.subr.mxu0 0.0
  %5077 = vmatpush1.msra.mxu0 %v5038
  %5078 = vmatprep.subr.mxu0 0.0
  %5079 = vmatpush1.msra.mxu0 %v5037
  %5080 = vmatprep.subr.mxu0 0.0
  %5081 = vmatpush1.msra.mxu0 %v5036
  %5082 = vmatprep.subr.mxu0 0.0
  %5083 = vmatpush2.msra.mxu0 0.0
  %5084 = vmatprep.subr.mxu0 0.0
  %5085 = vmatpush2.msra.mxu0 0.0
  %5086 = vmatprep.subr.mxu0 0.0
  %5087 = vmatpush2.msra.mxu0 0.0
  %5088 = vmatprep.subr.mxu0 0.0
  %5089 = vmatpush2.msra.mxu0 0.0
  %5090 = vmatprep.subr.mxu0 0.0
  %5091 = vmatpush2.msra.mxu0 0.0
  %5092 = vmatprep.subr.mxu0 0.0
  %5093 = vmatpush2.msra.mxu0 0.0
  %5094 = vmatprep.subr.mxu0 0.0
  %5095 = vmatpush2.msra.mxu0 0.0
  %5096 = vmatprep.subr.mxu0 0.0
  %5097 = vmatpush2.msra.mxu0 0.0
  %5098 = vmatprep.subr.mxu0 0.0
  %5099 = vmatpush2.msra.mxu0 0.0
  %5100 = vmatprep.subr.mxu0 0.0
  %5101 = vmatpush2.msra.mxu0 0.0
  %5102 = vmatprep.subr.mxu0 0.0
  %5103 = vmatpush2.msra.mxu0 0.0
  %5104 = vmatprep.subr.mxu0 0.0
  %5105 = vmatpush2.msra.mxu0 0.0
  %5106 = vmatprep.subr.mxu0 0.0
  %5107 = vmatpush2.msra.mxu0 0.0
  %5108 = vmatprep.subr.mxu0 0.0
  %5109 = vmatpush2.msra.mxu0 0.0
  %5110 = vmatprep.subr.mxu0 0.0
  %5111 = vmatpush2.msra.mxu0 0.0
  %5112 = vmatprep.subr.mxu0 0.0
  %5113 = vmatpush2.msra.mxu0 0.0
  %5114 = vmatprep.mubr.f32.mxu0 0.0
  %5115 = vmatmul.mubr.f32.gmra.mxu0 %v5045
  %v5116 = vpop.f32.mrf.mxu0
  %v5117 = vadd.f32 %v5043, %v5116
  %v5118 = vpop.f32.mrf.mxu0
  %5119 = vmatprep.mubr.f32.mxu0 0.0
  %5120 = vmatmul.mubr.f32.gmra.mxu0 %v5048
  %v5121 = vpop.f32.mrf.mxu0
  %v5122 = vadd.f32 %v5043, %v5121
  %v5123 = vpop.f32.mrf.mxu0
  %5124 = vdwg.mxu0
  %5125 = vst [vmem:[%s9] sm:$0xff] %v5117
  %5126 = vst [vmem:[%s9 + $0x8] sm:$0x3] %v5122
  // Predicated region
  $region46: #{speech_xformer_forward.1} parent=0 // pred_check
    _
  $region47: #{speech_xformer_forward.1} parent=0 // pred_check_branch
    %5128 = sbr.rel (0) target = $region49
  $region48: #{speech_xformer_forward.1} parent=0 // pred_region
    _
  $region49: #{speech_xformer_forward.1} parent=0 // pred_fallthru
    _
  // Predicated region
  $region50: #{speech_xformer_forward.1} parent=0 // pred_check
    _
  $region51: #{speech_xformer_forward.1} parent=0 // pred_check_branch
    %5130 = sbr.rel (0) target = $region53
  $region52: #{speech_xformer_forward.1} parent=0 // pred_region
    _
  $region53: #{speech_xformer_forward.1} parent=0 // pred_fallthru
    _
  %5131 = vsyncmov [#allocation5]
  %s5132 = vpop.sfrf %5131
  %p5133 = scmp.eq.s32.totalorder %s5132, 0
  %p5134 = pneg %p5133
  %5136 = shalt.err (%p5134)
  %s5137 = scalar_lea.sflag [#allocation5], 1
  %5138 = vsyncmov %s5137
  %s5139 = vpop.sfrf %5138
  %p5140 = scmp.eq.s32.totalorder %s5139, 0
  %p5141 = pneg %p5140
  %5143 = shalt.err (%p5141)
  %s5144 = scalar_lea.sflag [#allocation5], 2
  %5145 = vsyncmov %s5144
  %s5146 = vpop.sfrf %5145
  %p5147 = scmp.eq.s32.totalorder %s5146, 0
  %p5148 = pneg %p5147
  %5150 = shalt.err (%p5148)
  %s5151 = scalar_lea.sflag [#allocation5], 3
  %5152 = vsyncmov %s5151
  %s5153 = vpop.sfrf %5152
  %p5154 = scmp.eq.s32.totalorder %s5153, 0
  %p5155 = pneg %p5154
  %5157 = shalt.err (%p5155)

</llo_original>
